<compile_context>
chip_gen: v5e
topology: v5e:2x2
jax: 0.10.0
libtpu: 0.0.40
codegen_flags: <defaults>
</compile_context>

<pallas_src>
import functools

import jax
import jax.numpy as jnp
from jax.experimental import pallas as pl
from jax.experimental.pallas import tpu as pltpu


# ----------------------------------------------------------------------------
# Model hyper-parameters (small, consistent with the module's forward)
# ----------------------------------------------------------------------------
VOCAB_SIZE = 100
TYPE_VOCAB = 2
MAX_POS = 32
ENT_VOCAB = 20
HIDDEN = 32           # args.bert_hidden_size
ENT_DIM = 16
NUM_HEADS = 4
HEAD_DIM = HIDDEN // NUM_HEADS
INTERMEDIATE = 64
NUM_LAYERS = 2
NUM_LABELS = 3        # len(labels)
LOGITS_PAD = 128      # lane-dense classifier output width (sliced outside)
LN_EPS = 1e-12


# ----------------------------------------------------------------------------
# Fused Pallas kernel: embeddings-LN -> N encoder layers -> pooler -> classifier
# Single invocation (no grid); layers unrolled inside the kernel.
# ----------------------------------------------------------------------------
def _ernie_kernel(emb_ref, ent_ref, addmask_ref, eg_ref, eb_ref,
                  wqkv_ref, bqkv_ref, wo_ref, bo_ref, ln1g_ref, ln1b_ref,
                  wdt_ref, wde_ref, bd_ref, lnfg_ref, lnfb_ref,
                  w1_ref, b1_ref, w2_ref, b2_ref, ln2g_ref, ln2b_ref,
                  poolw_ref, poolb_ref, clsw_ref, clsb_ref,
                  out_ref,
                  *, B, S, H, nH, dh, L, eps):
    f32 = jnp.float32
    bf16 = jnp.bfloat16

    def layernorm(x, g, b):
        m = jnp.mean(x, axis=-1, keepdims=True)
        v = jnp.mean((x - m) ** 2, axis=-1, keepdims=True)
        return (x - m) * jax.lax.rsqrt(v + eps) * g + b

    def mxu(a, b):
        # bf16 MXU operands, f32 accumulation (native on v5e/v6e/v7x MXUs).
        return jnp.dot(a.astype(bf16), b.astype(bf16),
                       preferred_element_type=f32)

    # Loaded / computed exactly once per invocation.
    add_m = addmask_ref[...]                       # [B*S, B*S] additive mask
    ent_bf = ent_ref[...].astype(bf16)             # [B*S, E]
    scale = 1.0 / float(dh) ** 0.5

    # Embedding layernorm (f32).
    h = layernorm(emb_ref[...], eg_ref[...], eb_ref[...])      # [B*S, H]

    # ---- encoder layers (fully unrolled, weights indexed per layer) ----
    for l in range(L):
        x = h

        # Fused Q/K/V projection: one MXU push per layer.
        qkv = mxu(x, wqkv_ref[l]) + bqkv_ref[l]                 # [B*S, 3H] f32
        wo = wo_ref[l]                                          # [H, H] bf16

        # Multi-head self-attention, joint over the whole batch slab with a
        # block-diagonal mask; per-head output projection folded in so heads
        # never need to be re-packed along the lane axis.
        attn = None
        for hh in range(nH):
            c0 = hh * dh
            q_h = qkv[:, c0:c0 + dh]                            # [B*S, dh]
            k_h = qkv[:, H + c0:H + c0 + dh]                    # [B*S, dh]
            v_h = qkv[:, 2 * H + c0:2 * H + c0 + dh]            # [B*S, dh]

            s = mxu(q_h, k_h.T) * scale + add_m                 # [B*S, B*S]
            s = s - jnp.max(s, axis=-1, keepdims=True)
            p = jnp.exp(s)
            # TODO(synk): approx reciprocal has ~1e-3 rel error vs exact division.
            p = p * pl.reciprocal(jnp.sum(p, axis=-1, keepdims=True), approx=True)

            ctx = mxu(p, v_h)                                   # [B*S, dh]
            part = mxu(ctx, wo[c0:c0 + dh, :])                  # [B*S, H]
            attn = part if attn is None else attn + part

        attn = attn + bo_ref[l]
        h1 = layernorm(attn + x, ln1g_ref[l], ln1b_ref[l])

        # ---- ERNIE token/entity aggregator (simplified: single fused dense) ----
        # TODO(synk): real ERNIE keeps separate token/entity streams with entity
        # attention; only the token stream is updated here.
        info = mxu(h1, wdt_ref[l]) + mxu(ent_bf, wde_ref[l]) + bd_ref[l]
        # TODO(synk): jax.nn.gelu defaults to the tanh approximation; BERT/ERNIE
        # use the exact erf GELU.
        info = jax.nn.gelu(info)
        h2 = layernorm(info + h1, lnfg_ref[l], lnfb_ref[l])

        # ---- feed forward ----
        inter = jax.nn.gelu(mxu(h2, w1_ref[l]) + b1_ref[l])
        ffn = mxu(inter, w2_ref[l]) + b2_ref[l]
        h = layernorm(ffn + h2, ln2g_ref[l], ln2b_ref[l])

    # ---- pooler + classifier (lane-dense 128-wide store) ----
    # CLS rows are rows {0, S, 2S, ...}: two static, sublane-aligned row slices.
    cls = jnp.concatenate([h[b * S:b * S + 1, :] for b in range(B)], axis=0)  # [B, H]
    pooled = jnp.tanh(mxu(cls, poolw_ref[...]) + poolb_ref[...])
    # TODO(synk): nn.Dropout(args.bert_dropout) is identity in eval mode.
    logits = mxu(pooled, clsw_ref[...]) + clsb_ref[...]                       # [B, 128]
    out_ref[...] = logits.astype(out_ref.dtype)


# ----------------------------------------------------------------------------
# Deterministic parameter construction (stacked per-layer, QKV fused, padded cls)
# MXU-feeding weights stored in bf16; biases / LN params / embeddings in f32.
# ----------------------------------------------------------------------------
def init_params(key):
    def nrm(k, shape, std=0.02, dtype=jnp.float32):
        return (std * jax.random.normal(k, shape)).astype(dtype)

    L, H, E, I = NUM_LAYERS, HIDDEN, ENT_DIM, INTERMEDIATE
    bf16 = jnp.bfloat16
    keys = iter(jax.random.split(key, 32))
    p = {
        "word_emb": nrm(next(keys), (VOCAB_SIZE, H)),
        "pos_emb": nrm(next(keys), (MAX_POS, H)),
        "type_emb": nrm(next(keys), (TYPE_VOCAB, H)),
        "ent_emb": nrm(next(keys), (ENT_VOCAB, E)),
        "emb_ln_g": jnp.ones((1, H), jnp.float32),
        "emb_ln_b": jnp.zeros((1, H), jnp.float32),
        # per-layer weights stacked on a leading layer axis; Q/K/V fused to [H, 3H]
        "wqkv": nrm(next(keys), (L, H, 3 * H), dtype=bf16),
        "bqkv": jnp.zeros((L, 1, 3 * H), jnp.float32),
        "wo": nrm(next(keys), (L, H, H), dtype=bf16),
        "bo": jnp.zeros((L, 1, H), jnp.float32),
        "ln1_g": jnp.ones((L, 1, H), jnp.float32),
        "ln1_b": jnp.zeros((L, 1, H), jnp.float32),
        "w_dt": nrm(next(keys), (L, H, H), dtype=bf16),
        "w_de": nrm(next(keys), (L, E, H), dtype=bf16),
        "b_d": jnp.zeros((L, 1, H), jnp.float32),
        "lnf_g": jnp.ones((L, 1, H), jnp.float32),
        "lnf_b": jnp.zeros((L, 1, H), jnp.float32),
        "w1": nrm(next(keys), (L, H, I), dtype=bf16),
        "b1": jnp.zeros((L, 1, I), jnp.float32),
        "w2": nrm(next(keys), (L, I, H), dtype=bf16),
        "b2": jnp.zeros((L, 1, H), jnp.float32),
        "ln2_g": jnp.ones((L, 1, H), jnp.float32),
        "ln2_b": jnp.zeros((L, 1, H), jnp.float32),
        "pool_w": nrm(next(keys), (H, H), dtype=bf16),
        "pool_b": jnp.zeros((1, H), jnp.float32),
    }
    cls_w = nrm(next(keys), (H, NUM_LABELS), dtype=bf16)
    p["cls_w_pad"] = jnp.concatenate(
        [cls_w, jnp.zeros((H, LOGITS_PAD - NUM_LABELS), bf16)], axis=1)
    p["cls_b_pad"] = jnp.zeros((1, LOGITS_PAD), jnp.float32)
    return p


# ----------------------------------------------------------------------------
# ErnieNet forward (single pallas_call, no grid — whole model in one invocation)
# ----------------------------------------------------------------------------
@jax.jit
def ernie_net_forward(params, input_ids, token_type_ids, attention_mask,
                      input_ent, ent_mask):
    B, S = input_ids.shape
    H = HIDDEN

    # ---- embedding gathers (glue outside the kernel) ----
    pos_ids = jnp.broadcast_to(jnp.arange(S)[None, :], (B, S))
    emb = (jnp.take(params["word_emb"], input_ids, axis=0)
           + jnp.take(params["pos_emb"], pos_ids, axis=0)
           + jnp.take(params["type_emb"], token_type_ids, axis=0))
    emb2d = emb.reshape(B * S, H).astype(jnp.float32)
    ent2d = (jnp.take(params["ent_emb"], input_ent, axis=0)
             * ent_mask[..., None]).reshape(B * S, ENT_DIM).astype(jnp.float32)

    # Precomputed block-diagonal additive attention mask over the [B*S, B*S]
    # score slab: 0 where (same batch AND key valid), -1e9 elsewhere.
    seg = jnp.repeat(jnp.arange(B), S)                        # [B*S]
    key_ok = attention_mask.reshape(B * S) > 0                # [B*S]
    valid = (seg[:, None] == seg[None, :]) & key_ok[None, :]
    add_mask = jnp.where(valid, 0.0, -1e9).astype(jnp.float32)

    kernel = functools.partial(_ernie_kernel, B=B, S=S, H=H,
                               nH=NUM_HEADS, dh=HEAD_DIM, L=NUM_LAYERS,
                               eps=LN_EPS)

    operands = (
        emb2d, ent2d, add_mask,
        params["emb_ln_g"], params["emb_ln_b"],
        params["wqkv"], params["bqkv"],
        params["wo"], params["bo"],
        params["ln1_g"], params["ln1_b"],
        params["w_dt"], params["w_de"], params["b_d"],
        params["lnf_g"], params["lnf_b"],
        params["w1"], params["b1"], params["w2"], params["b2"],
        params["ln2_g"], params["ln2_b"],
        params["pool_w"], params["pool_b"],
        params["cls_w_pad"], params["cls_b_pad"],
    )

    vmem = pl.BlockSpec(memory_space=pltpu.MemorySpace.VMEM)   # whole array in VMEM
    logits_pad = pl.pallas_call(
        kernel,
        out_shape=jax.ShapeDtypeStruct((B, LOGITS_PAD), jnp.float32),
        in_specs=[vmem] * len(operands),
        out_specs=vmem,
    )(*operands)

    return logits_pad[:, :NUM_LABELS]


# ----------------------------------------------------------------------------
# Main
# ----------------------------------------------------------------------------
if __name__ == "__main__":
    key = jax.random.PRNGKey(0)
    k_param, k_ids, k_ent, k_entm = jax.random.split(key, 4)

    params = init_params(k_param)

    B, S = 2, 8
    input_ids = jax.random.randint(k_ids, (B, S), 0, VOCAB_SIZE, dtype=jnp.int32)
    token_type_ids = jnp.zeros((B, S), jnp.int32)
    # example: first sequence fully valid, second has 2 padded positions
    attention_mask = (jnp.arange(S)[None, :] < jnp.array([[8], [6]])).astype(jnp.int32)
    input_ent = jax.random.randint(k_ent, (B, S), 0, ENT_VOCAB, dtype=jnp.int32)
    ent_mask = jax.random.bernoulli(k_entm, 0.5, (B, S)).astype(jnp.float32)

    logits = ernie_net_forward(params, input_ids, token_type_ids,
                               attention_mask, input_ent, ent_mask)
    jax.block_until_ready(logits)
    assert logits.shape == (B, NUM_LABELS)
    assert bool(jnp.all(jnp.isfinite(logits)))
    print("KERNEL_OK")
</pallas_src>

<mosaic_0001>
module attributes {stable_mosaic.version = 11 : i64} {
  func.func @_ernie_kernel(%arg0: memref<16x32xf32, #tpu.memory_space<vmem>>, %arg1: memref<16x16xf32, #tpu.memory_space<vmem>>, %arg2: memref<16x16xf32, #tpu.memory_space<vmem>>, %arg3: memref<1x32xf32, #tpu.memory_space<vmem>>, %arg4: memref<1x32xf32, #tpu.memory_space<vmem>>, %arg5: memref<2x32x96xbf16, #tpu.memory_space<vmem>>, %arg6: memref<2x1x96xf32, #tpu.memory_space<vmem>>, %arg7: memref<2x32x32xbf16, #tpu.memory_space<vmem>>, %arg8: memref<2x1x32xf32, #tpu.memory_space<vmem>>, %arg9: memref<2x1x32xf32, #tpu.memory_space<vmem>>, %arg10: memref<2x1x32xf32, #tpu.memory_space<vmem>>, %arg11: memref<2x32x32xbf16, #tpu.memory_space<vmem>>, %arg12: memref<2x16x32xbf16, #tpu.memory_space<vmem>>, %arg13: memref<2x1x32xf32, #tpu.memory_space<vmem>>, %arg14: memref<2x1x32xf32, #tpu.memory_space<vmem>>, %arg15: memref<2x1x32xf32, #tpu.memory_space<vmem>>, %arg16: memref<2x32x64xbf16, #tpu.memory_space<vmem>>, %arg17: memref<2x1x64xf32, #tpu.memory_space<vmem>>, %arg18: memref<2x64x32xbf16, #tpu.memory_space<vmem>>, %arg19: memref<2x1x32xf32, #tpu.memory_space<vmem>>, %arg20: memref<2x1x32xf32, #tpu.memory_space<vmem>>, %arg21: memref<2x1x32xf32, #tpu.memory_space<vmem>>, %arg22: memref<32x32xbf16, #tpu.memory_space<vmem>>, %arg23: memref<1x32xf32, #tpu.memory_space<vmem>>, %arg24: memref<32x128xbf16, #tpu.memory_space<vmem>>, %arg25: memref<1x128xf32, #tpu.memory_space<vmem>>, %arg26: memref<2x128xf32, #tpu.memory_space<vmem>>) attributes {dimension_semantics = [], scalar_prefetch = 0 : i64, scratch_operands = 0 : i64, tpu.core_type = #tpu.core_type<tc>} {
    %c0 = arith.constant 0 : index
    %c0_0 = arith.constant 0 : index
    %0 = vector.load %arg2[%c0, %c0_0] : memref<16x16xf32, #tpu.memory_space<vmem>>, vector<16x16xf32>
    %c0_1 = arith.constant 0 : index
    %c0_2 = arith.constant 0 : index
    %1 = vector.load %arg1[%c0_1, %c0_2] : memref<16x16xf32, #tpu.memory_space<vmem>>, vector<16x16xf32>
    %2 = arith.truncf %1 : vector<16x16xf32> to vector<16x16xbf16>
    %c0_3 = arith.constant 0 : index
    %c0_4 = arith.constant 0 : index
    %3 = vector.load %arg0[%c0_3, %c0_4] : memref<16x32xf32, #tpu.memory_space<vmem>>, vector<16x32xf32>
    %c0_5 = arith.constant 0 : index
    %c0_6 = arith.constant 0 : index
    %4 = vector.load %arg3[%c0_5, %c0_6] : memref<1x32xf32, #tpu.memory_space<vmem>>, vector<1x32xf32>
    %c0_7 = arith.constant 0 : index
    %c0_8 = arith.constant 0 : index
    %5 = vector.load %arg4[%c0_7, %c0_8] : memref<1x32xf32, #tpu.memory_space<vmem>>, vector<1x32xf32>
    %cst = arith.constant dense<0.000000e+00> : vector<16xf32>
    %6 = vector.multi_reduction <add>, %3, %cst [1] : vector<16x32xf32> to vector<16xf32>
    %7 = vector.shape_cast %6 : vector<16xf32> to vector<16x1xf32>
    %cst_9 = arith.constant 3.200000e+01 : f32
    %8 = vector.broadcast %cst_9 : f32 to vector<16x1xf32>
    %9 = arith.divf %7, %8 : vector<16x1xf32>
    %10 = vector.broadcast %9 : vector<16x1xf32> to vector<16x32xf32>
    %11 = arith.subf %3, %10 : vector<16x32xf32>
    %12 = arith.mulf %11, %11 : vector<16x32xf32>
    %cst_10 = arith.constant dense<0.000000e+00> : vector<16xf32>
    %13 = vector.multi_reduction <add>, %12, %cst_10 [1] : vector<16x32xf32> to vector<16xf32>
    %14 = vector.shape_cast %13 : vector<16xf32> to vector<16x1xf32>
    %cst_11 = arith.constant 3.200000e+01 : f32
    %15 = vector.broadcast %cst_11 : f32 to vector<16x1xf32>
    %16 = arith.divf %14, %15 : vector<16x1xf32>
    %17 = vector.broadcast %9 : vector<16x1xf32> to vector<16x32xf32>
    %18 = arith.subf %3, %17 : vector<16x32xf32>
    %cst_12 = arith.constant 9.99999996E-13 : f32
    %19 = vector.broadcast %cst_12 : f32 to vector<16x1xf32>
    %20 = arith.addf %16, %19 : vector<16x1xf32>
    %21 = math.rsqrt %20 : vector<16x1xf32>
    %22 = vector.broadcast %21 : vector<16x1xf32> to vector<16x32xf32>
    %23 = arith.mulf %18, %22 : vector<16x32xf32>
    %24 = vector.broadcast %4 : vector<1x32xf32> to vector<16x32xf32>
    %25 = arith.mulf %23, %24 : vector<16x32xf32>
    %26 = vector.broadcast %5 : vector<1x32xf32> to vector<16x32xf32>
    %27 = arith.addf %25, %26 : vector<16x32xf32>
    %c0_13 = arith.constant 0 : index
    %c0_14 = arith.constant 0 : index
    %c0_15 = arith.constant 0 : index
    %28 = vector.load %arg5[%c0_13, %c0_14, %c0_15] : memref<2x32x96xbf16, #tpu.memory_space<vmem>>, vector<1x32x96xbf16>
    %29 = vector.shape_cast %28 : vector<1x32x96xbf16> to vector<32x96xbf16>
    %30 = arith.truncf %27 : vector<16x32xf32> to vector<16x32xbf16>
    %cst_16 = arith.constant dense<0.000000e+00> : vector<16x96xf32>
    %31 = tpu.matmul %30, %29, %cst_16 {dimension_numbers = #tpu.dot_dimension_numbers<[1], [0], [0], [1], [0, 0, 1, 1], [], []>} : vector<16x32xbf16>, vector<32x96xbf16>, vector<16x96xf32> -> vector<16x96xf32>
    %c0_17 = arith.constant 0 : index
    %c0_18 = arith.constant 0 : index
    %c0_19 = arith.constant 0 : index
    %32 = vector.load %arg6[%c0_17, %c0_18, %c0_19] : memref<2x1x96xf32, #tpu.memory_space<vmem>>, vector<1x1x96xf32>
    %33 = vector.shape_cast %32 : vector<1x1x96xf32> to vector<1x96xf32>
    %34 = vector.broadcast %33 : vector<1x96xf32> to vector<16x96xf32>
    %35 = arith.addf %31, %34 : vector<16x96xf32>
    %c0_20 = arith.constant 0 : index
    %c0_21 = arith.constant 0 : index
    %c0_22 = arith.constant 0 : index
    %36 = vector.load %arg7[%c0_20, %c0_21, %c0_22] : memref<2x32x32xbf16, #tpu.memory_space<vmem>>, vector<1x32x32xbf16>
    %37 = vector.shape_cast %36 : vector<1x32x32xbf16> to vector<32x32xbf16>
    %38 = vector.extract_strided_slice %35 {offsets = [0, 0], sizes = [16, 8], strides = [1, 1]} : vector<16x96xf32> to vector<16x8xf32>
    %39 = vector.extract_strided_slice %35 {offsets = [0, 32], sizes = [16, 8], strides = [1, 1]} : vector<16x96xf32> to vector<16x8xf32>
    %40 = vector.extract_strided_slice %35 {offsets = [0, 64], sizes = [16, 8], strides = [1, 1]} : vector<16x96xf32> to vector<16x8xf32>
    %41 = tpu.transpose %39, [1, 0] : vector<16x8xf32> -> vector<8x16xf32>
    %42 = arith.truncf %38 : vector<16x8xf32> to vector<16x8xbf16>
    %43 = arith.truncf %41 : vector<8x16xf32> to vector<8x16xbf16>
    %cst_23 = arith.constant dense<0.000000e+00> : vector<16x16xf32>
    %44 = tpu.matmul %42, %43, %cst_23 {dimension_numbers = #tpu.dot_dimension_numbers<[1], [0], [0], [1], [0, 0, 1, 1], [], []>} : vector<16x8xbf16>, vector<8x16xbf16>, vector<16x16xf32> -> vector<16x16xf32>
    %cst_24 = arith.constant 0.353553385 : f32
    %45 = vector.broadcast %cst_24 : f32 to vector<16x16xf32>
    %46 = arith.mulf %44, %45 : vector<16x16xf32>
    %47 = arith.addf %46, %0 : vector<16x16xf32>
    %cst_25 = arith.constant dense<0xFF800000> : vector<16xf32>
    %48 = vector.multi_reduction <maximumf>, %47, %cst_25 [1] : vector<16x16xf32> to vector<16xf32>
    %49 = vector.shape_cast %48 : vector<16xf32> to vector<16x1xf32>
    %50 = vector.broadcast %49 : vector<16x1xf32> to vector<16x16xf32>
    %51 = arith.subf %47, %50 : vector<16x16xf32>
    %52 = math.exp %51 : vector<16x16xf32>
    %cst_26 = arith.constant dense<0.000000e+00> : vector<16xf32>
    %53 = vector.multi_reduction <add>, %52, %cst_26 [1] : vector<16x16xf32> to vector<16xf32>
    %54 = vector.shape_cast %53 : vector<16xf32> to vector<16x1xf32>
    %55 = tpu.reciprocal %54 {approx = true} : vector<16x1xf32> -> vector<16x1xf32>
    %56 = vector.broadcast %55 : vector<16x1xf32> to vector<16x16xf32>
    %57 = arith.mulf %52, %56 : vector<16x16xf32>
    %58 = arith.truncf %57 : vector<16x16xf32> to vector<16x16xbf16>
    %59 = arith.truncf %40 : vector<16x8xf32> to vector<16x8xbf16>
    %cst_27 = arith.constant dense<0.000000e+00> : vector<16x8xf32>
    %60 = tpu.matmul %58, %59, %cst_27 {dimension_numbers = #tpu.dot_dimension_numbers<[1], [0], [0], [1], [0, 0, 1, 1], [], []>} : vector<16x16xbf16>, vector<16x8xbf16>, vector<16x8xf32> -> vector<16x8xf32>
    %61 = vector.extract_strided_slice %37 {offsets = [0, 0], sizes = [8, 32], strides = [1, 1]} : vector<32x32xbf16> to vector<8x32xbf16>
    %62 = arith.truncf %60 : vector<16x8xf32> to vector<16x8xbf16>
    %cst_28 = arith.constant dense<0.000000e+00> : vector<16x32xf32>
    %63 = tpu.matmul %62, %61, %cst_28 {dimension_numbers = #tpu.dot_dimension_numbers<[1], [0], [0], [1], [0, 0, 1, 1], [], []>} : vector<16x8xbf16>, vector<8x32xbf16>, vector<16x32xf32> -> vector<16x32xf32>
    %64 = vector.extract_strided_slice %35 {offsets = [0, 8], sizes = [16, 8], strides = [1, 1]} : vector<16x96xf32> to vector<16x8xf32>
    %65 = vector.extract_strided_slice %35 {offsets = [0, 40], sizes = [16, 8], strides = [1, 1]} : vector<16x96xf32> to vector<16x8xf32>
    %66 = vector.extract_strided_slice %35 {offsets = [0, 72], sizes = [16, 8], strides = [1, 1]} : vector<16x96xf32> to vector<16x8xf32>
    %67 = tpu.transpose %65, [1, 0] : vector<16x8xf32> -> vector<8x16xf32>
    %68 = arith.truncf %64 : vector<16x8xf32> to vector<16x8xbf16>
    %69 = arith.truncf %67 : vector<8x16xf32> to vector<8x16xbf16>
    %cst_29 = arith.constant dense<0.000000e+00> : vector<16x16xf32>
    %70 = tpu.matmul %68, %69, %cst_29 {dimension_numbers = #tpu.dot_dimension_numbers<[1], [0], [0], [1], [0, 0, 1, 1], [], []>} : vector<16x8xbf16>, vector<8x16xbf16>, vector<16x16xf32> -> vector<16x16xf32>
    %cst_30 = arith.constant 0.353553385 : f32
    %71 = vector.broadcast %cst_30 : f32 to vector<16x16xf32>
    %72 = arith.mulf %70, %71 : vector<16x16xf32>
    %73 = arith.addf %72, %0 : vector<16x16xf32>
    %cst_31 = arith.constant dense<0xFF800000> : vector<16xf32>
    %74 = vector.multi_reduction <maximumf>, %73, %cst_31 [1] : vector<16x16xf32> to vector<16xf32>
    %75 = vector.shape_cast %74 : vector<16xf32> to vector<16x1xf32>
    %76 = vector.broadcast %75 : vector<16x1xf32> to vector<16x16xf32>
    %77 = arith.subf %73, %76 : vector<16x16xf32>
    %78 = math.exp %77 : vector<16x16xf32>
    %cst_32 = arith.constant dense<0.000000e+00> : vector<16xf32>
    %79 = vector.multi_reduction <add>, %78, %cst_32 [1] : vector<16x16xf32> to vector<16xf32>
    %80 = vector.shape_cast %79 : vector<16xf32> to vector<16x1xf32>
    %81 = tpu.reciprocal %80 {approx = true} : vector<16x1xf32> -> vector<16x1xf32>
    %82 = vector.broadcast %81 : vector<16x1xf32> to vector<16x16xf32>
    %83 = arith.mulf %78, %82 : vector<16x16xf32>
    %84 = arith.truncf %83 : vector<16x16xf32> to vector<16x16xbf16>
    %85 = arith.truncf %66 : vector<16x8xf32> to vector<16x8xbf16>
    %cst_33 = arith.constant dense<0.000000e+00> : vector<16x8xf32>
    %86 = tpu.matmul %84, %85, %cst_33 {dimension_numbers = #tpu.dot_dimension_numbers<[1], [0], [0], [1], [0, 0, 1, 1], [], []>} : vector<16x16xbf16>, vector<16x8xbf16>, vector<16x8xf32> -> vector<16x8xf32>
    %87 = vector.extract_strided_slice %37 {offsets = [8, 0], sizes = [8, 32], strides = [1, 1]} : vector<32x32xbf16> to vector<8x32xbf16>
    %88 = arith.truncf %86 : vector<16x8xf32> to vector<16x8xbf16>
    %cst_34 = arith.constant dense<0.000000e+00> : vector<16x32xf32>
    %89 = tpu.matmul %88, %87, %cst_34 {dimension_numbers = #tpu.dot_dimension_numbers<[1], [0], [0], [1], [0, 0, 1, 1], [], []>} : vector<16x8xbf16>, vector<8x32xbf16>, vector<16x32xf32> -> vector<16x32xf32>
    %90 = arith.addf %63, %89 : vector<16x32xf32>
    %91 = vector.extract_strided_slice %35 {offsets = [0, 16], sizes = [16, 8], strides = [1, 1]} : vector<16x96xf32> to vector<16x8xf32>
    %92 = vector.extract_strided_slice %35 {offsets = [0, 48], sizes = [16, 8], strides = [1, 1]} : vector<16x96xf32> to vector<16x8xf32>
    %93 = vector.extract_strided_slice %35 {offsets = [0, 80], sizes = [16, 8], strides = [1, 1]} : vector<16x96xf32> to vector<16x8xf32>
    %94 = tpu.transpose %92, [1, 0] : vector<16x8xf32> -> vector<8x16xf32>
    %95 = arith.truncf %91 : vector<16x8xf32> to vector<16x8xbf16>
    %96 = arith.truncf %94 : vector<8x16xf32> to vector<8x16xbf16>
    %cst_35 = arith.constant dense<0.000000e+00> : vector<16x16xf32>
    %97 = tpu.matmul %95, %96, %cst_35 {dimension_numbers = #tpu.dot_dimension_numbers<[1], [0], [0], [1], [0, 0, 1, 1], [], []>} : vector<16x8xbf16>, vector<8x16xbf16>, vector<16x16xf32> -> vector<16x16xf32>
    %cst_36 = arith.constant 0.353553385 : f32
    %98 = vector.broadcast %cst_36 : f32 to vector<16x16xf32>
    %99 = arith.mulf %97, %98 : vector<16x16xf32>
    %100 = arith.addf %99, %0 : vector<16x16xf32>
    %cst_37 = arith.constant dense<0xFF800000> : vector<16xf32>
    %101 = vector.multi_reduction <maximumf>, %100, %cst_37 [1] : vector<16x16xf32> to vector<16xf32>
    %102 = vector.shape_cast %101 : vector<16xf32> to vector<16x1xf32>
    %103 = vector.broadcast %102 : vector<16x1xf32> to vector<16x16xf32>
    %104 = arith.subf %100, %103 : vector<16x16xf32>
    %105 = math.exp %104 : vector<16x16xf32>
    %cst_38 = arith.constant dense<0.000000e+00> : vector<16xf32>
    %106 = vector.multi_reduction <add>, %105, %cst_38 [1] : vector<16x16xf32> to vector<16xf32>
    %107 = vector.shape_cast %106 : vector<16xf32> to vector<16x1xf32>
    %108 = tpu.reciprocal %107 {approx = true} : vector<16x1xf32> -> vector<16x1xf32>
    %109 = vector.broadcast %108 : vector<16x1xf32> to vector<16x16xf32>
    %110 = arith.mulf %105, %109 : vector<16x16xf32>
    %111 = arith.truncf %110 : vector<16x16xf32> to vector<16x16xbf16>
    %112 = arith.truncf %93 : vector<16x8xf32> to vector<16x8xbf16>
    %cst_39 = arith.constant dense<0.000000e+00> : vector<16x8xf32>
    %113 = tpu.matmul %111, %112, %cst_39 {dimension_numbers = #tpu.dot_dimension_numbers<[1], [0], [0], [1], [0, 0, 1, 1], [], []>} : vector<16x16xbf16>, vector<16x8xbf16>, vector<16x8xf32> -> vector<16x8xf32>
    %114 = vector.extract_strided_slice %37 {offsets = [16, 0], sizes = [8, 32], strides = [1, 1]} : vector<32x32xbf16> to vector<8x32xbf16>
    %115 = arith.truncf %113 : vector<16x8xf32> to vector<16x8xbf16>
    %cst_40 = arith.constant dense<0.000000e+00> : vector<16x32xf32>
    %116 = tpu.matmul %115, %114, %cst_40 {dimension_numbers = #tpu.dot_dimension_numbers<[1], [0], [0], [1], [0, 0, 1, 1], [], []>} : vector<16x8xbf16>, vector<8x32xbf16>, vector<16x32xf32> -> vector<16x32xf32>
    %117 = arith.addf %90, %116 : vector<16x32xf32>
    %118 = vector.extract_strided_slice %35 {offsets = [0, 24], sizes = [16, 8], strides = [1, 1]} : vector<16x96xf32> to vector<16x8xf32>
    %119 = vector.extract_strided_slice %35 {offsets = [0, 56], sizes = [16, 8], strides = [1, 1]} : vector<16x96xf32> to vector<16x8xf32>
    %120 = vector.extract_strided_slice %35 {offsets = [0, 88], sizes = [16, 8], strides = [1, 1]} : vector<16x96xf32> to vector<16x8xf32>
    %121 = tpu.transpose %119, [1, 0] : vector<16x8xf32> -> vector<8x16xf32>
    %122 = arith.truncf %118 : vector<16x8xf32> to vector<16x8xbf16>
    %123 = arith.truncf %121 : vector<8x16xf32> to vector<8x16xbf16>
    %cst_41 = arith.constant dense<0.000000e+00> : vector<16x16xf32>
    %124 = tpu.matmul %122, %123, %cst_41 {dimension_numbers = #tpu.dot_dimension_numbers<[1], [0], [0], [1], [0, 0, 1, 1], [], []>} : vector<16x8xbf16>, vector<8x16xbf16>, vector<16x16xf32> -> vector<16x16xf32>
    %cst_42 = arith.constant 0.353553385 : f32
    %125 = vector.broadcast %cst_42 : f32 to vector<16x16xf32>
    %126 = arith.mulf %124, %125 : vector<16x16xf32>
    %127 = arith.addf %126, %0 : vector<16x16xf32>
    %cst_43 = arith.constant dense<0xFF800000> : vector<16xf32>
    %128 = vector.multi_reduction <maximumf>, %127, %cst_43 [1] : vector<16x16xf32> to vector<16xf32>
    %129 = vector.shape_cast %128 : vector<16xf32> to vector<16x1xf32>
    %130 = vector.broadcast %129 : vector<16x1xf32> to vector<16x16xf32>
    %131 = arith.subf %127, %130 : vector<16x16xf32>
    %132 = math.exp %131 : vector<16x16xf32>
    %cst_44 = arith.constant dense<0.000000e+00> : vector<16xf32>
    %133 = vector.multi_reduction <add>, %132, %cst_44 [1] : vector<16x16xf32> to vector<16xf32>
    %134 = vector.shape_cast %133 : vector<16xf32> to vector<16x1xf32>
    %135 = tpu.reciprocal %134 {approx = true} : vector<16x1xf32> -> vector<16x1xf32>
    %136 = vector.broadcast %135 : vector<16x1xf32> to vector<16x16xf32>
    %137 = arith.mulf %132, %136 : vector<16x16xf32>
    %138 = arith.truncf %137 : vector<16x16xf32> to vector<16x16xbf16>
    %139 = arith.truncf %120 : vector<16x8xf32> to vector<16x8xbf16>
    %cst_45 = arith.constant dense<0.000000e+00> : vector<16x8xf32>
    %140 = tpu.matmul %138, %139, %cst_45 {dimension_numbers = #tpu.dot_dimension_numbers<[1], [0], [0], [1], [0, 0, 1, 1], [], []>} : vector<16x16xbf16>, vector<16x8xbf16>, vector<16x8xf32> -> vector<16x8xf32>
    %141 = vector.extract_strided_slice %37 {offsets = [24, 0], sizes = [8, 32], strides = [1, 1]} : vector<32x32xbf16> to vector<8x32xbf16>
    %142 = arith.truncf %140 : vector<16x8xf32> to vector<16x8xbf16>
    %cst_46 = arith.constant dense<0.000000e+00> : vector<16x32xf32>
    %143 = tpu.matmul %142, %141, %cst_46 {dimension_numbers = #tpu.dot_dimension_numbers<[1], [0], [0], [1], [0, 0, 1, 1], [], []>} : vector<16x8xbf16>, vector<8x32xbf16>, vector<16x32xf32> -> vector<16x32xf32>
    %144 = arith.addf %117, %143 : vector<16x32xf32>
    %c0_47 = arith.constant 0 : index
    %c0_48 = arith.constant 0 : index
    %c0_49 = arith.constant 0 : index
    %145 = vector.load %arg8[%c0_47, %c0_48, %c0_49] : memref<2x1x32xf32, #tpu.memory_space<vmem>>, vector<1x1x32xf32>
    %146 = vector.shape_cast %145 : vector<1x1x32xf32> to vector<1x32xf32>
    %147 = vector.broadcast %146 : vector<1x32xf32> to vector<16x32xf32>
    %148 = arith.addf %144, %147 : vector<16x32xf32>
    %149 = arith.addf %148, %27 : vector<16x32xf32>
    %c0_50 = arith.constant 0 : index
    %c0_51 = arith.constant 0 : index
    %c0_52 = arith.constant 0 : index
    %150 = vector.load %arg9[%c0_50, %c0_51, %c0_52] : memref<2x1x32xf32, #tpu.memory_space<vmem>>, vector<1x1x32xf32>
    %151 = vector.shape_cast %150 : vector<1x1x32xf32> to vector<1x32xf32>
    %c0_53 = arith.constant 0 : index
    %c0_54 = arith.constant 0 : index
    %c0_55 = arith.constant 0 : index
    %152 = vector.load %arg10[%c0_53, %c0_54, %c0_55] : memref<2x1x32xf32, #tpu.memory_space<vmem>>, vector<1x1x32xf32>
    %153 = vector.shape_cast %152 : vector<1x1x32xf32> to vector<1x32xf32>
    %cst_56 = arith.constant dense<0.000000e+00> : vector<16xf32>
    %154 = vector.multi_reduction <add>, %149, %cst_56 [1] : vector<16x32xf32> to vector<16xf32>
    %155 = vector.shape_cast %154 : vector<16xf32> to vector<16x1xf32>
    %cst_57 = arith.constant 3.200000e+01 : f32
    %156 = vector.broadcast %cst_57 : f32 to vector<16x1xf32>
    %157 = arith.divf %155, %156 : vector<16x1xf32>
    %158 = vector.broadcast %157 : vector<16x1xf32> to vector<16x32xf32>
    %159 = arith.subf %149, %158 : vector<16x32xf32>
    %160 = arith.mulf %159, %159 : vector<16x32xf32>
    %cst_58 = arith.constant dense<0.000000e+00> : vector<16xf32>
    %161 = vector.multi_reduction <add>, %160, %cst_58 [1] : vector<16x32xf32> to vector<16xf32>
    %162 = vector.shape_cast %161 : vector<16xf32> to vector<16x1xf32>
    %cst_59 = arith.constant 3.200000e+01 : f32
    %163 = vector.broadcast %cst_59 : f32 to vector<16x1xf32>
    %164 = arith.divf %162, %163 : vector<16x1xf32>
    %165 = vector.broadcast %157 : vector<16x1xf32> to vector<16x32xf32>
    %166 = arith.subf %149, %165 : vector<16x32xf32>
    %cst_60 = arith.constant 9.99999996E-13 : f32
    %167 = vector.broadcast %cst_60 : f32 to vector<16x1xf32>
    %168 = arith.addf %164, %167 : vector<16x1xf32>
    %169 = math.rsqrt %168 : vector<16x1xf32>
    %170 = vector.broadcast %169 : vector<16x1xf32> to vector<16x32xf32>
    %171 = arith.mulf %166, %170 : vector<16x32xf32>
    %172 = vector.broadcast %151 : vector<1x32xf32> to vector<16x32xf32>
    %173 = arith.mulf %171, %172 : vector<16x32xf32>
    %174 = vector.broadcast %153 : vector<1x32xf32> to vector<16x32xf32>
    %175 = arith.addf %173, %174 : vector<16x32xf32>
    %c0_61 = arith.constant 0 : index
    %c0_62 = arith.constant 0 : index
    %c0_63 = arith.constant 0 : index
    %176 = vector.load %arg11[%c0_61, %c0_62, %c0_63] : memref<2x32x32xbf16, #tpu.memory_space<vmem>>, vector<1x32x32xbf16>
    %177 = vector.shape_cast %176 : vector<1x32x32xbf16> to vector<32x32xbf16>
    %178 = arith.truncf %175 : vector<16x32xf32> to vector<16x32xbf16>
    %cst_64 = arith.constant dense<0.000000e+00> : vector<16x32xf32>
    %179 = tpu.matmul %178, %177, %cst_64 {dimension_numbers = #tpu.dot_dimension_numbers<[1], [0], [0], [1], [0, 0, 1, 1], [], []>} : vector<16x32xbf16>, vector<32x32xbf16>, vector<16x32xf32> -> vector<16x32xf32>
    %c0_65 = arith.constant 0 : index
    %c0_66 = arith.constant 0 : index
    %c0_67 = arith.constant 0 : index
    %180 = vector.load %arg12[%c0_65, %c0_66, %c0_67] : memref<2x16x32xbf16, #tpu.memory_space<vmem>>, vector<1x16x32xbf16>
    %181 = vector.shape_cast %180 : vector<1x16x32xbf16> to vector<16x32xbf16>
    %cst_68 = arith.constant dense<0.000000e+00> : vector<16x32xf32>
    %182 = tpu.matmul %2, %181, %cst_68 {dimension_numbers = #tpu.dot_dimension_numbers<[1], [0], [0], [1], [0, 0, 1, 1], [], []>} : vector<16x16xbf16>, vector<16x32xbf16>, vector<16x32xf32> -> vector<16x32xf32>
    %183 = arith.addf %179, %182 : vector<16x32xf32>
    %c0_69 = arith.constant 0 : index
    %c0_70 = arith.constant 0 : index
    %c0_71 = arith.constant 0 : index
    %184 = vector.load %arg13[%c0_69, %c0_70, %c0_71] : memref<2x1x32xf32, #tpu.memory_space<vmem>>, vector<1x1x32xf32>
    %185 = vector.shape_cast %184 : vector<1x1x32xf32> to vector<1x32xf32>
    %186 = vector.broadcast %185 : vector<1x32xf32> to vector<16x32xf32>
    %187 = arith.addf %183, %186 : vector<16x32xf32>
    %188 = arith.mulf %187, %187 : vector<16x32xf32>
    %189 = arith.mulf %187, %188 : vector<16x32xf32>
    %cst_72 = arith.constant 4.471500e-02 : f32
    %190 = vector.broadcast %cst_72 : f32 to vector<16x32xf32>
    %191 = arith.mulf %190, %189 : vector<16x32xf32>
    %192 = arith.addf %187, %191 : vector<16x32xf32>
    %cst_73 = arith.constant 0.797884583 : f32
    %193 = vector.broadcast %cst_73 : f32 to vector<16x32xf32>
    %194 = arith.mulf %193, %192 : vector<16x32xf32>
    %195 = math.tanh %194 : vector<16x32xf32>
    %cst_74 = arith.constant 1.000000e+00 : f32
    %196 = vector.broadcast %cst_74 : f32 to vector<16x32xf32>
    %197 = arith.addf %196, %195 : vector<16x32xf32>
    %cst_75 = arith.constant 5.000000e-01 : f32
    %198 = vector.broadcast %cst_75 : f32 to vector<16x32xf32>
    %199 = arith.mulf %198, %197 : vector<16x32xf32>
    %200 = arith.mulf %187, %199 : vector<16x32xf32>
    %201 = arith.addf %200, %175 : vector<16x32xf32>
    %c0_76 = arith.constant 0 : index
    %c0_77 = arith.constant 0 : index
    %c0_78 = arith.constant 0 : index
    %202 = vector.load %arg14[%c0_76, %c0_77, %c0_78] : memref<2x1x32xf32, #tpu.memory_space<vmem>>, vector<1x1x32xf32>
    %203 = vector.shape_cast %202 : vector<1x1x32xf32> to vector<1x32xf32>
    %c0_79 = arith.constant 0 : index
    %c0_80 = arith.constant 0 : index
    %c0_81 = arith.constant 0 : index
    %204 = vector.load %arg15[%c0_79, %c0_80, %c0_81] : memref<2x1x32xf32, #tpu.memory_space<vmem>>, vector<1x1x32xf32>
    %205 = vector.shape_cast %204 : vector<1x1x32xf32> to vector<1x32xf32>
    %cst_82 = arith.constant dense<0.000000e+00> : vector<16xf32>
    %206 = vector.multi_reduction <add>, %201, %cst_82 [1] : vector<16x32xf32> to vector<16xf32>
    %207 = vector.shape_cast %206 : vector<16xf32> to vector<16x1xf32>
    %cst_83 = arith.constant 3.200000e+01 : f32
    %208 = vector.broadcast %cst_83 : f32 to vector<16x1xf32>
    %209 = arith.divf %207, %208 : vector<16x1xf32>
    %210 = vector.broadcast %209 : vector<16x1xf32> to vector<16x32xf32>
    %211 = arith.subf %201, %210 : vector<16x32xf32>
    %212 = arith.mulf %211, %211 : vector<16x32xf32>
    %cst_84 = arith.constant dense<0.000000e+00> : vector<16xf32>
    %213 = vector.multi_reduction <add>, %212, %cst_84 [1] : vector<16x32xf32> to vector<16xf32>
    %214 = vector.shape_cast %213 : vector<16xf32> to vector<16x1xf32>
    %cst_85 = arith.constant 3.200000e+01 : f32
    %215 = vector.broadcast %cst_85 : f32 to vector<16x1xf32>
    %216 = arith.divf %214, %215 : vector<16x1xf32>
    %217 = vector.broadcast %209 : vector<16x1xf32> to vector<16x32xf32>
    %218 = arith.subf %201, %217 : vector<16x32xf32>
    %cst_86 = arith.constant 9.99999996E-13 : f32
    %219 = vector.broadcast %cst_86 : f32 to vector<16x1xf32>
    %220 = arith.addf %216, %219 : vector<16x1xf32>
    %221 = math.rsqrt %220 : vector<16x1xf32>
    %222 = vector.broadcast %221 : vector<16x1xf32> to vector<16x32xf32>
    %223 = arith.mulf %218, %222 : vector<16x32xf32>
    %224 = vector.broadcast %203 : vector<1x32xf32> to vector<16x32xf32>
    %225 = arith.mulf %223, %224 : vector<16x32xf32>
    %226 = vector.broadcast %205 : vector<1x32xf32> to vector<16x32xf32>
    %227 = arith.addf %225, %226 : vector<16x32xf32>
    %c0_87 = arith.constant 0 : index
    %c0_88 = arith.constant 0 : index
    %c0_89 = arith.constant 0 : index
    %228 = vector.load %arg16[%c0_87, %c0_88, %c0_89] : memref<2x32x64xbf16, #tpu.memory_space<vmem>>, vector<1x32x64xbf16>
    %229 = vector.shape_cast %228 : vector<1x32x64xbf16> to vector<32x64xbf16>
    %230 = arith.truncf %227 : vector<16x32xf32> to vector<16x32xbf16>
    %cst_90 = arith.constant dense<0.000000e+00> : vector<16x64xf32>
    %231 = tpu.matmul %230, %229, %cst_90 {dimension_numbers = #tpu.dot_dimension_numbers<[1], [0], [0], [1], [0, 0, 1, 1], [], []>} : vector<16x32xbf16>, vector<32x64xbf16>, vector<16x64xf32> -> vector<16x64xf32>
    %c0_91 = arith.constant 0 : index
    %c0_92 = arith.constant 0 : index
    %c0_93 = arith.constant 0 : index
    %232 = vector.load %arg17[%c0_91, %c0_92, %c0_93] : memref<2x1x64xf32, #tpu.memory_space<vmem>>, vector<1x1x64xf32>
    %233 = vector.shape_cast %232 : vector<1x1x64xf32> to vector<1x64xf32>
    %234 = vector.broadcast %233 : vector<1x64xf32> to vector<16x64xf32>
    %235 = arith.addf %231, %234 : vector<16x64xf32>
    %236 = arith.mulf %235, %235 : vector<16x64xf32>
    %237 = arith.mulf %235, %236 : vector<16x64xf32>
    %cst_94 = arith.constant 4.471500e-02 : f32
    %238 = vector.broadcast %cst_94 : f32 to vector<16x64xf32>
    %239 = arith.mulf %238, %237 : vector<16x64xf32>
    %240 = arith.addf %235, %239 : vector<16x64xf32>
    %cst_95 = arith.constant 0.797884583 : f32
    %241 = vector.broadcast %cst_95 : f32 to vector<16x64xf32>
    %242 = arith.mulf %241, %240 : vector<16x64xf32>
    %243 = math.tanh %242 : vector<16x64xf32>
    %cst_96 = arith.constant 1.000000e+00 : f32
    %244 = vector.broadcast %cst_96 : f32 to vector<16x64xf32>
    %245 = arith.addf %244, %243 : vector<16x64xf32>
    %cst_97 = arith.constant 5.000000e-01 : f32
    %246 = vector.broadcast %cst_97 : f32 to vector<16x64xf32>
    %247 = arith.mulf %246, %245 : vector<16x64xf32>
    %248 = arith.mulf %235, %247 : vector<16x64xf32>
    %c0_98 = arith.constant 0 : index
    %c0_99 = arith.constant 0 : index
    %c0_100 = arith.constant 0 : index
    %249 = vector.load %arg18[%c0_98, %c0_99, %c0_100] : memref<2x64x32xbf16, #tpu.memory_space<vmem>>, vector<1x64x32xbf16>
    %250 = vector.shape_cast %249 : vector<1x64x32xbf16> to vector<64x32xbf16>
    %251 = arith.truncf %248 : vector<16x64xf32> to vector<16x64xbf16>
    %cst_101 = arith.constant dense<0.000000e+00> : vector<16x32xf32>
    %252 = tpu.matmul %251, %250, %cst_101 {dimension_numbers = #tpu.dot_dimension_numbers<[1], [0], [0], [1], [0, 0, 1, 1], [], []>} : vector<16x64xbf16>, vector<64x32xbf16>, vector<16x32xf32> -> vector<16x32xf32>
    %c0_102 = arith.constant 0 : index
    %c0_103 = arith.constant 0 : index
    %c0_104 = arith.constant 0 : index
    %253 = vector.load %arg19[%c0_102, %c0_103, %c0_104] : memref<2x1x32xf32, #tpu.memory_space<vmem>>, vector<1x1x32xf32>
    %254 = vector.shape_cast %253 : vector<1x1x32xf32> to vector<1x32xf32>
    %255 = vector.broadcast %254 : vector<1x32xf32> to vector<16x32xf32>
    %256 = arith.addf %252, %255 : vector<16x32xf32>
    %257 = arith.addf %256, %227 : vector<16x32xf32>
    %c0_105 = arith.constant 0 : index
    %c0_106 = arith.constant 0 : index
    %c0_107 = arith.constant 0 : index
    %258 = vector.load %arg20[%c0_105, %c0_106, %c0_107] : memref<2x1x32xf32, #tpu.memory_space<vmem>>, vector<1x1x32xf32>
    %259 = vector.shape_cast %258 : vector<1x1x32xf32> to vector<1x32xf32>
    %c0_108 = arith.constant 0 : index
    %c0_109 = arith.constant 0 : index
    %c0_110 = arith.constant 0 : index
    %260 = vector.load %arg21[%c0_108, %c0_109, %c0_110] : memref<2x1x32xf32, #tpu.memory_space<vmem>>, vector<1x1x32xf32>
    %261 = vector.shape_cast %260 : vector<1x1x32xf32> to vector<1x32xf32>
    %cst_111 = arith.constant dense<0.000000e+00> : vector<16xf32>
    %262 = vector.multi_reduction <add>, %257, %cst_111 [1] : vector<16x32xf32> to vector<16xf32>
    %263 = vector.shape_cast %262 : vector<16xf32> to vector<16x1xf32>
    %cst_112 = arith.constant 3.200000e+01 : f32
    %264 = vector.broadcast %cst_112 : f32 to vector<16x1xf32>
    %265 = arith.divf %263, %264 : vector<16x1xf32>
    %266 = vector.broadcast %265 : vector<16x1xf32> to vector<16x32xf32>
    %267 = arith.subf %257, %266 : vector<16x32xf32>
    %268 = arith.mulf %267, %267 : vector<16x32xf32>
    %cst_113 = arith.constant dense<0.000000e+00> : vector<16xf32>
    %269 = vector.multi_reduction <add>, %268, %cst_113 [1] : vector<16x32xf32> to vector<16xf32>
    %270 = vector.shape_cast %269 : vector<16xf32> to vector<16x1xf32>
    %cst_114 = arith.constant 3.200000e+01 : f32
    %271 = vector.broadcast %cst_114 : f32 to vector<16x1xf32>
    %272 = arith.divf %270, %271 : vector<16x1xf32>
    %273 = vector.broadcast %265 : vector<16x1xf32> to vector<16x32xf32>
    %274 = arith.subf %257, %273 : vector<16x32xf32>
    %cst_115 = arith.constant 9.99999996E-13 : f32
    %275 = vector.broadcast %cst_115 : f32 to vector<16x1xf32>
    %276 = arith.addf %272, %275 : vector<16x1xf32>
    %277 = math.rsqrt %276 : vector<16x1xf32>
    %278 = vector.broadcast %277 : vector<16x1xf32> to vector<16x32xf32>
    %279 = arith.mulf %274, %278 : vector<16x32xf32>
    %280 = vector.broadcast %259 : vector<1x32xf32> to vector<16x32xf32>
    %281 = arith.mulf %279, %280 : vector<16x32xf32>
    %282 = vector.broadcast %261 : vector<1x32xf32> to vector<16x32xf32>
    %283 = arith.addf %281, %282 : vector<16x32xf32>
    %c1 = arith.constant 1 : index
    %c0_116 = arith.constant 0 : index
    %c0_117 = arith.constant 0 : index
    %284 = vector.load %arg5[%c1, %c0_116, %c0_117] : memref<2x32x96xbf16, #tpu.memory_space<vmem>>, vector<1x32x96xbf16>
    %285 = vector.shape_cast %284 : vector<1x32x96xbf16> to vector<32x96xbf16>
    %286 = arith.truncf %283 : vector<16x32xf32> to vector<16x32xbf16>
    %cst_118 = arith.constant dense<0.000000e+00> : vector<16x96xf32>
    %287 = tpu.matmul %286, %285, %cst_118 {dimension_numbers = #tpu.dot_dimension_numbers<[1], [0], [0], [1], [0, 0, 1, 1], [], []>} : vector<16x32xbf16>, vector<32x96xbf16>, vector<16x96xf32> -> vector<16x96xf32>
    %c1_119 = arith.constant 1 : index
    %c0_120 = arith.constant 0 : index
    %c0_121 = arith.constant 0 : index
    %288 = vector.load %arg6[%c1_119, %c0_120, %c0_121] : memref<2x1x96xf32, #tpu.memory_space<vmem>>, vector<1x1x96xf32>
    %289 = vector.shape_cast %288 : vector<1x1x96xf32> to vector<1x96xf32>
    %290 = vector.broadcast %289 : vector<1x96xf32> to vector<16x96xf32>
    %291 = arith.addf %287, %290 : vector<16x96xf32>
    %c1_122 = arith.constant 1 : index
    %c0_123 = arith.constant 0 : index
    %c0_124 = arith.constant 0 : index
    %292 = vector.load %arg7[%c1_122, %c0_123, %c0_124] : memref<2x32x32xbf16, #tpu.memory_space<vmem>>, vector<1x32x32xbf16>
    %293 = vector.shape_cast %292 : vector<1x32x32xbf16> to vector<32x32xbf16>
    %294 = vector.extract_strided_slice %291 {offsets = [0, 0], sizes = [16, 8], strides = [1, 1]} : vector<16x96xf32> to vector<16x8xf32>
    %295 = vector.extract_strided_slice %291 {offsets = [0, 32], sizes = [16, 8], strides = [1, 1]} : vector<16x96xf32> to vector<16x8xf32>
    %296 = vector.extract_strided_slice %291 {offsets = [0, 64], sizes = [16, 8], strides = [1, 1]} : vector<16x96xf32> to vector<16x8xf32>
    %297 = tpu.transpose %295, [1, 0] : vector<16x8xf32> -> vector<8x16xf32>
    %298 = arith.truncf %294 : vector<16x8xf32> to vector<16x8xbf16>
    %299 = arith.truncf %297 : vector<8x16xf32> to vector<8x16xbf16>
    %cst_125 = arith.constant dense<0.000000e+00> : vector<16x16xf32>
    %300 = tpu.matmul %298, %299, %cst_125 {dimension_numbers = #tpu.dot_dimension_numbers<[1], [0], [0], [1], [0, 0, 1, 1], [], []>} : vector<16x8xbf16>, vector<8x16xbf16>, vector<16x16xf32> -> vector<16x16xf32>
    %cst_126 = arith.constant 0.353553385 : f32
    %301 = vector.broadcast %cst_126 : f32 to vector<16x16xf32>
    %302 = arith.mulf %300, %301 : vector<16x16xf32>
    %303 = arith.addf %302, %0 : vector<16x16xf32>
    %cst_127 = arith.constant dense<0xFF800000> : vector<16xf32>
    %304 = vector.multi_reduction <maximumf>, %303, %cst_127 [1] : vector<16x16xf32> to vector<16xf32>
    %305 = vector.shape_cast %304 : vector<16xf32> to vector<16x1xf32>
    %306 = vector.broadcast %305 : vector<16x1xf32> to vector<16x16xf32>
    %307 = arith.subf %303, %306 : vector<16x16xf32>
    %308 = math.exp %307 : vector<16x16xf32>
    %cst_128 = arith.constant dense<0.000000e+00> : vector<16xf32>
    %309 = vector.multi_reduction <add>, %308, %cst_128 [1] : vector<16x16xf32> to vector<16xf32>
    %310 = vector.shape_cast %309 : vector<16xf32> to vector<16x1xf32>
    %311 = tpu.reciprocal %310 {approx = true} : vector<16x1xf32> -> vector<16x1xf32>
    %312 = vector.broadcast %311 : vector<16x1xf32> to vector<16x16xf32>
    %313 = arith.mulf %308, %312 : vector<16x16xf32>
    %314 = arith.truncf %313 : vector<16x16xf32> to vector<16x16xbf16>
    %315 = arith.truncf %296 : vector<16x8xf32> to vector<16x8xbf16>
    %cst_129 = arith.constant dense<0.000000e+00> : vector<16x8xf32>
    %316 = tpu.matmul %314, %315, %cst_129 {dimension_numbers = #tpu.dot_dimension_numbers<[1], [0], [0], [1], [0, 0, 1, 1], [], []>} : vector<16x16xbf16>, vector<16x8xbf16>, vector<16x8xf32> -> vector<16x8xf32>
    %317 = vector.extract_strided_slice %293 {offsets = [0, 0], sizes = [8, 32], strides = [1, 1]} : vector<32x32xbf16> to vector<8x32xbf16>
    %318 = arith.truncf %316 : vector<16x8xf32> to vector<16x8xbf16>
    %cst_130 = arith.constant dense<0.000000e+00> : vector<16x32xf32>
    %319 = tpu.matmul %318, %317, %cst_130 {dimension_numbers = #tpu.dot_dimension_numbers<[1], [0], [0], [1], [0, 0, 1, 1], [], []>} : vector<16x8xbf16>, vector<8x32xbf16>, vector<16x32xf32> -> vector<16x32xf32>
    %320 = vector.extract_strided_slice %291 {offsets = [0, 8], sizes = [16, 8], strides = [1, 1]} : vector<16x96xf32> to vector<16x8xf32>
    %321 = vector.extract_strided_slice %291 {offsets = [0, 40], sizes = [16, 8], strides = [1, 1]} : vector<16x96xf32> to vector<16x8xf32>
    %322 = vector.extract_strided_slice %291 {offsets = [0, 72], sizes = [16, 8], strides = [1, 1]} : vector<16x96xf32> to vector<16x8xf32>
    %323 = tpu.transpose %321, [1, 0] : vector<16x8xf32> -> vector<8x16xf32>
    %324 = arith.truncf %320 : vector<16x8xf32> to vector<16x8xbf16>
    %325 = arith.truncf %323 : vector<8x16xf32> to vector<8x16xbf16>
    %cst_131 = arith.constant dense<0.000000e+00> : vector<16x16xf32>
    %326 = tpu.matmul %324, %325, %cst_131 {dimension_numbers = #tpu.dot_dimension_numbers<[1], [0], [0], [1], [0, 0, 1, 1], [], []>} : vector<16x8xbf16>, vector<8x16xbf16>, vector<16x16xf32> -> vector<16x16xf32>
    %cst_132 = arith.constant 0.353553385 : f32
    %327 = vector.broadcast %cst_132 : f32 to vector<16x16xf32>
    %328 = arith.mulf %326, %327 : vector<16x16xf32>
    %329 = arith.addf %328, %0 : vector<16x16xf32>
    %cst_133 = arith.constant dense<0xFF800000> : vector<16xf32>
    %330 = vector.multi_reduction <maximumf>, %329, %cst_133 [1] : vector<16x16xf32> to vector<16xf32>
    %331 = vector.shape_cast %330 : vector<16xf32> to vector<16x1xf32>
    %332 = vector.broadcast %331 : vector<16x1xf32> to vector<16x16xf32>
    %333 = arith.subf %329, %332 : vector<16x16xf32>
    %334 = math.exp %333 : vector<16x16xf32>
    %cst_134 = arith.constant dense<0.000000e+00> : vector<16xf32>
    %335 = vector.multi_reduction <add>, %334, %cst_134 [1] : vector<16x16xf32> to vector<16xf32>
    %336 = vector.shape_cast %335 : vector<16xf32> to vector<16x1xf32>
    %337 = tpu.reciprocal %336 {approx = true} : vector<16x1xf32> -> vector<16x1xf32>
    %338 = vector.broadcast %337 : vector<16x1xf32> to vector<16x16xf32>
    %339 = arith.mulf %334, %338 : vector<16x16xf32>
    %340 = arith.truncf %339 : vector<16x16xf32> to vector<16x16xbf16>
    %341 = arith.truncf %322 : vector<16x8xf32> to vector<16x8xbf16>
    %cst_135 = arith.constant dense<0.000000e+00> : vector<16x8xf32>
    %342 = tpu.matmul %340, %341, %cst_135 {dimension_numbers = #tpu.dot_dimension_numbers<[1], [0], [0], [1], [0, 0, 1, 1], [], []>} : vector<16x16xbf16>, vector<16x8xbf16>, vector<16x8xf32> -> vector<16x8xf32>
    %343 = vector.extract_strided_slice %293 {offsets = [8, 0], sizes = [8, 32], strides = [1, 1]} : vector<32x32xbf16> to vector<8x32xbf16>
    %344 = arith.truncf %342 : vector<16x8xf32> to vector<16x8xbf16>
    %cst_136 = arith.constant dense<0.000000e+00> : vector<16x32xf32>
    %345 = tpu.matmul %344, %343, %cst_136 {dimension_numbers = #tpu.dot_dimension_numbers<[1], [0], [0], [1], [0, 0, 1, 1], [], []>} : vector<16x8xbf16>, vector<8x32xbf16>, vector<16x32xf32> -> vector<16x32xf32>
    %346 = arith.addf %319, %345 : vector<16x32xf32>
    %347 = vector.extract_strided_slice %291 {offsets = [0, 16], sizes = [16, 8], strides = [1, 1]} : vector<16x96xf32> to vector<16x8xf32>
    %348 = vector.extract_strided_slice %291 {offsets = [0, 48], sizes = [16, 8], strides = [1, 1]} : vector<16x96xf32> to vector<16x8xf32>
    %349 = vector.extract_strided_slice %291 {offsets = [0, 80], sizes = [16, 8], strides = [1, 1]} : vector<16x96xf32> to vector<16x8xf32>
    %350 = tpu.transpose %348, [1, 0] : vector<16x8xf32> -> vector<8x16xf32>
    %351 = arith.truncf %347 : vector<16x8xf32> to vector<16x8xbf16>
    %352 = arith.truncf %350 : vector<8x16xf32> to vector<8x16xbf16>
    %cst_137 = arith.constant dense<0.000000e+00> : vector<16x16xf32>
    %353 = tpu.matmul %351, %352, %cst_137 {dimension_numbers = #tpu.dot_dimension_numbers<[1], [0], [0], [1], [0, 0, 1, 1], [], []>} : vector<16x8xbf16>, vector<8x16xbf16>, vector<16x16xf32> -> vector<16x16xf32>
    %cst_138 = arith.constant 0.353553385 : f32
    %354 = vector.broadcast %cst_138 : f32 to vector<16x16xf32>
    %355 = arith.mulf %353, %354 : vector<16x16xf32>
    %356 = arith.addf %355, %0 : vector<16x16xf32>
    %cst_139 = arith.constant dense<0xFF800000> : vector<16xf32>
    %357 = vector.multi_reduction <maximumf>, %356, %cst_139 [1] : vector<16x16xf32> to vector<16xf32>
    %358 = vector.shape_cast %357 : vector<16xf32> to vector<16x1xf32>
    %359 = vector.broadcast %358 : vector<16x1xf32> to vector<16x16xf32>
    %360 = arith.subf %356, %359 : vector<16x16xf32>
    %361 = math.exp %360 : vector<16x16xf32>
    %cst_140 = arith.constant dense<0.000000e+00> : vector<16xf32>
    %362 = vector.multi_reduction <add>, %361, %cst_140 [1] : vector<16x16xf32> to vector<16xf32>
    %363 = vector.shape_cast %362 : vector<16xf32> to vector<16x1xf32>
    %364 = tpu.reciprocal %363 {approx = true} : vector<16x1xf32> -> vector<16x1xf32>
    %365 = vector.broadcast %364 : vector<16x1xf32> to vector<16x16xf32>
    %366 = arith.mulf %361, %365 : vector<16x16xf32>
    %367 = arith.truncf %366 : vector<16x16xf32> to vector<16x16xbf16>
    %368 = arith.truncf %349 : vector<16x8xf32> to vector<16x8xbf16>
    %cst_141 = arith.constant dense<0.000000e+00> : vector<16x8xf32>
    %369 = tpu.matmul %367, %368, %cst_141 {dimension_numbers = #tpu.dot_dimension_numbers<[1], [0], [0], [1], [0, 0, 1, 1], [], []>} : vector<16x16xbf16>, vector<16x8xbf16>, vector<16x8xf32> -> vector<16x8xf32>
    %370 = vector.extract_strided_slice %293 {offsets = [16, 0], sizes = [8, 32], strides = [1, 1]} : vector<32x32xbf16> to vector<8x32xbf16>
    %371 = arith.truncf %369 : vector<16x8xf32> to vector<16x8xbf16>
    %cst_142 = arith.constant dense<0.000000e+00> : vector<16x32xf32>
    %372 = tpu.matmul %371, %370, %cst_142 {dimension_numbers = #tpu.dot_dimension_numbers<[1], [0], [0], [1], [0, 0, 1, 1], [], []>} : vector<16x8xbf16>, vector<8x32xbf16>, vector<16x32xf32> -> vector<16x32xf32>
    %373 = arith.addf %346, %372 : vector<16x32xf32>
    %374 = vector.extract_strided_slice %291 {offsets = [0, 24], sizes = [16, 8], strides = [1, 1]} : vector<16x96xf32> to vector<16x8xf32>
    %375 = vector.extract_strided_slice %291 {offsets = [0, 56], sizes = [16, 8], strides = [1, 1]} : vector<16x96xf32> to vector<16x8xf32>
    %376 = vector.extract_strided_slice %291 {offsets = [0, 88], sizes = [16, 8], strides = [1, 1]} : vector<16x96xf32> to vector<16x8xf32>
    %377 = tpu.transpose %375, [1, 0] : vector<16x8xf32> -> vector<8x16xf32>
    %378 = arith.truncf %374 : vector<16x8xf32> to vector<16x8xbf16>
    %379 = arith.truncf %377 : vector<8x16xf32> to vector<8x16xbf16>
    %cst_143 = arith.constant dense<0.000000e+00> : vector<16x16xf32>
    %380 = tpu.matmul %378, %379, %cst_143 {dimension_numbers = #tpu.dot_dimension_numbers<[1], [0], [0], [1], [0, 0, 1, 1], [], []>} : vector<16x8xbf16>, vector<8x16xbf16>, vector<16x16xf32> -> vector<16x16xf32>
    %cst_144 = arith.constant 0.353553385 : f32
    %381 = vector.broadcast %cst_144 : f32 to vector<16x16xf32>
    %382 = arith.mulf %380, %381 : vector<16x16xf32>
    %383 = arith.addf %382, %0 : vector<16x16xf32>
    %cst_145 = arith.constant dense<0xFF800000> : vector<16xf32>
    %384 = vector.multi_reduction <maximumf>, %383, %cst_145 [1] : vector<16x16xf32> to vector<16xf32>
    %385 = vector.shape_cast %384 : vector<16xf32> to vector<16x1xf32>
    %386 = vector.broadcast %385 : vector<16x1xf32> to vector<16x16xf32>
    %387 = arith.subf %383, %386 : vector<16x16xf32>
    %388 = math.exp %387 : vector<16x16xf32>
    %cst_146 = arith.constant dense<0.000000e+00> : vector<16xf32>
    %389 = vector.multi_reduction <add>, %388, %cst_146 [1] : vector<16x16xf32> to vector<16xf32>
    %390 = vector.shape_cast %389 : vector<16xf32> to vector<16x1xf32>
    %391 = tpu.reciprocal %390 {approx = true} : vector<16x1xf32> -> vector<16x1xf32>
    %392 = vector.broadcast %391 : vector<16x1xf32> to vector<16x16xf32>
    %393 = arith.mulf %388, %392 : vector<16x16xf32>
    %394 = arith.truncf %393 : vector<16x16xf32> to vector<16x16xbf16>
    %395 = arith.truncf %376 : vector<16x8xf32> to vector<16x8xbf16>
    %cst_147 = arith.constant dense<0.000000e+00> : vector<16x8xf32>
    %396 = tpu.matmul %394, %395, %cst_147 {dimension_numbers = #tpu.dot_dimension_numbers<[1], [0], [0], [1], [0, 0, 1, 1], [], []>} : vector<16x16xbf16>, vector<16x8xbf16>, vector<16x8xf32> -> vector<16x8xf32>
    %397 = vector.extract_strided_slice %293 {offsets = [24, 0], sizes = [8, 32], strides = [1, 1]} : vector<32x32xbf16> to vector<8x32xbf16>
    %398 = arith.truncf %396 : vector<16x8xf32> to vector<16x8xbf16>
    %cst_148 = arith.constant dense<0.000000e+00> : vector<16x32xf32>
    %399 = tpu.matmul %398, %397, %cst_148 {dimension_numbers = #tpu.dot_dimension_numbers<[1], [0], [0], [1], [0, 0, 1, 1], [], []>} : vector<16x8xbf16>, vector<8x32xbf16>, vector<16x32xf32> -> vector<16x32xf32>
    %400 = arith.addf %373, %399 : vector<16x32xf32>
    %c1_149 = arith.constant 1 : index
    %c0_150 = arith.constant 0 : index
    %c0_151 = arith.constant 0 : index
    %401 = vector.load %arg8[%c1_149, %c0_150, %c0_151] : memref<2x1x32xf32, #tpu.memory_space<vmem>>, vector<1x1x32xf32>
    %402 = vector.shape_cast %401 : vector<1x1x32xf32> to vector<1x32xf32>
    %403 = vector.broadcast %402 : vector<1x32xf32> to vector<16x32xf32>
    %404 = arith.addf %400, %403 : vector<16x32xf32>
    %405 = arith.addf %404, %283 : vector<16x32xf32>
    %c1_152 = arith.constant 1 : index
    %c0_153 = arith.constant 0 : index
    %c0_154 = arith.constant 0 : index
    %406 = vector.load %arg9[%c1_152, %c0_153, %c0_154] : memref<2x1x32xf32, #tpu.memory_space<vmem>>, vector<1x1x32xf32>
    %407 = vector.shape_cast %406 : vector<1x1x32xf32> to vector<1x32xf32>
    %c1_155 = arith.constant 1 : index
    %c0_156 = arith.constant 0 : index
    %c0_157 = arith.constant 0 : index
    %408 = vector.load %arg10[%c1_155, %c0_156, %c0_157] : memref<2x1x32xf32, #tpu.memory_space<vmem>>, vector<1x1x32xf32>
    %409 = vector.shape_cast %408 : vector<1x1x32xf32> to vector<1x32xf32>
    %cst_158 = arith.constant dense<0.000000e+00> : vector<16xf32>
    %410 = vector.multi_reduction <add>, %405, %cst_158 [1] : vector<16x32xf32> to vector<16xf32>
    %411 = vector.shape_cast %410 : vector<16xf32> to vector<16x1xf32>
    %cst_159 = arith.constant 3.200000e+01 : f32
    %412 = vector.broadcast %cst_159 : f32 to vector<16x1xf32>
    %413 = arith.divf %411, %412 : vector<16x1xf32>
    %414 = vector.broadcast %413 : vector<16x1xf32> to vector<16x32xf32>
    %415 = arith.subf %405, %414 : vector<16x32xf32>
    %416 = arith.mulf %415, %415 : vector<16x32xf32>
    %cst_160 = arith.constant dense<0.000000e+00> : vector<16xf32>
    %417 = vector.multi_reduction <add>, %416, %cst_160 [1] : vector<16x32xf32> to vector<16xf32>
    %418 = vector.shape_cast %417 : vector<16xf32> to vector<16x1xf32>
    %cst_161 = arith.constant 3.200000e+01 : f32
    %419 = vector.broadcast %cst_161 : f32 to vector<16x1xf32>
    %420 = arith.divf %418, %419 : vector<16x1xf32>
    %421 = vector.broadcast %413 : vector<16x1xf32> to vector<16x32xf32>
    %422 = arith.subf %405, %421 : vector<16x32xf32>
    %cst_162 = arith.constant 9.99999996E-13 : f32
    %423 = vector.broadcast %cst_162 : f32 to vector<16x1xf32>
    %424 = arith.addf %420, %423 : vector<16x1xf32>
    %425 = math.rsqrt %424 : vector<16x1xf32>
    %426 = vector.broadcast %425 : vector<16x1xf32> to vector<16x32xf32>
    %427 = arith.mulf %422, %426 : vector<16x32xf32>
    %428 = vector.broadcast %407 : vector<1x32xf32> to vector<16x32xf32>
    %429 = arith.mulf %427, %428 : vector<16x32xf32>
    %430 = vector.broadcast %409 : vector<1x32xf32> to vector<16x32xf32>
    %431 = arith.addf %429, %430 : vector<16x32xf32>
    %c1_163 = arith.constant 1 : index
    %c0_164 = arith.constant 0 : index
    %c0_165 = arith.constant 0 : index
    %432 = vector.load %arg11[%c1_163, %c0_164, %c0_165] : memref<2x32x32xbf16, #tpu.memory_space<vmem>>, vector<1x32x32xbf16>
    %433 = vector.shape_cast %432 : vector<1x32x32xbf16> to vector<32x32xbf16>
    %434 = arith.truncf %431 : vector<16x32xf32> to vector<16x32xbf16>
    %cst_166 = arith.constant dense<0.000000e+00> : vector<16x32xf32>
    %435 = tpu.matmul %434, %433, %cst_166 {dimension_numbers = #tpu.dot_dimension_numbers<[1], [0], [0], [1], [0, 0, 1, 1], [], []>} : vector<16x32xbf16>, vector<32x32xbf16>, vector<16x32xf32> -> vector<16x32xf32>
    %c1_167 = arith.constant 1 : index
    %c0_168 = arith.constant 0 : index
    %c0_169 = arith.constant 0 : index
    %436 = vector.load %arg12[%c1_167, %c0_168, %c0_169] : memref<2x16x32xbf16, #tpu.memory_space<vmem>>, vector<1x16x32xbf16>
    %437 = vector.shape_cast %436 : vector<1x16x32xbf16> to vector<16x32xbf16>
    %cst_170 = arith.constant dense<0.000000e+00> : vector<16x32xf32>
    %438 = tpu.matmul %2, %437, %cst_170 {dimension_numbers = #tpu.dot_dimension_numbers<[1], [0], [0], [1], [0, 0, 1, 1], [], []>} : vector<16x16xbf16>, vector<16x32xbf16>, vector<16x32xf32> -> vector<16x32xf32>
    %439 = arith.addf %435, %438 : vector<16x32xf32>
    %c1_171 = arith.constant 1 : index
    %c0_172 = arith.constant 0 : index
    %c0_173 = arith.constant 0 : index
    %440 = vector.load %arg13[%c1_171, %c0_172, %c0_173] : memref<2x1x32xf32, #tpu.memory_space<vmem>>, vector<1x1x32xf32>
    %441 = vector.shape_cast %440 : vector<1x1x32xf32> to vector<1x32xf32>
    %442 = vector.broadcast %441 : vector<1x32xf32> to vector<16x32xf32>
    %443 = arith.addf %439, %442 : vector<16x32xf32>
    %444 = arith.mulf %443, %443 : vector<16x32xf32>
    %445 = arith.mulf %443, %444 : vector<16x32xf32>
    %cst_174 = arith.constant 4.471500e-02 : f32
    %446 = vector.broadcast %cst_174 : f32 to vector<16x32xf32>
    %447 = arith.mulf %446, %445 : vector<16x32xf32>
    %448 = arith.addf %443, %447 : vector<16x32xf32>
    %cst_175 = arith.constant 0.797884583 : f32
    %449 = vector.broadcast %cst_175 : f32 to vector<16x32xf32>
    %450 = arith.mulf %449, %448 : vector<16x32xf32>
    %451 = math.tanh %450 : vector<16x32xf32>
    %cst_176 = arith.constant 1.000000e+00 : f32
    %452 = vector.broadcast %cst_176 : f32 to vector<16x32xf32>
    %453 = arith.addf %452, %451 : vector<16x32xf32>
    %cst_177 = arith.constant 5.000000e-01 : f32
    %454 = vector.broadcast %cst_177 : f32 to vector<16x32xf32>
    %455 = arith.mulf %454, %453 : vector<16x32xf32>
    %456 = arith.mulf %443, %455 : vector<16x32xf32>
    %457 = arith.addf %456, %431 : vector<16x32xf32>
    %c1_178 = arith.constant 1 : index
    %c0_179 = arith.constant 0 : index
    %c0_180 = arith.constant 0 : index
    %458 = vector.load %arg14[%c1_178, %c0_179, %c0_180] : memref<2x1x32xf32, #tpu.memory_space<vmem>>, vector<1x1x32xf32>
    %459 = vector.shape_cast %458 : vector<1x1x32xf32> to vector<1x32xf32>
    %c1_181 = arith.constant 1 : index
    %c0_182 = arith.constant 0 : index
    %c0_183 = arith.constant 0 : index
    %460 = vector.load %arg15[%c1_181, %c0_182, %c0_183] : memref<2x1x32xf32, #tpu.memory_space<vmem>>, vector<1x1x32xf32>
    %461 = vector.shape_cast %460 : vector<1x1x32xf32> to vector<1x32xf32>
    %cst_184 = arith.constant dense<0.000000e+00> : vector<16xf32>
    %462 = vector.multi_reduction <add>, %457, %cst_184 [1] : vector<16x32xf32> to vector<16xf32>
    %463 = vector.shape_cast %462 : vector<16xf32> to vector<16x1xf32>
    %cst_185 = arith.constant 3.200000e+01 : f32
    %464 = vector.broadcast %cst_185 : f32 to vector<16x1xf32>
    %465 = arith.divf %463, %464 : vector<16x1xf32>
    %466 = vector.broadcast %465 : vector<16x1xf32> to vector<16x32xf32>
    %467 = arith.subf %457, %466 : vector<16x32xf32>
    %468 = arith.mulf %467, %467 : vector<16x32xf32>
    %cst_186 = arith.constant dense<0.000000e+00> : vector<16xf32>
    %469 = vector.multi_reduction <add>, %468, %cst_186 [1] : vector<16x32xf32> to vector<16xf32>
    %470 = vector.shape_cast %469 : vector<16xf32> to vector<16x1xf32>
    %cst_187 = arith.constant 3.200000e+01 : f32
    %471 = vector.broadcast %cst_187 : f32 to vector<16x1xf32>
    %472 = arith.divf %470, %471 : vector<16x1xf32>
    %473 = vector.broadcast %465 : vector<16x1xf32> to vector<16x32xf32>
    %474 = arith.subf %457, %473 : vector<16x32xf32>
    %cst_188 = arith.constant 9.99999996E-13 : f32
    %475 = vector.broadcast %cst_188 : f32 to vector<16x1xf32>
    %476 = arith.addf %472, %475 : vector<16x1xf32>
    %477 = math.rsqrt %476 : vector<16x1xf32>
    %478 = vector.broadcast %477 : vector<16x1xf32> to vector<16x32xf32>
    %479 = arith.mulf %474, %478 : vector<16x32xf32>
    %480 = vector.broadcast %459 : vector<1x32xf32> to vector<16x32xf32>
    %481 = arith.mulf %479, %480 : vector<16x32xf32>
    %482 = vector.broadcast %461 : vector<1x32xf32> to vector<16x32xf32>
    %483 = arith.addf %481, %482 : vector<16x32xf32>
    %c1_189 = arith.constant 1 : index
    %c0_190 = arith.constant 0 : index
    %c0_191 = arith.constant 0 : index
    %484 = vector.load %arg16[%c1_189, %c0_190, %c0_191] : memref<2x32x64xbf16, #tpu.memory_space<vmem>>, vector<1x32x64xbf16>
    %485 = vector.shape_cast %484 : vector<1x32x64xbf16> to vector<32x64xbf16>
    %486 = arith.truncf %483 : vector<16x32xf32> to vector<16x32xbf16>
    %cst_192 = arith.constant dense<0.000000e+00> : vector<16x64xf32>
    %487 = tpu.matmul %486, %485, %cst_192 {dimension_numbers = #tpu.dot_dimension_numbers<[1], [0], [0], [1], [0, 0, 1, 1], [], []>} : vector<16x32xbf16>, vector<32x64xbf16>, vector<16x64xf32> -> vector<16x64xf32>
    %c1_193 = arith.constant 1 : index
    %c0_194 = arith.constant 0 : index
    %c0_195 = arith.constant 0 : index
    %488 = vector.load %arg17[%c1_193, %c0_194, %c0_195] : memref<2x1x64xf32, #tpu.memory_space<vmem>>, vector<1x1x64xf32>
    %489 = vector.shape_cast %488 : vector<1x1x64xf32> to vector<1x64xf32>
    %490 = vector.broadcast %489 : vector<1x64xf32> to vector<16x64xf32>
    %491 = arith.addf %487, %490 : vector<16x64xf32>
    %492 = arith.mulf %491, %491 : vector<16x64xf32>
    %493 = arith.mulf %491, %492 : vector<16x64xf32>
    %cst_196 = arith.constant 4.471500e-02 : f32
    %494 = vector.broadcast %cst_196 : f32 to vector<16x64xf32>
    %495 = arith.mulf %494, %493 : vector<16x64xf32>
    %496 = arith.addf %491, %495 : vector<16x64xf32>
    %cst_197 = arith.constant 0.797884583 : f32
    %497 = vector.broadcast %cst_197 : f32 to vector<16x64xf32>
    %498 = arith.mulf %497, %496 : vector<16x64xf32>
    %499 = math.tanh %498 : vector<16x64xf32>
    %cst_198 = arith.constant 1.000000e+00 : f32
    %500 = vector.broadcast %cst_198 : f32 to vector<16x64xf32>
    %501 = arith.addf %500, %499 : vector<16x64xf32>
    %cst_199 = arith.constant 5.000000e-01 : f32
    %502 = vector.broadcast %cst_199 : f32 to vector<16x64xf32>
    %503 = arith.mulf %502, %501 : vector<16x64xf32>
    %504 = arith.mulf %491, %503 : vector<16x64xf32>
    %c1_200 = arith.constant 1 : index
    %c0_201 = arith.constant 0 : index
    %c0_202 = arith.constant 0 : index
    %505 = vector.load %arg18[%c1_200, %c0_201, %c0_202] : memref<2x64x32xbf16, #tpu.memory_space<vmem>>, vector<1x64x32xbf16>
    %506 = vector.shape_cast %505 : vector<1x64x32xbf16> to vector<64x32xbf16>
    %507 = arith.truncf %504 : vector<16x64xf32> to vector<16x64xbf16>
    %cst_203 = arith.constant dense<0.000000e+00> : vector<16x32xf32>
    %508 = tpu.matmul %507, %506, %cst_203 {dimension_numbers = #tpu.dot_dimension_numbers<[1], [0], [0], [1], [0, 0, 1, 1], [], []>} : vector<16x64xbf16>, vector<64x32xbf16>, vector<16x32xf32> -> vector<16x32xf32>
    %c1_204 = arith.constant 1 : index
    %c0_205 = arith.constant 0 : index
    %c0_206 = arith.constant 0 : index
    %509 = vector.load %arg19[%c1_204, %c0_205, %c0_206] : memref<2x1x32xf32, #tpu.memory_space<vmem>>, vector<1x1x32xf32>
    %510 = vector.shape_cast %509 : vector<1x1x32xf32> to vector<1x32xf32>
    %511 = vector.broadcast %510 : vector<1x32xf32> to vector<16x32xf32>
    %512 = arith.addf %508, %511 : vector<16x32xf32>
    %513 = arith.addf %512, %483 : vector<16x32xf32>
    %c1_207 = arith.constant 1 : index
    %c0_208 = arith.constant 0 : index
    %c0_209 = arith.constant 0 : index
    %514 = vector.load %arg20[%c1_207, %c0_208, %c0_209] : memref<2x1x32xf32, #tpu.memory_space<vmem>>, vector<1x1x32xf32>
    %515 = vector.shape_cast %514 : vector<1x1x32xf32> to vector<1x32xf32>
    %c1_210 = arith.constant 1 : index
    %c0_211 = arith.constant 0 : index
    %c0_212 = arith.constant 0 : index
    %516 = vector.load %arg21[%c1_210, %c0_211, %c0_212] : memref<2x1x32xf32, #tpu.memory_space<vmem>>, vector<1x1x32xf32>
    %517 = vector.shape_cast %516 : vector<1x1x32xf32> to vector<1x32xf32>
    %cst_213 = arith.constant dense<0.000000e+00> : vector<16xf32>
    %518 = vector.multi_reduction <add>, %513, %cst_213 [1] : vector<16x32xf32> to vector<16xf32>
    %519 = vector.shape_cast %518 : vector<16xf32> to vector<16x1xf32>
    %cst_214 = arith.constant 3.200000e+01 : f32
    %520 = vector.broadcast %cst_214 : f32 to vector<16x1xf32>
    %521 = arith.divf %519, %520 : vector<16x1xf32>
    %522 = vector.broadcast %521 : vector<16x1xf32> to vector<16x32xf32>
    %523 = arith.subf %513, %522 : vector<16x32xf32>
    %524 = arith.mulf %523, %523 : vector<16x32xf32>
    %cst_215 = arith.constant dense<0.000000e+00> : vector<16xf32>
    %525 = vector.multi_reduction <add>, %524, %cst_215 [1] : vector<16x32xf32> to vector<16xf32>
    %526 = vector.shape_cast %525 : vector<16xf32> to vector<16x1xf32>
    %cst_216 = arith.constant 3.200000e+01 : f32
    %527 = vector.broadcast %cst_216 : f32 to vector<16x1xf32>
    %528 = arith.divf %526, %527 : vector<16x1xf32>
    %529 = vector.broadcast %521 : vector<16x1xf32> to vector<16x32xf32>
    %530 = arith.subf %513, %529 : vector<16x32xf32>
    %cst_217 = arith.constant 9.99999996E-13 : f32
    %531 = vector.broadcast %cst_217 : f32 to vector<16x1xf32>
    %532 = arith.addf %528, %531 : vector<16x1xf32>
    %533 = math.rsqrt %532 : vector<16x1xf32>
    %534 = vector.broadcast %533 : vector<16x1xf32> to vector<16x32xf32>
    %535 = arith.mulf %530, %534 : vector<16x32xf32>
    %536 = vector.broadcast %515 : vector<1x32xf32> to vector<16x32xf32>
    %537 = arith.mulf %535, %536 : vector<16x32xf32>
    %538 = vector.broadcast %517 : vector<1x32xf32> to vector<16x32xf32>
    %539 = arith.addf %537, %538 : vector<16x32xf32>
    %540 = vector.extract_strided_slice %539 {offsets = [0, 0], sizes = [1, 32], strides = [1, 1]} : vector<16x32xf32> to vector<1x32xf32>
    %541 = vector.extract_strided_slice %539 {offsets = [8, 0], sizes = [1, 32], strides = [1, 1]} : vector<16x32xf32> to vector<1x32xf32>
    %542 = tpu.concatenate %540, %541 in 0 : vector<1x32xf32>, vector<1x32xf32> -> vector<2x32xf32>
    %c0_218 = arith.constant 0 : index
    %c0_219 = arith.constant 0 : index
    %543 = vector.load %arg22[%c0_218, %c0_219] : memref<32x32xbf16, #tpu.memory_space<vmem>>, vector<32x32xbf16>
    %544 = arith.truncf %542 : vector<2x32xf32> to vector<2x32xbf16>
    %cst_220 = arith.constant dense<0.000000e+00> : vector<2x32xf32>
    %545 = tpu.matmul %544, %543, %cst_220 {dimension_numbers = #tpu.dot_dimension_numbers<[1], [0], [0], [1], [0, 0, 1, 1], [], []>} : vector<2x32xbf16>, vector<32x32xbf16>, vector<2x32xf32> -> vector<2x32xf32>
    %c0_221 = arith.constant 0 : index
    %c0_222 = arith.constant 0 : index
    %546 = vector.load %arg23[%c0_221, %c0_222] : memref<1x32xf32, #tpu.memory_space<vmem>>, vector<1x32xf32>
    %547 = vector.broadcast %546 : vector<1x32xf32> to vector<2x32xf32>
    %548 = arith.addf %545, %547 : vector<2x32xf32>
    %549 = math.tanh %548 : vector<2x32xf32>
    %c0_223 = arith.constant 0 : index
    %c0_224 = arith.constant 0 : index
    %550 = vector.load %arg24[%c0_223, %c0_224] : memref<32x128xbf16, #tpu.memory_space<vmem>>, vector<32x128xbf16>
    %551 = arith.truncf %549 : vector<2x32xf32> to vector<2x32xbf16>
    %cst_225 = arith.constant dense<0.000000e+00> : vector<2x128xf32>
    %552 = tpu.matmul %551, %550, %cst_225 {dimension_numbers = #tpu.dot_dimension_numbers<[1], [0], [0], [1], [0, 0, 1, 1], [], []>} : vector<2x32xbf16>, vector<32x128xbf16>, vector<2x128xf32> -> vector<2x128xf32>
    %c0_226 = arith.constant 0 : index
    %c0_227 = arith.constant 0 : index
    %553 = vector.load %arg25[%c0_226, %c0_227] : memref<1x128xf32, #tpu.memory_space<vmem>>, vector<1x128xf32>
    %554 = vector.broadcast %553 : vector<1x128xf32> to vector<2x128xf32>
    %555 = arith.addf %552, %554 : vector<2x128xf32>
    %c0_228 = arith.constant 0 : index
    %c0_229 = arith.constant 0 : index
    %556 = vector.load %arg26[%c0_228, %c0_229] : memref<2x128xf32, #tpu.memory_space<vmem>>, vector<2x128xf32>
    tpu.vector_store %arg26[%c0_228, %c0_229], %555 {strides = array<i32>} : memref<2x128xf32, #tpu.memory_space<vmem>>, vector<2x128xf32>,
    return
  }
}

</mosaic_0001>

<llo_original>
// kernel: ernie_net_forward.1
$region0: #{ernie_net_forward.1}
  #allocation0 [shape = 'u32[]', space=smem, size = 0x4, offset = 0x4, fixed_abs, tag = 'smem constant byte address 0x4 - core index']
  #allocation1 [shape = 'u32[72,128]{1,0:T(1,128)}', space=vmem, size = 0x9000, scoped, tag = 'internal scratch']
  %s0 = inlined_call_operand.vmem [shape: f32[16,32], index: 0, kind: input, shape index: {}]
  %s1 = inlined_call_operand.vmem [shape: f32[16,16], index: 1, kind: input, shape index: {}]
  %s2 = inlined_call_operand.vmem [shape: f32[16,16], index: 2, kind: input, shape index: {}]
  %s3 = inlined_call_operand.vmem [shape: f32[1,32], index: 3, kind: input, shape index: {}]
  %s4 = inlined_call_operand.vmem [shape: f32[1,32], index: 4, kind: input, shape index: {}]
  %s5 = inlined_call_operand.vmem [shape: bf16[2,32,96], index: 5, kind: input, shape index: {}]
  %s6 = inlined_call_operand.vmem [shape: f32[2,1,96], index: 6, kind: input, shape index: {}]
  %s7 = inlined_call_operand.vmem [shape: bf16[2,32,32], index: 7, kind: input, shape index: {}]
  %s8 = inlined_call_operand.vmem [shape: f32[2,1,32], index: 8, kind: input, shape index: {}]
  %s9 = inlined_call_operand.vmem [shape: f32[2,1,32], index: 9, kind: input, shape index: {}]
  %s10 = inlined_call_operand.vmem [shape: f32[2,1,32], index: 10, kind: input, shape index: {}]
  %s11 = inlined_call_operand.vmem [shape: bf16[2,32,32], index: 11, kind: input, shape index: {}]
  %s12 = inlined_call_operand.vmem [shape: bf16[2,16,32], index: 12, kind: input, shape index: {}]
  %s13 = inlined_call_operand.vmem [shape: f32[2,1,32], index: 13, kind: input, shape index: {}]
  %s14 = inlined_call_operand.vmem [shape: f32[2,1,32], index: 14, kind: input, shape index: {}]
  %s15 = inlined_call_operand.vmem [shape: f32[2,1,32], index: 15, kind: input, shape index: {}]
  %s16 = inlined_call_operand.vmem [shape: bf16[2,32,64], index: 16, kind: input, shape index: {}]
  %s17 = inlined_call_operand.vmem [shape: f32[2,1,64], index: 17, kind: input, shape index: {}]
  %s18 = inlined_call_operand.vmem [shape: bf16[2,64,32], index: 18, kind: input, shape index: {}]
  %s19 = inlined_call_operand.vmem [shape: f32[2,1,32], index: 19, kind: input, shape index: {}]
  %s20 = inlined_call_operand.vmem [shape: f32[2,1,32], index: 20, kind: input, shape index: {}]
  %s21 = inlined_call_operand.vmem [shape: f32[2,1,32], index: 21, kind: input, shape index: {}]
  %s22 = inlined_call_operand.vmem [shape: bf16[32,32], index: 22, kind: input, shape index: {}]
  %s23 = inlined_call_operand.vmem [shape: f32[1,32], index: 23, kind: input, shape index: {}]
  %s24 = inlined_call_operand.vmem [shape: bf16[32,128], index: 24, kind: input, shape index: {}]
  %s25 = inlined_call_operand.vmem [shape: f32[1,128], index: 25, kind: input, shape index: {}]
  %s26 = inlined_call_operand.hbm [shape: f32[2,128], index: 26, kind: output, shape index: {}]
  %s27 = sld [smem:[#allocation0]]
  $region114: #{ernie_net_forward.1} parent=0
    _
  %s29 = ssub.s32 1, %s27
  %s30 = scalar_select 0, %s29, %s27
  $region1: #{ernie_net_forward.1} parent=0
    #allocation2 [shape = 'u8[1024]{0}', space=vmem, size = 0x400, scoped, tag = 'output window, operand 0, single buffered']
    #allocation3 [shape = 's32[1]{0}', space=sflag, size = 0x4, scoped, tag = 'scoped memory for ernie_net_forward.1']
    %31 = vsyncpa [#allocation3], 0
    // Predicated region
    $region2: #{ernie_net_forward.1} parent=1 // pred_check
      _
    $region3: #{ernie_net_forward.1} parent=1 // pred_check_branch
      %33 = sbr.rel (0) target = $region5
    $region4: #{ernie_net_forward.1} parent=1 // pred_region
      _
    $region5: #{ernie_net_forward.1} parent=1 // pred_fallthru
      _
    // Predicated region
    $region6: #{ernie_net_forward.1} parent=1 // pred_check
      _
    $region7: #{ernie_net_forward.1} parent=1 // pred_check_branch
      %35 = sbr.rel (0) target = $region9
    $region8: #{ernie_net_forward.1} parent=1 // pred_region
      _
    $region9: #{ernie_net_forward.1} parent=1 // pred_fallthru
      _
    // Predicated region
    $region10: #{ernie_net_forward.1} parent=1 // pred_check
      _
    $region11: #{ernie_net_forward.1} parent=1 // pred_check_branch
      %37 = sbr.rel (0) target = $region13
    $region12: #{ernie_net_forward.1} parent=1 // pred_region
      _
    $region13: #{ernie_net_forward.1} parent=1 // pred_fallthru
      _
    // Predicated region
    $region14: #{ernie_net_forward.1} parent=1 // pred_check
      _
    $region15: #{ernie_net_forward.1} parent=1 // pred_check_branch
      %39 = sbr.rel (0) target = $region17
    $region16: #{ernie_net_forward.1} parent=1 // pred_region
      _
    $region17: #{ernie_net_forward.1} parent=1 // pred_fallthru
      _
    // Predicated region
    $region18: #{ernie_net_forward.1} parent=1 // pred_check
      _
    $region19: #{ernie_net_forward.1} parent=1 // pred_check_branch
      %41 = sbr.rel (0) target = $region21
    $region20: #{ernie_net_forward.1} parent=1 // pred_region
      _
    $region21: #{ernie_net_forward.1} parent=1 // pred_fallthru
      _
    // Predicated region
    $region22: #{ernie_net_forward.1} parent=1 // pred_check
      _
    $region23: #{ernie_net_forward.1} parent=1 // pred_check_branch
      %43 = sbr.rel (0) target = $region25
    $region24: #{ernie_net_forward.1} parent=1 // pred_region
      _
    $region25: #{ernie_net_forward.1} parent=1 // pred_fallthru
      _
    // Predicated region
    $region26: #{ernie_net_forward.1} parent=1 // pred_check
      _
    $region27: #{ernie_net_forward.1} parent=1 // pred_check_branch
      %45 = sbr.rel (0) target = $region29
    $region28: #{ernie_net_forward.1} parent=1 // pred_region
      _
    $region29: #{ernie_net_forward.1} parent=1 // pred_fallthru
      _
    // Predicated region
    $region30: #{ernie_net_forward.1} parent=1 // pred_check
      _
    $region31: #{ernie_net_forward.1} parent=1 // pred_check_branch
      %47 = sbr.rel (0) target = $region33
    $region32: #{ernie_net_forward.1} parent=1 // pred_region
      _
    $region33: #{ernie_net_forward.1} parent=1 // pred_fallthru
      _
    // Predicated region
    $region34: #{ernie_net_forward.1} parent=1 // pred_check
      _
    $region35: #{ernie_net_forward.1} parent=1 // pred_check_branch
      %49 = sbr.rel (0) target = $region37
    $region36: #{ernie_net_forward.1} parent=1 // pred_region
      _
    $region37: #{ernie_net_forward.1} parent=1 // pred_fallthru
      _
    // Predicated region
    $region38: #{ernie_net_forward.1} parent=1 // pred_check
      _
    $region39: #{ernie_net_forward.1} parent=1 // pred_check_branch
      %51 = sbr.rel (0) target = $region41
    $region40: #{ernie_net_forward.1} parent=1 // pred_region
      _
    $region41: #{ernie_net_forward.1} parent=1 // pred_fallthru
      _
    // Predicated region
    $region42: #{ernie_net_forward.1} parent=1 // pred_check
      _
    $region43: #{ernie_net_forward.1} parent=1 // pred_check_branch
      %53 = sbr.rel (0) target = $region45
    $region44: #{ernie_net_forward.1} parent=1 // pred_region
      _
    $region45: #{ernie_net_forward.1} parent=1 // pred_fallthru
      _
    // Predicated region
    $region46: #{ernie_net_forward.1} parent=1 // pred_check
      _
    $region47: #{ernie_net_forward.1} parent=1 // pred_check_branch
      %55 = sbr.rel (0) target = $region49
    $region48: #{ernie_net_forward.1} parent=1 // pred_region
      _
    $region49: #{ernie_net_forward.1} parent=1 // pred_fallthru
      _
    // Predicated region
    $region50: #{ernie_net_forward.1} parent=1 // pred_check
      _
    $region51: #{ernie_net_forward.1} parent=1 // pred_check_branch
      %57 = sbr.rel (0) target = $region53
    $region52: #{ernie_net_forward.1} parent=1 // pred_region
      _
    $region53: #{ernie_net_forward.1} parent=1 // pred_fallthru
      _
    // Predicated region
    $region54: #{ernie_net_forward.1} parent=1 // pred_check
      _
    $region55: #{ernie_net_forward.1} parent=1 // pred_check_branch
      %59 = sbr.rel (0) target = $region57
    $region56: #{ernie_net_forward.1} parent=1 // pred_region
      _
    $region57: #{ernie_net_forward.1} parent=1 // pred_fallthru
      _
    // Predicated region
    $region58: #{ernie_net_forward.1} parent=1 // pred_check
      _
    $region59: #{ernie_net_forward.1} parent=1 // pred_check_branch
      %61 = sbr.rel (0) target = $region61
    $region60: #{ernie_net_forward.1} parent=1 // pred_region
      _
    $region61: #{ernie_net_forward.1} parent=1 // pred_fallthru
      _
    // Predicated region
    $region62: #{ernie_net_forward.1} parent=1 // pred_check
      _
    $region63: #{ernie_net_forward.1} parent=1 // pred_check_branch
      %63 = sbr.rel (0) target = $region65
    $region64: #{ernie_net_forward.1} parent=1 // pred_region
      _
    $region65: #{ernie_net_forward.1} parent=1 // pred_fallthru
      _
    // Predicated region
    $region66: #{ernie_net_forward.1} parent=1 // pred_check
      _
    $region67: #{ernie_net_forward.1} parent=1 // pred_check_branch
      %65 = sbr.rel (0) target = $region69
    $region68: #{ernie_net_forward.1} parent=1 // pred_region
      _
    $region69: #{ernie_net_forward.1} parent=1 // pred_fallthru
      _
    // Predicated region
    $region70: #{ernie_net_forward.1} parent=1 // pred_check
      _
    $region71: #{ernie_net_forward.1} parent=1 // pred_check_branch
      %67 = sbr.rel (0) target = $region73
    $region72: #{ernie_net_forward.1} parent=1 // pred_region
      _
    $region73: #{ernie_net_forward.1} parent=1 // pred_fallthru
      _
    // Predicated region
    $region74: #{ernie_net_forward.1} parent=1 // pred_check
      _
    $region75: #{ernie_net_forward.1} parent=1 // pred_check_branch
      %69 = sbr.rel (0) target = $region77
    $region76: #{ernie_net_forward.1} parent=1 // pred_region
      _
    $region77: #{ernie_net_forward.1} parent=1 // pred_fallthru
      _
    // Predicated region
    $region78: #{ernie_net_forward.1} parent=1 // pred_check
      _
    $region79: #{ernie_net_forward.1} parent=1 // pred_check_branch
      %71 = sbr.rel (0) target = $region81
    $region80: #{ernie_net_forward.1} parent=1 // pred_region
      _
    $region81: #{ernie_net_forward.1} parent=1 // pred_fallthru
      _
    // Predicated region
    $region82: #{ernie_net_forward.1} parent=1 // pred_check
      _
    $region83: #{ernie_net_forward.1} parent=1 // pred_check_branch
      %73 = sbr.rel (0) target = $region85
    $region84: #{ernie_net_forward.1} parent=1 // pred_region
      _
    $region85: #{ernie_net_forward.1} parent=1 // pred_fallthru
      _
    // Predicated region
    $region86: #{ernie_net_forward.1} parent=1 // pred_check
      _
    $region87: #{ernie_net_forward.1} parent=1 // pred_check_branch
      %75 = sbr.rel (0) target = $region89
    $region88: #{ernie_net_forward.1} parent=1 // pred_region
      _
    $region89: #{ernie_net_forward.1} parent=1 // pred_fallthru
      _
    // Predicated region
    $region90: #{ernie_net_forward.1} parent=1 // pred_check
      _
    $region91: #{ernie_net_forward.1} parent=1 // pred_check_branch
      %77 = sbr.rel (0) target = $region93
    $region92: #{ernie_net_forward.1} parent=1 // pred_region
      _
    $region93: #{ernie_net_forward.1} parent=1 // pred_fallthru
      _
    // Predicated region
    $region94: #{ernie_net_forward.1} parent=1 // pred_check
      _
    $region95: #{ernie_net_forward.1} parent=1 // pred_check_branch
      %79 = sbr.rel (0) target = $region97
    $region96: #{ernie_net_forward.1} parent=1 // pred_region
      _
    $region97: #{ernie_net_forward.1} parent=1 // pred_fallthru
      _
    // Predicated region
    $region98: #{ernie_net_forward.1} parent=1 // pred_check
      _
    $region99: #{ernie_net_forward.1} parent=1 // pred_check_branch
      %81 = sbr.rel (0) target = $region101
    $region100: #{ernie_net_forward.1} parent=1 // pred_region
      _
    $region101: #{ernie_net_forward.1} parent=1 // pred_fallthru
      _
    // Predicated region
    $region102: #{ernie_net_forward.1} parent=1 // pred_check
      _
    $region103: #{ernie_net_forward.1} parent=1 // pred_check_branch
      %83 = sbr.rel (0) target = $region105
    $region104: #{ernie_net_forward.1} parent=1 // pred_region
      _
    $region105: #{ernie_net_forward.1} parent=1 // pred_fallthru
      _
    %v85 = vld [vmem:[%s2] sm:$0xff]
    %v86 = vld [vmem:[%s2 + $0x8] sm:$0xff]
    %v87 = vld [vmem:[%s1] sm:$0xff]
    %v88 = vld [vmem:[%s1 + $0x8] sm:$0xff]
    %v89 = vpack.c.bf16 %v88, %v87
    %v90 = vld [vmem:[%s0] sm:$0xff]
    %v91 = vld [vmem:[%s0 + $0x8] sm:$0xff]
    %v92 = vld [vmem:[%s3] sm:$0x1]
    %v93 = vld [vmem:[%s4] sm:$0x1]
    %vm94 = vcmask 261120
    %v95 = vsel %vm94, %v90, 0.0
    %96 = vadd.xlane.f32.xlu0 %v95
    %v97 = vpop.xlane.xlu0 %96
    %v98 = vsel %vm94, %v91, 0.0
    %99 = vadd.xlane.f32.xlu0 %v98
    %v100 = vpop.xlane.xlu0 %99
    %v101 = vrcp.pop 32.0
    %v102 = vmul.f32 32.0, %v101
    %v103 = vsub.f32 1.0, %v102
    %v104 = vmul.f32 %v101, %v103
    %v105 = vadd.f32 %v101, %v104
    %vm106 = vweird.f32 %v101
    %v107 = vsel %vm106, %v101, %v105
    %v108 = vmul.f32 %v97, %v107
    %v109 = vmul.f32 %v100, %v107
    %v110 = vsub.f32 %v90, %v108
    %v111 = vsub.f32 %v91, %v109
    %v112 = vmul.f32 %v110, %v110
    %v113 = vmul.f32 %v111, %v111
    %v114 = vsel %vm94, %v112, 0.0
    %115 = vadd.xlane.f32.xlu0 %v114
    %v116 = vpop.xlane.xlu0 %115
    %v117 = vsel %vm94, %v113, 0.0
    %118 = vadd.xlane.f32.xlu0 %v117
    %v119 = vpop.xlane.xlu0 %118
    %v120 = vmul.f32 %v116, %v107
    %v121 = vmul.f32 %v119, %v107
    %v122 = vadd.f32 %v120, 1e-12
    %v123 = vadd.f32 %v121, 1e-12
    %v124 = vrsqrt.pop %v122
    %v125 = vmul.f32 %v124, %v122
    %v126 = vmul.f32 %v125, %v124
    %v127 = vmul.f32 0.5, %v126
    %v128 = vsub.f32 1.5, %v127
    %v129 = vmul.f32 %v124, %v128
    %vm130 = vweird.f32 %v122
    %vm131 = vweird.f32 %v124
    %vm132 = vmor %vm130, %vm131
    %v133 = vsel %vm132, %v124, %v129
    %v134 = vrsqrt.pop %v123
    %v135 = vmul.f32 %v134, %v123
    %v136 = vmul.f32 %v135, %v134
    %v137 = vmul.f32 0.5, %v136
    %v138 = vsub.f32 1.5, %v137
    %v139 = vmul.f32 %v134, %v138
    %vm140 = vweird.f32 %v123
    %vm141 = vweird.f32 %v134
    %vm142 = vmor %vm140, %vm141
    %v143 = vsel %vm142, %v134, %v139
    %v144 = vmul.f32 %v110, %v133
    %v145 = vmul.f32 %v111, %v143
    %v147 = vperm.slane %v92, 0
    %v149 = vmul.f32 %v144, %v147
    %v150 = vmul.f32 %v145, %v147
    %v152 = vperm.slane %v93, 0
    %v154 = vadd.f32 %v149, %v152
    %v155 = vadd.f32 %v150, %v152
    %v156 = vld [vmem:[%s5] sm:$0xf]
    %v157 = vld [vmem:[%s5 + $0x4] sm:$0xf]
    %v158 = vld [vmem:[%s5 + $0x8] sm:$0xf]
    %v159 = vld [vmem:[%s5 + $0xc] sm:$0xf]
    %v160 = vpack.c.bf16 %v155, %v154
    %v161 = vld [vmem:[%s6] sm:$0x1]
    %v163 = vperm.slane %v161, 0
    %v169 = vunpack.c.l.b16 %v156
    %v170 = vunpack.c.l.b16 %v157
    %v171 = vunpack.c.l.b16 %v158
    %v172 = vunpack.c.l.b16 %v159
    %v173 = vpack.c.b16 %v170, %v169
    %v174 = vpack.c.b16 %v172, %v171
    %v178 = vsel %vm94, %v160, 0
    %180 = vmatpush.bf16.msra.mxu0 0
    %181 = vmatpush.bf16.msra.mxu0 0
    %182 = vmatpush.bf16.msra.mxu0 0
    %183 = vmatpush.bf16.msra.mxu0 0
    %184 = vmatpush.bf16.msra.mxu0 0
    %185 = vmatpush.bf16.msra.mxu0 0
    %186 = vmatpush.bf16.msra.mxu0 %v174
    %187 = vmatpush.bf16.msra.mxu0 %v173
    %188 = vmatmul.bf16.gmra.mxu0 %v178
    %v189 = vpop.f32.mrf.mxu0
    %v190 = vadd.f32 %v163, %v189
    %v191 = vpop.f32.mrf.mxu0
    %v192 = vadd.f32 %v163, %v191
    %193 = vdwg.mxu0
    %v194 = vld [vmem:[%s7] sm:$0xf]
    %v195 = vld [vmem:[%s7 + $0x4] sm:$0xf]
    %v196 = vld [vmem:[%s7 + $0x8] sm:$0xf]
    %v197 = vld [vmem:[%s7 + $0xc] sm:$0xf]
    %200 = vrot.lane.b32.xlu0 %v190, 96
    %v201 = vpop.permute.xlu0 %200
    %202 = vrot.lane.b32.xlu0 %v192, 96
    %v203 = vpop.permute.xlu0 %202
    %206 = vxpose.xlu0.b32.start [1/16] %v201, 128
    %207 = vxpose.xlu0.b32.cont [2/16] %v203, 128
    %208 = vxpose.xlu0.b32.cont [3/16] 0.0, 128
    %209 = vxpose.xlu0.b32.cont [4/16] 0.0, 128
    %210 = vxpose.xlu0.b32.cont [5/16] 0.0, 128
    %211 = vxpose.xlu0.b32.cont [6/16] 0.0, 128
    %212 = vxpose.xlu0.b32.cont [7/16] 0.0, 128
    %213 = vxpose.xlu0.b32.cont [8/16] 0.0, 128
    %214 = vxpose.xlu0.b32.cont [9/16] 0.0, 128
    %215 = vxpose.xlu0.b32.cont [10/16] 0.0, 128
    %216 = vxpose.xlu0.b32.cont [11/16] 0.0, 128
    %217 = vxpose.xlu0.b32.cont [12/16] 0.0, 128
    %218 = vxpose.xlu0.b32.cont [13/16] 0.0, 128
    %219 = vxpose.xlu0.b32.cont [14/16] 0.0, 128
    %220 = vxpose.xlu0.b32.cont [15/16] 0.0, 128
    %221 = vxpose.xlu0.b32.end [16/16] 0.0, 128
    %v222 = vpop.trf.xlu0
    %v223 = vpop.trf.xlu0
    %v224 = vpop.trf.xlu0
    %v225 = vpop.trf.xlu0
    %v226 = vpop.trf.xlu0
    %v227 = vpop.trf.xlu0
    %v228 = vpop.trf.xlu0
    %v229 = vpop.trf.xlu0
    %v230 = vpop.trf.xlu0
    %v231 = vpop.trf.xlu0
    %v232 = vpop.trf.xlu0
    %v233 = vpop.trf.xlu0
    %v234 = vpop.trf.xlu0
    %v235 = vpop.trf.xlu0
    %v236 = vpop.trf.xlu0
    %v237 = vpop.trf.xlu0
    %v238 = vpack.c.bf16 %v192, %v190
    %v239 = vpack.c.bf16 %v222, %v222
    %vm240 = vcmask 64512
    %v242 = vsel %vm240, %v238, 0
    %vm244 = vcmask 1043456
    %v246 = vsel %vm244, %v239, 0
    %248 = vmatpush.bf16.msra.mxu0 0
    %249 = vmatpush.bf16.msra.mxu0 0
    %250 = vmatpush.bf16.msra.mxu0 0
    %251 = vmatpush.bf16.msra.mxu0 0
    %252 = vmatpush.bf16.msra.mxu0 0
    %253 = vmatpush.bf16.msra.mxu0 0
    %254 = vmatpush.bf16.msra.mxu0 0
    %255 = vmatpush.bf16.msra.mxu0 %v246
    %256 = vmatmul.bf16.gmra.mxu0 %v242
    %v257 = vpop.f32.mrf.mxu0
    %v258 = vadd.f32 0.0, %v257
    %v259 = vpop.f32.mrf.mxu0
    %v260 = vadd.f32 0.0, %v259
    %261 = vdwg.mxu0
    %v262 = vmul.f32 %v258, 0.35355338
    %v263 = vmul.f32 %v260, 0.35355338
    %v264 = vadd.f32 %v262, %v85
    %v265 = vadd.f32 %v263, %v86
    %vm266 = vcmask 130048
    %v267 = vsel %vm266, %v264, -inf
    %268 = vmax.xlane.f32.xlu0 %v267
    %v269 = vpop.xlane.xlu0 %268
    %v270 = vsel %vm266, %v265, -inf
    %271 = vmax.xlane.f32.xlu0 %v270
    %v272 = vpop.xlane.xlu0 %271
    %v273 = vsub.f32 %v264, %v269
    %v274 = vsub.f32 %v265, %v272
    %v275 = vmul.f32 %v273, 1.442695
    %v276 = vpow.pop %v275
    %v277 = vmul.f32 %v274, 1.442695
    %v278 = vpow.pop %v277
    %v279 = vsel %vm266, %v276, 0.0
    %280 = vadd.xlane.f32.xlu0 %v279
    %v281 = vpop.xlane.xlu0 %280
    %v282 = vsel %vm266, %v278, 0.0
    %283 = vadd.xlane.f32.xlu0 %v282
    %v284 = vpop.xlane.xlu0 %283
    %v285 = vrcp.pop %v281
    %v286 = vrcp.pop %v284
    %v287 = vmul.f32 %v276, %v285
    %v288 = vmul.f32 %v278, %v286
    %v289 = vpack.c.bf16 %v288, %v287
    %291 = vrot.lane.b32.xlu0 %v238, 64
    %v292 = vpop.permute.xlu0 %291
    %v295 = vsel %vm266, %v289, 0
    %297 = vmatpush.bf16.msra.mxu0 0
    %298 = vmatpush.bf16.msra.mxu0 0
    %299 = vmatpush.bf16.msra.mxu0 0
    %300 = vmatpush.bf16.msra.mxu0 0
    %301 = vmatpush.bf16.msra.mxu0 0
    %302 = vmatpush.bf16.msra.mxu0 0
    %303 = vmatpush.bf16.msra.mxu0 0
    %304 = vmatpush.bf16.msra.mxu0 %v292
    %305 = vmatmul.bf16.gmra.mxu0 %v295
    %v306 = vpop.f32.mrf.mxu0
    %v307 = vadd.f32 0.0, %v306
    %v308 = vpop.f32.mrf.mxu0
    %v309 = vadd.f32 0.0, %v308
    %310 = vdwg.mxu0
    %v311 = vpack.c.bf16 %v309, %v307
    %312 = vrot.lane.b32.xlu0 %v190, 88
    %v313 = vpop.permute.xlu0 %312
    %314 = vrot.lane.b32.xlu0 %v192, 88
    %v315 = vpop.permute.xlu0 %314
    %318 = vxpose.xlu0.b32.start [1/16] %v313, 128
    %319 = vxpose.xlu0.b32.cont [2/16] %v315, 128
    %320 = vxpose.xlu0.b32.cont [3/16] 0.0, 128
    %321 = vxpose.xlu0.b32.cont [4/16] 0.0, 128
    %322 = vxpose.xlu0.b32.cont [5/16] 0.0, 128
    %323 = vxpose.xlu0.b32.cont [6/16] 0.0, 128
    %324 = vxpose.xlu0.b32.cont [7/16] 0.0, 128
    %325 = vxpose.xlu0.b32.cont [8/16] 0.0, 128
    %326 = vxpose.xlu0.b32.cont [9/16] 0.0, 128
    %327 = vxpose.xlu0.b32.cont [10/16] 0.0, 128
    %328 = vxpose.xlu0.b32.cont [11/16] 0.0, 128
    %329 = vxpose.xlu0.b32.cont [12/16] 0.0, 128
    %330 = vxpose.xlu0.b32.cont [13/16] 0.0, 128
    %331 = vxpose.xlu0.b32.cont [14/16] 0.0, 128
    %332 = vxpose.xlu0.b32.cont [15/16] 0.0, 128
    %333 = vxpose.xlu0.b32.end [16/16] 0.0, 128
    %v334 = vpop.trf.xlu0
    %v335 = vpop.trf.xlu0
    %v336 = vpop.trf.xlu0
    %v337 = vpop.trf.xlu0
    %v338 = vpop.trf.xlu0
    %v339 = vpop.trf.xlu0
    %v340 = vpop.trf.xlu0
    %v341 = vpop.trf.xlu0
    %v342 = vpop.trf.xlu0
    %v343 = vpop.trf.xlu0
    %v344 = vpop.trf.xlu0
    %v345 = vpop.trf.xlu0
    %v346 = vpop.trf.xlu0
    %v347 = vpop.trf.xlu0
    %v348 = vpop.trf.xlu0
    %v349 = vpop.trf.xlu0
    %v350 = vpack.c.bf16 %v334, %v334
    %351 = vrot.lane.b32.xlu0 %v238, 120
    %v352 = vpop.permute.xlu0 %351
    %v354 = vsel %vm240, %v352, 0
    %v357 = vsel %vm244, %v350, 0
    %359 = vmatpush.bf16.msra.mxu0 0
    %360 = vmatpush.bf16.msra.mxu0 0
    %361 = vmatpush.bf16.msra.mxu0 0
    %362 = vmatpush.bf16.msra.mxu0 0
    %363 = vmatpush.bf16.msra.mxu0 0
    %364 = vmatpush.bf16.msra.mxu0 0
    %365 = vmatpush.bf16.msra.mxu0 0
    %366 = vmatpush.bf16.msra.mxu0 %v357
    %367 = vmatmul.bf16.gmra.mxu0 %v354
    %v368 = vpop.f32.mrf.mxu0
    %v369 = vadd.f32 0.0, %v368
    %v370 = vpop.f32.mrf.mxu0
    %v371 = vadd.f32 0.0, %v370
    %372 = vdwg.mxu0
    %v373 = vmul.f32 %v369, 0.35355338
    %v374 = vmul.f32 %v371, 0.35355338
    %v375 = vadd.f32 %v373, %v85
    %v376 = vadd.f32 %v374, %v86
    %v377 = vsel %vm266, %v375, -inf
    %378 = vmax.xlane.f32.xlu0 %v377
    %v379 = vpop.xlane.xlu0 %378
    %v380 = vsel %vm266, %v376, -inf
    %381 = vmax.xlane.f32.xlu0 %v380
    %v382 = vpop.xlane.xlu0 %381
    %v383 = vsub.f32 %v375, %v379
    %v384 = vsub.f32 %v376, %v382
    %v385 = vmul.f32 %v383, 1.442695
    %v386 = vpow.pop %v385
    %v387 = vmul.f32 %v384, 1.442695
    %v388 = vpow.pop %v387
    %v389 = vsel %vm266, %v386, 0.0
    %390 = vadd.xlane.f32.xlu0 %v389
    %v391 = vpop.xlane.xlu0 %390
    %v392 = vsel %vm266, %v388, 0.0
    %393 = vadd.xlane.f32.xlu0 %v392
    %v394 = vpop.xlane.xlu0 %393
    %v395 = vrcp.pop %v391
    %v396 = vrcp.pop %v394
    %v397 = vmul.f32 %v386, %v395
    %v398 = vmul.f32 %v388, %v396
    %v399 = vpack.c.bf16 %v398, %v397
    %400 = vrot.lane.b32.xlu0 %v238, 56
    %v401 = vpop.permute.xlu0 %400
    %v404 = vsel %vm266, %v399, 0
    %406 = vmatpush.bf16.msra.mxu0 0
    %407 = vmatpush.bf16.msra.mxu0 0
    %408 = vmatpush.bf16.msra.mxu0 0
    %409 = vmatpush.bf16.msra.mxu0 0
    %410 = vmatpush.bf16.msra.mxu0 0
    %411 = vmatpush.bf16.msra.mxu0 0
    %412 = vmatpush.bf16.msra.mxu0 0
    %413 = vmatpush.bf16.msra.mxu0 %v401
    %414 = vmatmul.bf16.gmra.mxu0 %v404
    %v415 = vpop.f32.mrf.mxu0
    %v416 = vadd.f32 0.0, %v415
    %v417 = vpop.f32.mrf.mxu0
    %v418 = vadd.f32 0.0, %v417
    %419 = vdwg.mxu0
    %v420 = vpack.c.bf16 %v418, %v416
    %v422 = vsel %vm240, %v420, 0
    %v425 = vsel %vm244, %v195, 0
    %427 = vmatpush.bf16.msra.mxu0 0
    %428 = vmatpush.bf16.msra.mxu0 0
    %429 = vmatpush.bf16.msra.mxu0 0
    %430 = vmatpush.bf16.msra.mxu0 0
    %431 = vmatpush.bf16.msra.mxu0 0
    %432 = vmatpush.bf16.msra.mxu0 0
    %433 = vmatpush.bf16.msra.mxu0 0
    %434 = vmatpush.bf16.msra.mxu0 %v425
    %435 = vmatmul.bf16.gmra.mxu0 %v422
    %v436 = vpop.f32.mrf.mxu0
    %v437 = vadd.f32 0.0, %v436
    %v438 = vpop.f32.mrf.mxu0
    %v439 = vadd.f32 0.0, %v438
    %440 = vdwg.mxu0
    %v442 = vsel %vm240, %v311, 0
    %v445 = vsel %vm244, %v194, 0
    %447 = vmatpush.bf16.msra.mxu0 0
    %448 = vmatpush.bf16.msra.mxu0 0
    %449 = vmatpush.bf16.msra.mxu0 0
    %450 = vmatpush.bf16.msra.mxu0 0
    %451 = vmatpush.bf16.msra.mxu0 0
    %452 = vmatpush.bf16.msra.mxu0 0
    %453 = vmatpush.bf16.msra.mxu0 0
    %454 = vmatpush.bf16.msra.mxu0 %v445
    %455 = vmatmul.bf16.gmra.mxu0 %v442
    %v456 = vpop.f32.mrf.mxu0
    %v457 = vadd.f32 %v437, %v456
    %v458 = vpop.f32.mrf.mxu0
    %v459 = vadd.f32 %v439, %v458
    %460 = vdwg.mxu0
    %461 = vrot.lane.b32.xlu0 %v190, 80
    %v462 = vpop.permute.xlu0 %461
    %463 = vrot.lane.b32.xlu0 %v192, 80
    %v464 = vpop.permute.xlu0 %463
    %467 = vxpose.xlu0.b32.start [1/16] %v462, 128
    %468 = vxpose.xlu0.b32.cont [2/16] %v464, 128
    %469 = vxpose.xlu0.b32.cont [3/16] 0.0, 128
    %470 = vxpose.xlu0.b32.cont [4/16] 0.0, 128
    %471 = vxpose.xlu0.b32.cont [5/16] 0.0, 128
    %472 = vxpose.xlu0.b32.cont [6/16] 0.0, 128
    %473 = vxpose.xlu0.b32.cont [7/16] 0.0, 128
    %474 = vxpose.xlu0.b32.cont [8/16] 0.0, 128
    %475 = vxpose.xlu0.b32.cont [9/16] 0.0, 128
    %476 = vxpose.xlu0.b32.cont [10/16] 0.0, 128
    %477 = vxpose.xlu0.b32.cont [11/16] 0.0, 128
    %478 = vxpose.xlu0.b32.cont [12/16] 0.0, 128
    %479 = vxpose.xlu0.b32.cont [13/16] 0.0, 128
    %480 = vxpose.xlu0.b32.cont [14/16] 0.0, 128
    %481 = vxpose.xlu0.b32.cont [15/16] 0.0, 128
    %482 = vxpose.xlu0.b32.end [16/16] 0.0, 128
    %v483 = vpop.trf.xlu0
    %v484 = vpop.trf.xlu0
    %v485 = vpop.trf.xlu0
    %v486 = vpop.trf.xlu0
    %v487 = vpop.trf.xlu0
    %v488 = vpop.trf.xlu0
    %v489 = vpop.trf.xlu0
    %v490 = vpop.trf.xlu0
    %v491 = vpop.trf.xlu0
    %v492 = vpop.trf.xlu0
    %v493 = vpop.trf.xlu0
    %v494 = vpop.trf.xlu0
    %v495 = vpop.trf.xlu0
    %v496 = vpop.trf.xlu0
    %v497 = vpop.trf.xlu0
    %v498 = vpop.trf.xlu0
    %v499 = vpack.c.bf16 %v483, %v483
    %500 = vrot.lane.b32.xlu0 %v238, 112
    %v501 = vpop.permute.xlu0 %500
    %v503 = vsel %vm240, %v501, 0
    %v506 = vsel %vm244, %v499, 0
    %508 = vmatpush.bf16.msra.mxu0 0
    %509 = vmatpush.bf16.msra.mxu0 0
    %510 = vmatpush.bf16.msra.mxu0 0
    %511 = vmatpush.bf16.msra.mxu0 0
    %512 = vmatpush.bf16.msra.mxu0 0
    %513 = vmatpush.bf16.msra.mxu0 0
    %514 = vmatpush.bf16.msra.mxu0 0
    %515 = vmatpush.bf16.msra.mxu0 %v506
    %516 = vmatmul.bf16.gmra.mxu0 %v503
    %v517 = vpop.f32.mrf.mxu0
    %v518 = vadd.f32 0.0, %v517
    %v519 = vpop.f32.mrf.mxu0
    %v520 = vadd.f32 0.0, %v519
    %521 = vdwg.mxu0
    %v522 = vmul.f32 %v518, 0.35355338
    %v523 = vmul.f32 %v520, 0.35355338
    %v524 = vadd.f32 %v522, %v85
    %v525 = vadd.f32 %v523, %v86
    %v526 = vsel %vm266, %v524, -inf
    %527 = vmax.xlane.f32.xlu0 %v526
    %v528 = vpop.xlane.xlu0 %527
    %v529 = vsel %vm266, %v525, -inf
    %530 = vmax.xlane.f32.xlu0 %v529
    %v531 = vpop.xlane.xlu0 %530
    %v532 = vsub.f32 %v524, %v528
    %v533 = vsub.f32 %v525, %v531
    %v534 = vmul.f32 %v532, 1.442695
    %v535 = vpow.pop %v534
    %v536 = vmul.f32 %v533, 1.442695
    %v537 = vpow.pop %v536
    %v538 = vsel %vm266, %v535, 0.0
    %539 = vadd.xlane.f32.xlu0 %v538
    %v540 = vpop.xlane.xlu0 %539
    %v541 = vsel %vm266, %v537, 0.0
    %542 = vadd.xlane.f32.xlu0 %v541
    %v543 = vpop.xlane.xlu0 %542
    %v544 = vrcp.pop %v540
    %v545 = vrcp.pop %v543
    %v546 = vmul.f32 %v535, %v544
    %v547 = vmul.f32 %v537, %v545
    %v548 = vpack.c.bf16 %v547, %v546
    %549 = vrot.lane.b32.xlu0 %v238, 48
    %v550 = vpop.permute.xlu0 %549
    %v553 = vsel %vm266, %v548, 0
    %555 = vmatpush.bf16.msra.mxu0 0
    %556 = vmatpush.bf16.msra.mxu0 0
    %557 = vmatpush.bf16.msra.mxu0 0
    %558 = vmatpush.bf16.msra.mxu0 0
    %559 = vmatpush.bf16.msra.mxu0 0
    %560 = vmatpush.bf16.msra.mxu0 0
    %561 = vmatpush.bf16.msra.mxu0 0
    %562 = vmatpush.bf16.msra.mxu0 %v550
    %563 = vmatmul.bf16.gmra.mxu0 %v553
    %v564 = vpop.f32.mrf.mxu0
    %v565 = vadd.f32 0.0, %v564
    %v566 = vpop.f32.mrf.mxu0
    %v567 = vadd.f32 0.0, %v566
    %568 = vdwg.mxu0
    %v569 = vpack.c.bf16 %v567, %v565
    %v571 = vsel %vm240, %v569, 0
    %v574 = vsel %vm244, %v196, 0
    %576 = vmatpush.bf16.msra.mxu0 0
    %577 = vmatpush.bf16.msra.mxu0 0
    %578 = vmatpush.bf16.msra.mxu0 0
    %579 = vmatpush.bf16.msra.mxu0 0
    %580 = vmatpush.bf16.msra.mxu0 0
    %581 = vmatpush.bf16.msra.mxu0 0
    %582 = vmatpush.bf16.msra.mxu0 0
    %583 = vmatpush.bf16.msra.mxu0 %v574
    %584 = vmatmul.bf16.gmra.mxu0 %v571
    %v585 = vpop.f32.mrf.mxu0
    %v586 = vadd.f32 0.0, %v585
    %v587 = vpop.f32.mrf.mxu0
    %v588 = vadd.f32 0.0, %v587
    %589 = vdwg.mxu0
    %v590 = vadd.f32 %v457, %v586
    %v591 = vadd.f32 %v459, %v588
    %592 = vrot.lane.b32.xlu0 %v190, 72
    %v593 = vpop.permute.xlu0 %592
    %594 = vrot.lane.b32.xlu0 %v192, 72
    %v595 = vpop.permute.xlu0 %594
    %598 = vxpose.xlu0.b32.start [1/16] %v593, 128
    %599 = vxpose.xlu0.b32.cont [2/16] %v595, 128
    %600 = vxpose.xlu0.b32.cont [3/16] 0.0, 128
    %601 = vxpose.xlu0.b32.cont [4/16] 0.0, 128
    %602 = vxpose.xlu0.b32.cont [5/16] 0.0, 128
    %603 = vxpose.xlu0.b32.cont [6/16] 0.0, 128
    %604 = vxpose.xlu0.b32.cont [7/16] 0.0, 128
    %605 = vxpose.xlu0.b32.cont [8/16] 0.0, 128
    %606 = vxpose.xlu0.b32.cont [9/16] 0.0, 128
    %607 = vxpose.xlu0.b32.cont [10/16] 0.0, 128
    %608 = vxpose.xlu0.b32.cont [11/16] 0.0, 128
    %609 = vxpose.xlu0.b32.cont [12/16] 0.0, 128
    %610 = vxpose.xlu0.b32.cont [13/16] 0.0, 128
    %611 = vxpose.xlu0.b32.cont [14/16] 0.0, 128
    %612 = vxpose.xlu0.b32.cont [15/16] 0.0, 128
    %613 = vxpose.xlu0.b32.end [16/16] 0.0, 128
    %v614 = vpop.trf.xlu0
    %v615 = vpop.trf.xlu0
    %v616 = vpop.trf.xlu0
    %v617 = vpop.trf.xlu0
    %v618 = vpop.trf.xlu0
    %v619 = vpop.trf.xlu0
    %v620 = vpop.trf.xlu0
    %v621 = vpop.trf.xlu0
    %v622 = vpop.trf.xlu0
    %v623 = vpop.trf.xlu0
    %v624 = vpop.trf.xlu0
    %v625 = vpop.trf.xlu0
    %v626 = vpop.trf.xlu0
    %v627 = vpop.trf.xlu0
    %v628 = vpop.trf.xlu0
    %v629 = vpop.trf.xlu0
    %v630 = vpack.c.bf16 %v614, %v614
    %631 = vrot.lane.b32.xlu0 %v238, 104
    %v632 = vpop.permute.xlu0 %631
    %v634 = vsel %vm240, %v632, 0
    %v637 = vsel %vm244, %v630, 0
    %639 = vmatpush.bf16.msra.mxu0 0
    %640 = vmatpush.bf16.msra.mxu0 0
    %641 = vmatpush.bf16.msra.mxu0 0
    %642 = vmatpush.bf16.msra.mxu0 0
    %643 = vmatpush.bf16.msra.mxu0 0
    %644 = vmatpush.bf16.msra.mxu0 0
    %645 = vmatpush.bf16.msra.mxu0 0
    %646 = vmatpush.bf16.msra.mxu0 %v637
    %647 = vmatmul.bf16.gmra.mxu0 %v634
    %v648 = vpop.f32.mrf.mxu0
    %v649 = vadd.f32 0.0, %v648
    %v650 = vpop.f32.mrf.mxu0
    %v651 = vadd.f32 0.0, %v650
    %652 = vdwg.mxu0
    %v653 = vmul.f32 %v649, 0.35355338
    %v654 = vmul.f32 %v651, 0.35355338
    %v655 = vadd.f32 %v653, %v85
    %v656 = vadd.f32 %v654, %v86
    %v657 = vsel %vm266, %v655, -inf
    %658 = vmax.xlane.f32.xlu0 %v657
    %v659 = vpop.xlane.xlu0 %658
    %v660 = vsel %vm266, %v656, -inf
    %661 = vmax.xlane.f32.xlu0 %v660
    %v662 = vpop.xlane.xlu0 %661
    %v663 = vsub.f32 %v655, %v659
    %v664 = vsub.f32 %v656, %v662
    %v665 = vmul.f32 %v663, 1.442695
    %v666 = vpow.pop %v665
    %v667 = vmul.f32 %v664, 1.442695
    %v668 = vpow.pop %v667
    %v669 = vsel %vm266, %v666, 0.0
    %670 = vadd.xlane.f32.xlu0 %v669
    %v671 = vpop.xlane.xlu0 %670
    %v672 = vsel %vm266, %v668, 0.0
    %673 = vadd.xlane.f32.xlu0 %v672
    %v674 = vpop.xlane.xlu0 %673
    %v675 = vrcp.pop %v671
    %v676 = vrcp.pop %v674
    %v677 = vmul.f32 %v666, %v675
    %v678 = vmul.f32 %v668, %v676
    %v679 = vpack.c.bf16 %v678, %v677
    %680 = vrot.lane.b32.xlu0 %v238, 40
    %v681 = vpop.permute.xlu0 %680
    %v684 = vsel %vm266, %v679, 0
    %686 = vmatpush.bf16.msra.mxu0 0
    %687 = vmatpush.bf16.msra.mxu0 0
    %688 = vmatpush.bf16.msra.mxu0 0
    %689 = vmatpush.bf16.msra.mxu0 0
    %690 = vmatpush.bf16.msra.mxu0 0
    %691 = vmatpush.bf16.msra.mxu0 0
    %692 = vmatpush.bf16.msra.mxu0 0
    %693 = vmatpush.bf16.msra.mxu0 %v681
    %694 = vmatmul.bf16.gmra.mxu0 %v684
    %v695 = vpop.f32.mrf.mxu0
    %v696 = vadd.f32 0.0, %v695
    %v697 = vpop.f32.mrf.mxu0
    %v698 = vadd.f32 0.0, %v697
    %699 = vdwg.mxu0
    %v700 = vpack.c.bf16 %v698, %v696
    %v702 = vsel %vm240, %v700, 0
    %v705 = vsel %vm244, %v197, 0
    %707 = vmatpush.bf16.msra.mxu0 0
    %708 = vmatpush.bf16.msra.mxu0 0
    %709 = vmatpush.bf16.msra.mxu0 0
    %710 = vmatpush.bf16.msra.mxu0 0
    %711 = vmatpush.bf16.msra.mxu0 0
    %712 = vmatpush.bf16.msra.mxu0 0
    %713 = vmatpush.bf16.msra.mxu0 0
    %714 = vmatpush.bf16.msra.mxu0 %v705
    %715 = vmatmul.bf16.gmra.mxu0 %v702
    %v716 = vpop.f32.mrf.mxu0
    %v717 = vadd.f32 0.0, %v716
    %v718 = vpop.f32.mrf.mxu0
    %v719 = vadd.f32 0.0, %v718
    %720 = vdwg.mxu0
    %v721 = vadd.f32 %v590, %v717
    %v722 = vadd.f32 %v591, %v719
    %v723 = vld [vmem:[%s8] sm:$0x1]
    %v725 = vperm.slane %v723, 0
    %v727 = vadd.f32 %v721, %v725
    %v728 = vadd.f32 %v722, %v725
    %v729 = vadd.f32 %v727, %v154
    %v730 = vadd.f32 %v728, %v155
    %v731 = vld [vmem:[%s9] sm:$0x1]
    %v732 = vld [vmem:[%s10] sm:$0x1]
    %v733 = vsel %vm94, %v729, 0.0
    %734 = vadd.xlane.f32.xlu0 %v733
    %v735 = vpop.xlane.xlu0 %734
    %v736 = vsel %vm94, %v730, 0.0
    %737 = vadd.xlane.f32.xlu0 %v736
    %v738 = vpop.xlane.xlu0 %737
    %v739 = vmul.f32 %v735, %v107
    %v740 = vmul.f32 %v738, %v107
    %v741 = vsub.f32 %v729, %v739
    %v742 = vsub.f32 %v730, %v740
    %v743 = vmul.f32 %v741, %v741
    %v744 = vmul.f32 %v742, %v742
    %v745 = vsel %vm94, %v743, 0.0
    %746 = vadd.xlane.f32.xlu0 %v745
    %v747 = vpop.xlane.xlu0 %746
    %v748 = vsel %vm94, %v744, 0.0
    %749 = vadd.xlane.f32.xlu0 %v748
    %v750 = vpop.xlane.xlu0 %749
    %v751 = vmul.f32 %v747, %v107
    %v752 = vmul.f32 %v750, %v107
    %v753 = vadd.f32 %v751, 1e-12
    %v754 = vadd.f32 %v752, 1e-12
    %v755 = vrsqrt.pop %v753
    %v756 = vmul.f32 %v755, %v753
    %v757 = vmul.f32 %v756, %v755
    %v758 = vmul.f32 0.5, %v757
    %v759 = vsub.f32 1.5, %v758
    %v760 = vmul.f32 %v755, %v759
    %vm761 = vweird.f32 %v753
    %vm762 = vweird.f32 %v755
    %vm763 = vmor %vm761, %vm762
    %v764 = vsel %vm763, %v755, %v760
    %v765 = vrsqrt.pop %v754
    %v766 = vmul.f32 %v765, %v754
    %v767 = vmul.f32 %v766, %v765
    %v768 = vmul.f32 0.5, %v767
    %v769 = vsub.f32 1.5, %v768
    %v770 = vmul.f32 %v765, %v769
    %vm771 = vweird.f32 %v754
    %vm772 = vweird.f32 %v765
    %vm773 = vmor %vm771, %vm772
    %v774 = vsel %vm773, %v765, %v770
    %v775 = vmul.f32 %v741, %v764
    %v776 = vmul.f32 %v742, %v774
    %v778 = vperm.slane %v731, 0
    %v780 = vmul.f32 %v775, %v778
    %v781 = vmul.f32 %v776, %v778
    %v783 = vperm.slane %v732, 0
    %v785 = vadd.f32 %v780, %v783
    %v786 = vadd.f32 %v781, %v783
    %v787 = vld [vmem:[%s11] sm:$0xf]
    %v788 = vld [vmem:[%s11 + $0x4] sm:$0xf]
    %v789 = vld [vmem:[%s11 + $0x8] sm:$0xf]
    %v790 = vld [vmem:[%s11 + $0xc] sm:$0xf]
    %v791 = vpack.c.bf16 %v786, %v785
    %v792 = vld [vmem:[%s12] sm:$0xf]
    %v793 = vld [vmem:[%s12 + $0x4] sm:$0xf]
    %v796 = vunpack.c.l.b16 %v792
    %v797 = vunpack.c.l.b16 %v793
    %v798 = vpack.c.b16 %v797, %v796
    %v801 = vsel %vm266, %v89, 0
    %803 = vmatpush.bf16.msra.mxu0 0
    %804 = vmatpush.bf16.msra.mxu0 0
    %805 = vmatpush.bf16.msra.mxu0 0
    %806 = vmatpush.bf16.msra.mxu0 0
    %807 = vmatpush.bf16.msra.mxu0 0
    %808 = vmatpush.bf16.msra.mxu0 0
    %809 = vmatpush.bf16.msra.mxu0 0
    %810 = vmatpush.bf16.msra.mxu0 %v798
    %811 = vmatmul.bf16.gmra.mxu0 %v801
    %v812 = vpop.f32.mrf.mxu0
    %v813 = vadd.f32 0.0, %v812
    %v814 = vpop.f32.mrf.mxu0
    %v815 = vadd.f32 0.0, %v814
    %816 = vdwg.mxu0
    %v821 = vunpack.c.l.b16 %v787
    %v822 = vunpack.c.l.b16 %v788
    %v823 = vunpack.c.l.b16 %v789
    %v824 = vunpack.c.l.b16 %v790
    %v825 = vpack.c.b16 %v822, %v821
    %v826 = vpack.c.b16 %v824, %v823
    %v830 = vsel %vm94, %v791, 0
    %832 = vmatpush.bf16.msra.mxu0 0
    %833 = vmatpush.bf16.msra.mxu0 0
    %834 = vmatpush.bf16.msra.mxu0 0
    %835 = vmatpush.bf16.msra.mxu0 0
    %836 = vmatpush.bf16.msra.mxu0 0
    %837 = vmatpush.bf16.msra.mxu0 0
    %838 = vmatpush.bf16.msra.mxu0 %v826
    %839 = vmatpush.bf16.msra.mxu0 %v825
    %840 = vmatmul.bf16.gmra.mxu0 %v830
    %v841 = vpop.f32.mrf.mxu0
    %v842 = vadd.f32 %v813, %v841
    %v843 = vpop.f32.mrf.mxu0
    %v844 = vadd.f32 %v815, %v843
    %845 = vdwg.mxu0
    %v846 = vld [vmem:[%s13] sm:$0x1]
    %v848 = vperm.slane %v846, 0
    %v850 = vadd.f32 %v842, %v848
    %v851 = vadd.f32 %v844, %v848
    %v852 = vmul.f32 %v850, %v850
    %v853 = vmul.f32 %v851, %v851
    %v854 = vmul.f32 %v850, %v852
    %v855 = vmul.f32 %v851, %v853
    %v856 = vmul.f32 %v854, 0.044715
    %v857 = vmul.f32 %v855, 0.044715
    %v858 = vadd.f32 %v850, %v856
    %v859 = vadd.f32 %v851, %v857
    %v860 = vmul.f32 %v858, 0.7978846
    %v861 = vmul.f32 %v859, 0.7978846
    %v862 = vtanh.pop %v860
    %v863 = vtanh.pop %v861
    %v864 = vadd.f32 %v862, 1.0
    %v865 = vadd.f32 %v863, 1.0
    %v866 = vmul.f32 %v864, 0.5
    %v867 = vmul.f32 %v865, 0.5
    %v868 = vmul.f32 %v850, %v866
    %v869 = vmul.f32 %v851, %v867
    %v870 = vadd.f32 %v868, %v785
    %v871 = vadd.f32 %v869, %v786
    %v872 = vld [vmem:[%s14] sm:$0x1]
    %v873 = vld [vmem:[%s15] sm:$0x1]
    %v874 = vsel %vm94, %v870, 0.0
    %875 = vadd.xlane.f32.xlu0 %v874
    %v876 = vpop.xlane.xlu0 %875
    %v877 = vsel %vm94, %v871, 0.0
    %878 = vadd.xlane.f32.xlu0 %v877
    %v879 = vpop.xlane.xlu0 %878
    %v880 = vmul.f32 %v876, %v107
    %v881 = vmul.f32 %v879, %v107
    %v882 = vsub.f32 %v870, %v880
    %v883 = vsub.f32 %v871, %v881
    %v884 = vmul.f32 %v882, %v882
    %v885 = vmul.f32 %v883, %v883
    %v886 = vsel %vm94, %v884, 0.0
    %887 = vadd.xlane.f32.xlu0 %v886
    %v888 = vpop.xlane.xlu0 %887
    %v889 = vsel %vm94, %v885, 0.0
    %890 = vadd.xlane.f32.xlu0 %v889
    %v891 = vpop.xlane.xlu0 %890
    %v892 = vmul.f32 %v888, %v107
    %v893 = vmul.f32 %v891, %v107
    %v894 = vadd.f32 %v892, 1e-12
    %v895 = vadd.f32 %v893, 1e-12
    %v896 = vrsqrt.pop %v894
    %v897 = vmul.f32 %v896, %v894
    %v898 = vmul.f32 %v897, %v896
    %v899 = vmul.f32 0.5, %v898
    %v900 = vsub.f32 1.5, %v899
    %v901 = vmul.f32 %v896, %v900
    %vm902 = vweird.f32 %v894
    %vm903 = vweird.f32 %v896
    %vm904 = vmor %vm902, %vm903
    %v905 = vsel %vm904, %v896, %v901
    %v906 = vrsqrt.pop %v895
    %v907 = vmul.f32 %v906, %v895
    %v908 = vmul.f32 %v907, %v906
    %v909 = vmul.f32 0.5, %v908
    %v910 = vsub.f32 1.5, %v909
    %v911 = vmul.f32 %v906, %v910
    %vm912 = vweird.f32 %v895
    %vm913 = vweird.f32 %v906
    %vm914 = vmor %vm912, %vm913
    %v915 = vsel %vm914, %v906, %v911
    %v916 = vmul.f32 %v882, %v905
    %v917 = vmul.f32 %v883, %v915
    %v919 = vperm.slane %v872, 0
    %v921 = vmul.f32 %v916, %v919
    %v922 = vmul.f32 %v917, %v919
    %v924 = vperm.slane %v873, 0
    %v926 = vadd.f32 %v921, %v924
    %v927 = vadd.f32 %v922, %v924
    %v928 = vld [vmem:[%s16] sm:$0xf]
    %v929 = vld [vmem:[%s16 + $0x4] sm:$0xf]
    %v930 = vld [vmem:[%s16 + $0x8] sm:$0xf]
    %v931 = vld [vmem:[%s16 + $0xc] sm:$0xf]
    %v932 = vpack.c.bf16 %v927, %v926
    %v933 = vld [vmem:[%s17] sm:$0x1]
    %v935 = vperm.slane %v933, 0
    %v941 = vunpack.c.l.b16 %v928
    %v942 = vunpack.c.l.b16 %v929
    %v943 = vunpack.c.l.b16 %v930
    %v944 = vunpack.c.l.b16 %v931
    %v945 = vpack.c.b16 %v942, %v941
    %v946 = vpack.c.b16 %v944, %v943
    %v950 = vsel %vm94, %v932, 0
    %952 = vmatpush.bf16.msra.mxu0 0
    %953 = vmatpush.bf16.msra.mxu0 0
    %954 = vmatpush.bf16.msra.mxu0 0
    %955 = vmatpush.bf16.msra.mxu0 0
    %956 = vmatpush.bf16.msra.mxu0 0
    %957 = vmatpush.bf16.msra.mxu0 0
    %958 = vmatpush.bf16.msra.mxu0 %v946
    %959 = vmatpush.bf16.msra.mxu0 %v945
    %960 = vmatmul.bf16.gmra.mxu0 %v950
    %v961 = vpop.f32.mrf.mxu0
    %v962 = vadd.f32 %v935, %v961
    %v963 = vpop.f32.mrf.mxu0
    %v964 = vadd.f32 %v935, %v963
    %965 = vdwg.mxu0
    %v966 = vmul.f32 %v962, %v962
    %v967 = vmul.f32 %v964, %v964
    %v968 = vmul.f32 %v962, %v966
    %v969 = vmul.f32 %v964, %v967
    %v970 = vmul.f32 %v968, 0.044715
    %v971 = vmul.f32 %v969, 0.044715
    %v972 = vadd.f32 %v962, %v970
    %v973 = vadd.f32 %v964, %v971
    %v974 = vmul.f32 %v972, 0.7978846
    %v975 = vmul.f32 %v973, 0.7978846
    %v976 = vtanh.pop %v974
    %v977 = vtanh.pop %v975
    %v978 = vadd.f32 %v976, 1.0
    %v979 = vadd.f32 %v977, 1.0
    %v980 = vmul.f32 %v978, 0.5
    %v981 = vmul.f32 %v979, 0.5
    %v982 = vmul.f32 %v962, %v980
    %v983 = vmul.f32 %v964, %v981
    %v984 = vld [vmem:[%s18] sm:$0xf]
    %v985 = vld [vmem:[%s18 + $0x4] sm:$0xf]
    %v986 = vld [vmem:[%s18 + $0x8] sm:$0xf]
    %v987 = vld [vmem:[%s18 + $0xc] sm:$0xf]
    %v988 = vld [vmem:[%s18 + $0x10] sm:$0xf]
    %v989 = vld [vmem:[%s18 + $0x14] sm:$0xf]
    %v990 = vld [vmem:[%s18 + $0x18] sm:$0xf]
    %v991 = vld [vmem:[%s18 + $0x1c] sm:$0xf]
    %v992 = vpack.c.bf16 %v983, %v982
    %v993 = vld [vmem:[%s19] sm:$0x1]
    %v995 = vperm.slane %v993, 0
    %v1005 = vunpack.c.l.b16 %v984
    %v1006 = vunpack.c.l.b16 %v985
    %v1007 = vunpack.c.l.b16 %v986
    %v1008 = vunpack.c.l.b16 %v987
    %v1009 = vunpack.c.l.b16 %v988
    %v1010 = vunpack.c.l.b16 %v989
    %v1011 = vunpack.c.l.b16 %v990
    %v1012 = vunpack.c.l.b16 %v991
    %v1013 = vpack.c.b16 %v1006, %v1005
    %v1014 = vpack.c.b16 %v1008, %v1007
    %v1015 = vpack.c.b16 %v1010, %v1009
    %v1016 = vpack.c.b16 %v1012, %v1011
    %vm1021 = vcmask 523264
    %v1023 = vsel %vm1021, %v992, 0
    %1025 = vmatpush.bf16.msra.mxu0 0
    %1026 = vmatpush.bf16.msra.mxu0 0
    %1027 = vmatpush.bf16.msra.mxu0 0
    %1028 = vmatpush.bf16.msra.mxu0 0
    %1029 = vmatpush.bf16.msra.mxu0 %v1016
    %1030 = vmatpush.bf16.msra.mxu0 %v1015
    %1031 = vmatpush.bf16.msra.mxu0 %v1014
    %1032 = vmatpush.bf16.msra.mxu0 %v1013
    %1033 = vmatmul.bf16.gmra.mxu0 %v1023
    %v1034 = vpop.f32.mrf.mxu0
    %v1035 = vadd.f32 %v995, %v1034
    %v1036 = vpop.f32.mrf.mxu0
    %v1037 = vadd.f32 %v995, %v1036
    %1038 = vdwg.mxu0
    %v1039 = vadd.f32 %v1035, %v926
    %v1040 = vadd.f32 %v1037, %v927
    %v1041 = vld [vmem:[%s20] sm:$0x1]
    %v1042 = vld [vmem:[%s21] sm:$0x1]
    %v1043 = vsel %vm94, %v1039, 0.0
    %1044 = vadd.xlane.f32.xlu0 %v1043
    %v1045 = vpop.xlane.xlu0 %1044
    %v1046 = vsel %vm94, %v1040, 0.0
    %1047 = vadd.xlane.f32.xlu0 %v1046
    %v1048 = vpop.xlane.xlu0 %1047
    %v1049 = vmul.f32 %v1045, %v107
    %v1050 = vmul.f32 %v1048, %v107
    %v1051 = vsub.f32 %v1039, %v1049
    %v1052 = vsub.f32 %v1040, %v1050
    %v1053 = vmul.f32 %v1051, %v1051
    %v1054 = vmul.f32 %v1052, %v1052
    %v1055 = vsel %vm94, %v1053, 0.0
    %1056 = vadd.xlane.f32.xlu0 %v1055
    %v1057 = vpop.xlane.xlu0 %1056
    %v1058 = vsel %vm94, %v1054, 0.0
    %1059 = vadd.xlane.f32.xlu0 %v1058
    %v1060 = vpop.xlane.xlu0 %1059
    %v1061 = vmul.f32 %v1057, %v107
    %v1062 = vmul.f32 %v1060, %v107
    %v1063 = vadd.f32 %v1061, 1e-12
    %v1064 = vadd.f32 %v1062, 1e-12
    %v1065 = vrsqrt.pop %v1063
    %v1066 = vmul.f32 %v1065, %v1063
    %v1067 = vmul.f32 %v1066, %v1065
    %v1068 = vmul.f32 0.5, %v1067
    %v1069 = vsub.f32 1.5, %v1068
    %v1070 = vmul.f32 %v1065, %v1069
    %vm1071 = vweird.f32 %v1063
    %vm1072 = vweird.f32 %v1065
    %vm1073 = vmor %vm1071, %vm1072
    %v1074 = vsel %vm1073, %v1065, %v1070
    %v1075 = vrsqrt.pop %v1064
    %v1076 = vmul.f32 %v1075, %v1064
    %v1077 = vmul.f32 %v1076, %v1075
    %v1078 = vmul.f32 0.5, %v1077
    %v1079 = vsub.f32 1.5, %v1078
    %v1080 = vmul.f32 %v1075, %v1079
    %vm1081 = vweird.f32 %v1064
    %vm1082 = vweird.f32 %v1075
    %vm1083 = vmor %vm1081, %vm1082
    %v1084 = vsel %vm1083, %v1075, %v1080
    %v1085 = vmul.f32 %v1051, %v1074
    %v1086 = vmul.f32 %v1052, %v1084
    %v1088 = vperm.slane %v1041, 0
    %v1090 = vmul.f32 %v1085, %v1088
    %v1091 = vmul.f32 %v1086, %v1088
    %v1093 = vperm.slane %v1042, 0
    %v1095 = vadd.f32 %v1090, %v1093
    %v1096 = vadd.f32 %v1091, %v1093
    %s1097 = scalar_lea.vmem %s5, 16
    %v1098 = vld [vmem:[%s1097] sm:$0xf]
    %v1099 = vld [vmem:[%s1097 + $0x4] sm:$0xf]
    %v1100 = vld [vmem:[%s1097 + $0x8] sm:$0xf]
    %v1101 = vld [vmem:[%s1097 + $0xc] sm:$0xf]
    %v1102 = vpack.c.bf16 %v1096, %v1095
    %s1103 = scalar_lea.vmem %s6, 1
    %v1104 = vld [vmem:[%s1103] sm:$0x1]
    %v1106 = vperm.slane %v1104, 0
    %v1112 = vunpack.c.l.b16 %v1098
    %v1113 = vunpack.c.l.b16 %v1099
    %v1114 = vunpack.c.l.b16 %v1100
    %v1115 = vunpack.c.l.b16 %v1101
    %v1116 = vpack.c.b16 %v1113, %v1112
    %v1117 = vpack.c.b16 %v1115, %v1114
    %v1121 = vsel %vm94, %v1102, 0
    %1123 = vmatpush.bf16.msra.mxu0 0
    %1124 = vmatpush.bf16.msra.mxu0 0
    %1125 = vmatpush.bf16.msra.mxu0 0
    %1126 = vmatpush.bf16.msra.mxu0 0
    %1127 = vmatpush.bf16.msra.mxu0 0
    %1128 = vmatpush.bf16.msra.mxu0 0
    %1129 = vmatpush.bf16.msra.mxu0 %v1117
    %1130 = vmatpush.bf16.msra.mxu0 %v1116
    %1131 = vmatmul.bf16.gmra.mxu0 %v1121
    %v1132 = vpop.f32.mrf.mxu0
    %v1133 = vadd.f32 %v1106, %v1132
    %v1134 = vpop.f32.mrf.mxu0
    %v1135 = vadd.f32 %v1106, %v1134
    %1136 = vdwg.mxu0
    %s1137 = scalar_lea.vmem %s7, 16
    %v1138 = vld [vmem:[%s1137] sm:$0xf]
    %v1139 = vld [vmem:[%s1137 + $0x4] sm:$0xf]
    %v1140 = vld [vmem:[%s1137 + $0x8] sm:$0xf]
    %v1141 = vld [vmem:[%s1137 + $0xc] sm:$0xf]
    %1144 = vrot.lane.b32.xlu0 %v1133, 96
    %v1145 = vpop.permute.xlu0 %1144
    %1146 = vrot.lane.b32.xlu0 %v1135, 96
    %v1147 = vpop.permute.xlu0 %1146
    %1150 = vxpose.xlu0.b32.start [1/16] %v1145, 128
    %1151 = vxpose.xlu0.b32.cont [2/16] %v1147, 128
    %1152 = vxpose.xlu0.b32.cont [3/16] 0.0, 128
    %1153 = vxpose.xlu0.b32.cont [4/16] 0.0, 128
    %1154 = vxpose.xlu0.b32.cont [5/16] 0.0, 128
    %1155 = vxpose.xlu0.b32.cont [6/16] 0.0, 128
    %1156 = vxpose.xlu0.b32.cont [7/16] 0.0, 128
    %1157 = vxpose.xlu0.b32.cont [8/16] 0.0, 128
    %1158 = vxpose.xlu0.b32.cont [9/16] 0.0, 128
    %1159 = vxpose.xlu0.b32.cont [10/16] 0.0, 128
    %1160 = vxpose.xlu0.b32.cont [11/16] 0.0, 128
    %1161 = vxpose.xlu0.b32.cont [12/16] 0.0, 128
    %1162 = vxpose.xlu0.b32.cont [13/16] 0.0, 128
    %1163 = vxpose.xlu0.b32.cont [14/16] 0.0, 128
    %1164 = vxpose.xlu0.b32.cont [15/16] 0.0, 128
    %1165 = vxpose.xlu0.b32.end [16/16] 0.0, 128
    %v1166 = vpop.trf.xlu0
    %v1167 = vpop.trf.xlu0
    %v1168 = vpop.trf.xlu0
    %v1169 = vpop.trf.xlu0
    %v1170 = vpop.trf.xlu0
    %v1171 = vpop.trf.xlu0
    %v1172 = vpop.trf.xlu0
    %v1173 = vpop.trf.xlu0
    %v1174 = vpop.trf.xlu0
    %v1175 = vpop.trf.xlu0
    %v1176 = vpop.trf.xlu0
    %v1177 = vpop.trf.xlu0
    %v1178 = vpop.trf.xlu0
    %v1179 = vpop.trf.xlu0
    %v1180 = vpop.trf.xlu0
    %v1181 = vpop.trf.xlu0
    %v1182 = vpack.c.bf16 %v1135, %v1133
    %v1183 = vpack.c.bf16 %v1166, %v1166
    %v1185 = vsel %vm240, %v1182, 0
    %v1188 = vsel %vm244, %v1183, 0
    %1190 = vmatpush.bf16.msra.mxu0 0
    %1191 = vmatpush.bf16.msra.mxu0 0
    %1192 = vmatpush.bf16.msra.mxu0 0
    %1193 = vmatpush.bf16.msra.mxu0 0
    %1194 = vmatpush.bf16.msra.mxu0 0
    %1195 = vmatpush.bf16.msra.mxu0 0
    %1196 = vmatpush.bf16.msra.mxu0 0
    %1197 = vmatpush.bf16.msra.mxu0 %v1188
    %1198 = vmatmul.bf16.gmra.mxu0 %v1185
    %v1199 = vpop.f32.mrf.mxu0
    %v1200 = vadd.f32 0.0, %v1199
    %v1201 = vpop.f32.mrf.mxu0
    %v1202 = vadd.f32 0.0, %v1201
    %1203 = vdwg.mxu0
    %v1204 = vmul.f32 %v1200, 0.35355338
    %v1205 = vmul.f32 %v1202, 0.35355338
    %v1206 = vadd.f32 %v1204, %v85
    %v1207 = vadd.f32 %v1205, %v86
    %v1208 = vsel %vm266, %v1206, -inf
    %1209 = vmax.xlane.f32.xlu0 %v1208
    %v1210 = vpop.xlane.xlu0 %1209
    %v1211 = vsel %vm266, %v1207, -inf
    %1212 = vmax.xlane.f32.xlu0 %v1211
    %v1213 = vpop.xlane.xlu0 %1212
    %v1214 = vsub.f32 %v1206, %v1210
    %v1215 = vsub.f32 %v1207, %v1213
    %v1216 = vmul.f32 %v1214, 1.442695
    %v1217 = vpow.pop %v1216
    %v1218 = vmul.f32 %v1215, 1.442695
    %v1219 = vpow.pop %v1218
    %v1220 = vsel %vm266, %v1217, 0.0
    %1221 = vadd.xlane.f32.xlu0 %v1220
    %v1222 = vpop.xlane.xlu0 %1221
    %v1223 = vsel %vm266, %v1219, 0.0
    %1224 = vadd.xlane.f32.xlu0 %v1223
    %v1225 = vpop.xlane.xlu0 %1224
    %v1226 = vrcp.pop %v1222
    %v1227 = vrcp.pop %v1225
    %v1228 = vmul.f32 %v1217, %v1226
    %v1229 = vmul.f32 %v1219, %v1227
    %v1230 = vpack.c.bf16 %v1229, %v1228
    %1232 = vrot.lane.b32.xlu0 %v1182, 64
    %v1233 = vpop.permute.xlu0 %1232
    %v1236 = vsel %vm266, %v1230, 0
    %1238 = vmatpush.bf16.msra.mxu0 0
    %1239 = vmatpush.bf16.msra.mxu0 0
    %1240 = vmatpush.bf16.msra.mxu0 0
    %1241 = vmatpush.bf16.msra.mxu0 0
    %1242 = vmatpush.bf16.msra.mxu0 0
    %1243 = vmatpush.bf16.msra.mxu0 0
    %1244 = vmatpush.bf16.msra.mxu0 0
    %1245 = vmatpush.bf16.msra.mxu0 %v1233
    %1246 = vmatmul.bf16.gmra.mxu0 %v1236
    %v1247 = vpop.f32.mrf.mxu0
    %v1248 = vadd.f32 0.0, %v1247
    %v1249 = vpop.f32.mrf.mxu0
    %v1250 = vadd.f32 0.0, %v1249
    %1251 = vdwg.mxu0
    %v1252 = vpack.c.bf16 %v1250, %v1248
    %1253 = vrot.lane.b32.xlu0 %v1133, 88
    %v1254 = vpop.permute.xlu0 %1253
    %1255 = vrot.lane.b32.xlu0 %v1135, 88
    %v1256 = vpop.permute.xlu0 %1255
    %1259 = vxpose.xlu0.b32.start [1/16] %v1254, 128
    %1260 = vxpose.xlu0.b32.cont [2/16] %v1256, 128
    %1261 = vxpose.xlu0.b32.cont [3/16] 0.0, 128
    %1262 = vxpose.xlu0.b32.cont [4/16] 0.0, 128
    %1263 = vxpose.xlu0.b32.cont [5/16] 0.0, 128
    %1264 = vxpose.xlu0.b32.cont [6/16] 0.0, 128
    %1265 = vxpose.xlu0.b32.cont [7/16] 0.0, 128
    %1266 = vxpose.xlu0.b32.cont [8/16] 0.0, 128
    %1267 = vxpose.xlu0.b32.cont [9/16] 0.0, 128
    %1268 = vxpose.xlu0.b32.cont [10/16] 0.0, 128
    %1269 = vxpose.xlu0.b32.cont [11/16] 0.0, 128
    %1270 = vxpose.xlu0.b32.cont [12/16] 0.0, 128
    %1271 = vxpose.xlu0.b32.cont [13/16] 0.0, 128
    %1272 = vxpose.xlu0.b32.cont [14/16] 0.0, 128
    %1273 = vxpose.xlu0.b32.cont [15/16] 0.0, 128
    %1274 = vxpose.xlu0.b32.end [16/16] 0.0, 128
    %v1275 = vpop.trf.xlu0
    %v1276 = vpop.trf.xlu0
    %v1277 = vpop.trf.xlu0
    %v1278 = vpop.trf.xlu0
    %v1279 = vpop.trf.xlu0
    %v1280 = vpop.trf.xlu0
    %v1281 = vpop.trf.xlu0
    %v1282 = vpop.trf.xlu0
    %v1283 = vpop.trf.xlu0
    %v1284 = vpop.trf.xlu0
    %v1285 = vpop.trf.xlu0
    %v1286 = vpop.trf.xlu0
    %v1287 = vpop.trf.xlu0
    %v1288 = vpop.trf.xlu0
    %v1289 = vpop.trf.xlu0
    %v1290 = vpop.trf.xlu0
    %v1291 = vpack.c.bf16 %v1275, %v1275
    %1292 = vrot.lane.b32.xlu0 %v1182, 120
    %v1293 = vpop.permute.xlu0 %1292
    %v1295 = vsel %vm240, %v1293, 0
    %v1298 = vsel %vm244, %v1291, 0
    %1300 = vmatpush.bf16.msra.mxu0 0
    %1301 = vmatpush.bf16.msra.mxu0 0
    %1302 = vmatpush.bf16.msra.mxu0 0
    %1303 = vmatpush.bf16.msra.mxu0 0
    %1304 = vmatpush.bf16.msra.mxu0 0
    %1305 = vmatpush.bf16.msra.mxu0 0
    %1306 = vmatpush.bf16.msra.mxu0 0
    %1307 = vmatpush.bf16.msra.mxu0 %v1298
    %1308 = vmatmul.bf16.gmra.mxu0 %v1295
    %v1309 = vpop.f32.mrf.mxu0
    %v1310 = vadd.f32 0.0, %v1309
    %v1311 = vpop.f32.mrf.mxu0
    %v1312 = vadd.f32 0.0, %v1311
    %1313 = vdwg.mxu0
    %v1314 = vmul.f32 %v1310, 0.35355338
    %v1315 = vmul.f32 %v1312, 0.35355338
    %v1316 = vadd.f32 %v1314, %v85
    %v1317 = vadd.f32 %v1315, %v86
    %v1318 = vsel %vm266, %v1316, -inf
    %1319 = vmax.xlane.f32.xlu0 %v1318
    %v1320 = vpop.xlane.xlu0 %1319
    %v1321 = vsel %vm266, %v1317, -inf
    %1322 = vmax.xlane.f32.xlu0 %v1321
    %v1323 = vpop.xlane.xlu0 %1322
    %v1324 = vsub.f32 %v1316, %v1320
    %v1325 = vsub.f32 %v1317, %v1323
    %v1326 = vmul.f32 %v1324, 1.442695
    %v1327 = vpow.pop %v1326
    %v1328 = vmul.f32 %v1325, 1.442695
    %v1329 = vpow.pop %v1328
    %v1330 = vsel %vm266, %v1327, 0.0
    %1331 = vadd.xlane.f32.xlu0 %v1330
    %v1332 = vpop.xlane.xlu0 %1331
    %v1333 = vsel %vm266, %v1329, 0.0
    %1334 = vadd.xlane.f32.xlu0 %v1333
    %v1335 = vpop.xlane.xlu0 %1334
    %v1336 = vrcp.pop %v1332
    %v1337 = vrcp.pop %v1335
    %v1338 = vmul.f32 %v1327, %v1336
    %v1339 = vmul.f32 %v1329, %v1337
    %v1340 = vpack.c.bf16 %v1339, %v1338
    %1341 = vrot.lane.b32.xlu0 %v1182, 56
    %v1342 = vpop.permute.xlu0 %1341
    %v1345 = vsel %vm266, %v1340, 0
    %1347 = vmatpush.bf16.msra.mxu0 0
    %1348 = vmatpush.bf16.msra.mxu0 0
    %1349 = vmatpush.bf16.msra.mxu0 0
    %1350 = vmatpush.bf16.msra.mxu0 0
    %1351 = vmatpush.bf16.msra.mxu0 0
    %1352 = vmatpush.bf16.msra.mxu0 0
    %1353 = vmatpush.bf16.msra.mxu0 0
    %1354 = vmatpush.bf16.msra.mxu0 %v1342
    %1355 = vmatmul.bf16.gmra.mxu0 %v1345
    %v1356 = vpop.f32.mrf.mxu0
    %v1357 = vadd.f32 0.0, %v1356
    %v1358 = vpop.f32.mrf.mxu0
    %v1359 = vadd.f32 0.0, %v1358
    %1360 = vdwg.mxu0
    %v1361 = vpack.c.bf16 %v1359, %v1357
    %v1363 = vsel %vm240, %v1361, 0
    %v1366 = vsel %vm244, %v1139, 0
    %1368 = vmatpush.bf16.msra.mxu0 0
    %1369 = vmatpush.bf16.msra.mxu0 0
    %1370 = vmatpush.bf16.msra.mxu0 0
    %1371 = vmatpush.bf16.msra.mxu0 0
    %1372 = vmatpush.bf16.msra.mxu0 0
    %1373 = vmatpush.bf16.msra.mxu0 0
    %1374 = vmatpush.bf16.msra.mxu0 0
    %1375 = vmatpush.bf16.msra.mxu0 %v1366
    %1376 = vmatmul.bf16.gmra.mxu0 %v1363
    %v1377 = vpop.f32.mrf.mxu0
    %v1378 = vadd.f32 0.0, %v1377
    %v1379 = vpop.f32.mrf.mxu0
    %v1380 = vadd.f32 0.0, %v1379
    %1381 = vdwg.mxu0
    %v1383 = vsel %vm240, %v1252, 0
    %v1386 = vsel %vm244, %v1138, 0
    %1388 = vmatpush.bf16.msra.mxu0 0
    %1389 = vmatpush.bf16.msra.mxu0 0
    %1390 = vmatpush.bf16.msra.mxu0 0
    %1391 = vmatpush.bf16.msra.mxu0 0
    %1392 = vmatpush.bf16.msra.mxu0 0
    %1393 = vmatpush.bf16.msra.mxu0 0
    %1394 = vmatpush.bf16.msra.mxu0 0
    %1395 = vmatpush.bf16.msra.mxu0 %v1386
    %1396 = vmatmul.bf16.gmra.mxu0 %v1383
    %v1397 = vpop.f32.mrf.mxu0
    %v1398 = vadd.f32 %v1378, %v1397
    %v1399 = vpop.f32.mrf.mxu0
    %v1400 = vadd.f32 %v1380, %v1399
    %1401 = vdwg.mxu0
    %1402 = vrot.lane.b32.xlu0 %v1133, 80
    %v1403 = vpop.permute.xlu0 %1402
    %1404 = vrot.lane.b32.xlu0 %v1135, 80
    %v1405 = vpop.permute.xlu0 %1404
    %1408 = vxpose.xlu0.b32.start [1/16] %v1403, 128
    %1409 = vxpose.xlu0.b32.cont [2/16] %v1405, 128
    %1410 = vxpose.xlu0.b32.cont [3/16] 0.0, 128
    %1411 = vxpose.xlu0.b32.cont [4/16] 0.0, 128
    %1412 = vxpose.xlu0.b32.cont [5/16] 0.0, 128
    %1413 = vxpose.xlu0.b32.cont [6/16] 0.0, 128
    %1414 = vxpose.xlu0.b32.cont [7/16] 0.0, 128
    %1415 = vxpose.xlu0.b32.cont [8/16] 0.0, 128
    %1416 = vxpose.xlu0.b32.cont [9/16] 0.0, 128
    %1417 = vxpose.xlu0.b32.cont [10/16] 0.0, 128
    %1418 = vxpose.xlu0.b32.cont [11/16] 0.0, 128
    %1419 = vxpose.xlu0.b32.cont [12/16] 0.0, 128
    %1420 = vxpose.xlu0.b32.cont [13/16] 0.0, 128
    %1421 = vxpose.xlu0.b32.cont [14/16] 0.0, 128
    %1422 = vxpose.xlu0.b32.cont [15/16] 0.0, 128
    %1423 = vxpose.xlu0.b32.end [16/16] 0.0, 128
    %v1424 = vpop.trf.xlu0
    %v1425 = vpop.trf.xlu0
    %v1426 = vpop.trf.xlu0
    %v1427 = vpop.trf.xlu0
    %v1428 = vpop.trf.xlu0
    %v1429 = vpop.trf.xlu0
    %v1430 = vpop.trf.xlu0
    %v1431 = vpop.trf.xlu0
    %v1432 = vpop.trf.xlu0
    %v1433 = vpop.trf.xlu0
    %v1434 = vpop.trf.xlu0
    %v1435 = vpop.trf.xlu0
    %v1436 = vpop.trf.xlu0
    %v1437 = vpop.trf.xlu0
    %v1438 = vpop.trf.xlu0
    %v1439 = vpop.trf.xlu0
    %v1440 = vpack.c.bf16 %v1424, %v1424
    %1441 = vrot.lane.b32.xlu0 %v1182, 112
    %v1442 = vpop.permute.xlu0 %1441
    %v1444 = vsel %vm240, %v1442, 0
    %v1447 = vsel %vm244, %v1440, 0
    %1449 = vmatpush.bf16.msra.mxu0 0
    %1450 = vmatpush.bf16.msra.mxu0 0
    %1451 = vmatpush.bf16.msra.mxu0 0
    %1452 = vmatpush.bf16.msra.mxu0 0
    %1453 = vmatpush.bf16.msra.mxu0 0
    %1454 = vmatpush.bf16.msra.mxu0 0
    %1455 = vmatpush.bf16.msra.mxu0 0
    %1456 = vmatpush.bf16.msra.mxu0 %v1447
    %1457 = vmatmul.bf16.gmra.mxu0 %v1444
    %v1458 = vpop.f32.mrf.mxu0
    %v1459 = vadd.f32 0.0, %v1458
    %v1460 = vpop.f32.mrf.mxu0
    %v1461 = vadd.f32 0.0, %v1460
    %1462 = vdwg.mxu0
    %v1463 = vmul.f32 %v1459, 0.35355338
    %v1464 = vmul.f32 %v1461, 0.35355338
    %v1465 = vadd.f32 %v1463, %v85
    %v1466 = vadd.f32 %v1464, %v86
    %v1467 = vsel %vm266, %v1465, -inf
    %1468 = vmax.xlane.f32.xlu0 %v1467
    %v1469 = vpop.xlane.xlu0 %1468
    %v1470 = vsel %vm266, %v1466, -inf
    %1471 = vmax.xlane.f32.xlu0 %v1470
    %v1472 = vpop.xlane.xlu0 %1471
    %v1473 = vsub.f32 %v1465, %v1469
    %v1474 = vsub.f32 %v1466, %v1472
    %v1475 = vmul.f32 %v1473, 1.442695
    %v1476 = vpow.pop %v1475
    %v1477 = vmul.f32 %v1474, 1.442695
    %v1478 = vpow.pop %v1477
    %v1479 = vsel %vm266, %v1476, 0.0
    %1480 = vadd.xlane.f32.xlu0 %v1479
    %v1481 = vpop.xlane.xlu0 %1480
    %v1482 = vsel %vm266, %v1478, 0.0
    %1483 = vadd.xlane.f32.xlu0 %v1482
    %v1484 = vpop.xlane.xlu0 %1483
    %v1485 = vrcp.pop %v1481
    %v1486 = vrcp.pop %v1484
    %v1487 = vmul.f32 %v1476, %v1485
    %v1488 = vmul.f32 %v1478, %v1486
    %v1489 = vpack.c.bf16 %v1488, %v1487
    %1490 = vrot.lane.b32.xlu0 %v1182, 48
    %v1491 = vpop.permute.xlu0 %1490
    %v1494 = vsel %vm266, %v1489, 0
    %1496 = vmatpush.bf16.msra.mxu0 0
    %1497 = vmatpush.bf16.msra.mxu0 0
    %1498 = vmatpush.bf16.msra.mxu0 0
    %1499 = vmatpush.bf16.msra.mxu0 0
    %1500 = vmatpush.bf16.msra.mxu0 0
    %1501 = vmatpush.bf16.msra.mxu0 0
    %1502 = vmatpush.bf16.msra.mxu0 0
    %1503 = vmatpush.bf16.msra.mxu0 %v1491
    %1504 = vmatmul.bf16.gmra.mxu0 %v1494
    %v1505 = vpop.f32.mrf.mxu0
    %v1506 = vadd.f32 0.0, %v1505
    %v1507 = vpop.f32.mrf.mxu0
    %v1508 = vadd.f32 0.0, %v1507
    %1509 = vdwg.mxu0
    %v1510 = vpack.c.bf16 %v1508, %v1506
    %v1512 = vsel %vm240, %v1510, 0
    %v1515 = vsel %vm244, %v1140, 0
    %1517 = vmatpush.bf16.msra.mxu0 0
    %1518 = vmatpush.bf16.msra.mxu0 0
    %1519 = vmatpush.bf16.msra.mxu0 0
    %1520 = vmatpush.bf16.msra.mxu0 0
    %1521 = vmatpush.bf16.msra.mxu0 0
    %1522 = vmatpush.bf16.msra.mxu0 0
    %1523 = vmatpush.bf16.msra.mxu0 0
    %1524 = vmatpush.bf16.msra.mxu0 %v1515
    %1525 = vmatmul.bf16.gmra.mxu0 %v1512
    %v1526 = vpop.f32.mrf.mxu0
    %v1527 = vadd.f32 0.0, %v1526
    %v1528 = vpop.f32.mrf.mxu0
    %v1529 = vadd.f32 0.0, %v1528
    %1530 = vdwg.mxu0
    %v1531 = vadd.f32 %v1398, %v1527
    %v1532 = vadd.f32 %v1400, %v1529
    %1533 = vrot.lane.b32.xlu0 %v1133, 72
    %v1534 = vpop.permute.xlu0 %1533
    %1535 = vrot.lane.b32.xlu0 %v1135, 72
    %v1536 = vpop.permute.xlu0 %1535
    %1539 = vxpose.xlu0.b32.start [1/16] %v1534, 128
    %1540 = vxpose.xlu0.b32.cont [2/16] %v1536, 128
    %1541 = vxpose.xlu0.b32.cont [3/16] 0.0, 128
    %1542 = vxpose.xlu0.b32.cont [4/16] 0.0, 128
    %1543 = vxpose.xlu0.b32.cont [5/16] 0.0, 128
    %1544 = vxpose.xlu0.b32.cont [6/16] 0.0, 128
    %1545 = vxpose.xlu0.b32.cont [7/16] 0.0, 128
    %1546 = vxpose.xlu0.b32.cont [8/16] 0.0, 128
    %1547 = vxpose.xlu0.b32.cont [9/16] 0.0, 128
    %1548 = vxpose.xlu0.b32.cont [10/16] 0.0, 128
    %1549 = vxpose.xlu0.b32.cont [11/16] 0.0, 128
    %1550 = vxpose.xlu0.b32.cont [12/16] 0.0, 128
    %1551 = vxpose.xlu0.b32.cont [13/16] 0.0, 128
    %1552 = vxpose.xlu0.b32.cont [14/16] 0.0, 128
    %1553 = vxpose.xlu0.b32.cont [15/16] 0.0, 128
    %1554 = vxpose.xlu0.b32.end [16/16] 0.0, 128
    %v1555 = vpop.trf.xlu0
    %v1556 = vpop.trf.xlu0
    %v1557 = vpop.trf.xlu0
    %v1558 = vpop.trf.xlu0
    %v1559 = vpop.trf.xlu0
    %v1560 = vpop.trf.xlu0
    %v1561 = vpop.trf.xlu0
    %v1562 = vpop.trf.xlu0
    %v1563 = vpop.trf.xlu0
    %v1564 = vpop.trf.xlu0
    %v1565 = vpop.trf.xlu0
    %v1566 = vpop.trf.xlu0
    %v1567 = vpop.trf.xlu0
    %v1568 = vpop.trf.xlu0
    %v1569 = vpop.trf.xlu0
    %v1570 = vpop.trf.xlu0
    %v1571 = vpack.c.bf16 %v1555, %v1555
    %1572 = vrot.lane.b32.xlu0 %v1182, 104
    %v1573 = vpop.permute.xlu0 %1572
    %v1575 = vsel %vm240, %v1573, 0
    %v1578 = vsel %vm244, %v1571, 0
    %1580 = vmatpush.bf16.msra.mxu0 0
    %1581 = vmatpush.bf16.msra.mxu0 0
    %1582 = vmatpush.bf16.msra.mxu0 0
    %1583 = vmatpush.bf16.msra.mxu0 0
    %1584 = vmatpush.bf16.msra.mxu0 0
    %1585 = vmatpush.bf16.msra.mxu0 0
    %1586 = vmatpush.bf16.msra.mxu0 0
    %1587 = vmatpush.bf16.msra.mxu0 %v1578
    %1588 = vmatmul.bf16.gmra.mxu0 %v1575
    %v1589 = vpop.f32.mrf.mxu0
    %v1590 = vadd.f32 0.0, %v1589
    %v1591 = vpop.f32.mrf.mxu0
    %v1592 = vadd.f32 0.0, %v1591
    %1593 = vdwg.mxu0
    %v1594 = vmul.f32 %v1590, 0.35355338
    %v1595 = vmul.f32 %v1592, 0.35355338
    %v1596 = vadd.f32 %v1594, %v85
    %v1597 = vadd.f32 %v1595, %v86
    %v1598 = vsel %vm266, %v1596, -inf
    %1599 = vmax.xlane.f32.xlu0 %v1598
    %v1600 = vpop.xlane.xlu0 %1599
    %v1601 = vsel %vm266, %v1597, -inf
    %1602 = vmax.xlane.f32.xlu0 %v1601
    %v1603 = vpop.xlane.xlu0 %1602
    %v1604 = vsub.f32 %v1596, %v1600
    %v1605 = vsub.f32 %v1597, %v1603
    %v1606 = vmul.f32 %v1604, 1.442695
    %v1607 = vpow.pop %v1606
    %v1608 = vmul.f32 %v1605, 1.442695
    %v1609 = vpow.pop %v1608
    %v1610 = vsel %vm266, %v1607, 0.0
    %1611 = vadd.xlane.f32.xlu0 %v1610
    %v1612 = vpop.xlane.xlu0 %1611
    %v1613 = vsel %vm266, %v1609, 0.0
    %1614 = vadd.xlane.f32.xlu0 %v1613
    %v1615 = vpop.xlane.xlu0 %1614
    %v1616 = vrcp.pop %v1612
    %v1617 = vrcp.pop %v1615
    %v1618 = vmul.f32 %v1607, %v1616
    %v1619 = vmul.f32 %v1609, %v1617
    %v1620 = vpack.c.bf16 %v1619, %v1618
    %1621 = vrot.lane.b32.xlu0 %v1182, 40
    %v1622 = vpop.permute.xlu0 %1621
    %v1625 = vsel %vm266, %v1620, 0
    %1627 = vmatpush.bf16.msra.mxu0 0
    %1628 = vmatpush.bf16.msra.mxu0 0
    %1629 = vmatpush.bf16.msra.mxu0 0
    %1630 = vmatpush.bf16.msra.mxu0 0
    %1631 = vmatpush.bf16.msra.mxu0 0
    %1632 = vmatpush.bf16.msra.mxu0 0
    %1633 = vmatpush.bf16.msra.mxu0 0
    %1634 = vmatpush.bf16.msra.mxu0 %v1622
    %1635 = vmatmul.bf16.gmra.mxu0 %v1625
    %v1636 = vpop.f32.mrf.mxu0
    %v1637 = vadd.f32 0.0, %v1636
    %v1638 = vpop.f32.mrf.mxu0
    %v1639 = vadd.f32 0.0, %v1638
    %1640 = vdwg.mxu0
    %v1641 = vpack.c.bf16 %v1639, %v1637
    %v1643 = vsel %vm240, %v1641, 0
    %v1646 = vsel %vm244, %v1141, 0
    %1648 = vmatpush.bf16.msra.mxu0 0
    %1649 = vmatpush.bf16.msra.mxu0 0
    %1650 = vmatpush.bf16.msra.mxu0 0
    %1651 = vmatpush.bf16.msra.mxu0 0
    %1652 = vmatpush.bf16.msra.mxu0 0
    %1653 = vmatpush.bf16.msra.mxu0 0
    %1654 = vmatpush.bf16.msra.mxu0 0
    %1655 = vmatpush.bf16.msra.mxu0 %v1646
    %1656 = vmatmul.bf16.gmra.mxu0 %v1643
    %v1657 = vpop.f32.mrf.mxu0
    %v1658 = vadd.f32 0.0, %v1657
    %v1659 = vpop.f32.mrf.mxu0
    %v1660 = vadd.f32 0.0, %v1659
    %1661 = vdwg.mxu0
    %v1662 = vadd.f32 %v1531, %v1658
    %v1663 = vadd.f32 %v1532, %v1660
    %s1664 = scalar_lea.vmem %s8, 1
    %v1665 = vld [vmem:[%s1664] sm:$0x1]
    %v1667 = vperm.slane %v1665, 0
    %v1669 = vadd.f32 %v1662, %v1667
    %v1670 = vadd.f32 %v1663, %v1667
    %v1671 = vadd.f32 %v1669, %v1095
    %v1672 = vadd.f32 %v1670, %v1096
    %s1673 = scalar_lea.vmem %s9, 1
    %v1674 = vld [vmem:[%s1673] sm:$0x1]
    %s1675 = scalar_lea.vmem %s10, 1
    %v1676 = vld [vmem:[%s1675] sm:$0x1]
    %v1677 = vsel %vm94, %v1671, 0.0
    %1678 = vadd.xlane.f32.xlu0 %v1677
    %v1679 = vpop.xlane.xlu0 %1678
    %v1680 = vsel %vm94, %v1672, 0.0
    %1681 = vadd.xlane.f32.xlu0 %v1680
    %v1682 = vpop.xlane.xlu0 %1681
    %v1683 = vmul.f32 %v1679, %v107
    %v1684 = vmul.f32 %v1682, %v107
    %v1685 = vsub.f32 %v1671, %v1683
    %v1686 = vsub.f32 %v1672, %v1684
    %v1687 = vmul.f32 %v1685, %v1685
    %v1688 = vmul.f32 %v1686, %v1686
    %v1689 = vsel %vm94, %v1687, 0.0
    %1690 = vadd.xlane.f32.xlu0 %v1689
    %v1691 = vpop.xlane.xlu0 %1690
    %v1692 = vsel %vm94, %v1688, 0.0
    %1693 = vadd.xlane.f32.xlu0 %v1692
    %v1694 = vpop.xlane.xlu0 %1693
    %v1695 = vmul.f32 %v1691, %v107
    %v1696 = vmul.f32 %v1694, %v107
    %v1697 = vadd.f32 %v1695, 1e-12
    %v1698 = vadd.f32 %v1696, 1e-12
    %v1699 = vrsqrt.pop %v1697
    %v1700 = vmul.f32 %v1699, %v1697
    %v1701 = vmul.f32 %v1700, %v1699
    %v1702 = vmul.f32 0.5, %v1701
    %v1703 = vsub.f32 1.5, %v1702
    %v1704 = vmul.f32 %v1699, %v1703
    %vm1705 = vweird.f32 %v1697
    %vm1706 = vweird.f32 %v1699
    %vm1707 = vmor %vm1705, %vm1706
    %v1708 = vsel %vm1707, %v1699, %v1704
    %v1709 = vrsqrt.pop %v1698
    %v1710 = vmul.f32 %v1709, %v1698
    %v1711 = vmul.f32 %v1710, %v1709
    %v1712 = vmul.f32 0.5, %v1711
    %v1713 = vsub.f32 1.5, %v1712
    %v1714 = vmul.f32 %v1709, %v1713
    %vm1715 = vweird.f32 %v1698
    %vm1716 = vweird.f32 %v1709
    %vm1717 = vmor %vm1715, %vm1716
    %v1718 = vsel %vm1717, %v1709, %v1714
    %v1719 = vmul.f32 %v1685, %v1708
    %v1720 = vmul.f32 %v1686, %v1718
    %v1722 = vperm.slane %v1674, 0
    %v1724 = vmul.f32 %v1719, %v1722
    %v1725 = vmul.f32 %v1720, %v1722
    %v1727 = vperm.slane %v1676, 0
    %v1729 = vadd.f32 %v1724, %v1727
    %v1730 = vadd.f32 %v1725, %v1727
    %s1731 = scalar_lea.vmem %s11, 16
    %v1732 = vld [vmem:[%s1731] sm:$0xf]
    %v1733 = vld [vmem:[%s1731 + $0x4] sm:$0xf]
    %v1734 = vld [vmem:[%s1731 + $0x8] sm:$0xf]
    %v1735 = vld [vmem:[%s1731 + $0xc] sm:$0xf]
    %v1736 = vpack.c.bf16 %v1730, %v1729
    %s1737 = scalar_lea.vmem %s12, 8
    %v1738 = vld [vmem:[%s1737] sm:$0xf]
    %v1739 = vld [vmem:[%s1737 + $0x4] sm:$0xf]
    %v1742 = vunpack.c.l.b16 %v1738
    %v1743 = vunpack.c.l.b16 %v1739
    %v1744 = vpack.c.b16 %v1743, %v1742
    %1746 = vmatpush.bf16.msra.mxu0 0
    %1747 = vmatpush.bf16.msra.mxu0 0
    %1748 = vmatpush.bf16.msra.mxu0 0
    %1749 = vmatpush.bf16.msra.mxu0 0
    %1750 = vmatpush.bf16.msra.mxu0 0
    %1751 = vmatpush.bf16.msra.mxu0 0
    %1752 = vmatpush.bf16.msra.mxu0 0
    %1753 = vmatpush.bf16.msra.mxu0 %v1744
    %1754 = vmatmul.bf16.gmra.mxu0 %v801
    %v1755 = vpop.f32.mrf.mxu0
    %v1756 = vadd.f32 0.0, %v1755
    %v1757 = vpop.f32.mrf.mxu0
    %v1758 = vadd.f32 0.0, %v1757
    %1759 = vdwg.mxu0
    %v1764 = vunpack.c.l.b16 %v1732
    %v1765 = vunpack.c.l.b16 %v1733
    %v1766 = vunpack.c.l.b16 %v1734
    %v1767 = vunpack.c.l.b16 %v1735
    %v1768 = vpack.c.b16 %v1765, %v1764
    %v1769 = vpack.c.b16 %v1767, %v1766
    %v1773 = vsel %vm94, %v1736, 0
    %1775 = vmatpush.bf16.msra.mxu0 0
    %1776 = vmatpush.bf16.msra.mxu0 0
    %1777 = vmatpush.bf16.msra.mxu0 0
    %1778 = vmatpush.bf16.msra.mxu0 0
    %1779 = vmatpush.bf16.msra.mxu0 0
    %1780 = vmatpush.bf16.msra.mxu0 0
    %1781 = vmatpush.bf16.msra.mxu0 %v1769
    %1782 = vmatpush.bf16.msra.mxu0 %v1768
    %1783 = vmatmul.bf16.gmra.mxu0 %v1773
    %v1784 = vpop.f32.mrf.mxu0
    %v1785 = vadd.f32 %v1756, %v1784
    %v1786 = vpop.f32.mrf.mxu0
    %v1787 = vadd.f32 %v1758, %v1786
    %1788 = vdwg.mxu0
    %s1789 = scalar_lea.vmem %s13, 1
    %v1790 = vld [vmem:[%s1789] sm:$0x1]
    %v1792 = vperm.slane %v1790, 0
    %v1794 = vadd.f32 %v1785, %v1792
    %v1795 = vadd.f32 %v1787, %v1792
    %v1796 = vmul.f32 %v1794, %v1794
    %v1797 = vmul.f32 %v1795, %v1795
    %v1798 = vmul.f32 %v1794, %v1796
    %v1799 = vmul.f32 %v1795, %v1797
    %v1800 = vmul.f32 %v1798, 0.044715
    %v1801 = vmul.f32 %v1799, 0.044715
    %v1802 = vadd.f32 %v1794, %v1800
    %v1803 = vadd.f32 %v1795, %v1801
    %v1804 = vmul.f32 %v1802, 0.7978846
    %v1805 = vmul.f32 %v1803, 0.7978846
    %v1806 = vtanh.pop %v1804
    %v1807 = vtanh.pop %v1805
    %v1808 = vadd.f32 %v1806, 1.0
    %v1809 = vadd.f32 %v1807, 1.0
    %v1810 = vmul.f32 %v1808, 0.5
    %v1811 = vmul.f32 %v1809, 0.5
    %v1812 = vmul.f32 %v1794, %v1810
    %v1813 = vmul.f32 %v1795, %v1811
    %v1814 = vadd.f32 %v1812, %v1729
    %v1815 = vadd.f32 %v1813, %v1730
    %s1816 = scalar_lea.vmem %s14, 1
    %v1817 = vld [vmem:[%s1816] sm:$0x1]
    %s1818 = scalar_lea.vmem %s15, 1
    %v1819 = vld [vmem:[%s1818] sm:$0x1]
    %v1820 = vsel %vm94, %v1814, 0.0
    %1821 = vadd.xlane.f32.xlu0 %v1820
    %v1822 = vpop.xlane.xlu0 %1821
    %v1823 = vsel %vm94, %v1815, 0.0
    %1824 = vadd.xlane.f32.xlu0 %v1823
    %v1825 = vpop.xlane.xlu0 %1824
    %v1826 = vmul.f32 %v1822, %v107
    %v1827 = vmul.f32 %v1825, %v107
    %v1828 = vsub.f32 %v1814, %v1826
    %v1829 = vsub.f32 %v1815, %v1827
    %v1830 = vmul.f32 %v1828, %v1828
    %v1831 = vmul.f32 %v1829, %v1829
    %v1832 = vsel %vm94, %v1830, 0.0
    %1833 = vadd.xlane.f32.xlu0 %v1832
    %v1834 = vpop.xlane.xlu0 %1833
    %v1835 = vsel %vm94, %v1831, 0.0
    %1836 = vadd.xlane.f32.xlu0 %v1835
    %v1837 = vpop.xlane.xlu0 %1836
    %v1838 = vmul.f32 %v1834, %v107
    %v1839 = vmul.f32 %v1837, %v107
    %v1840 = vadd.f32 %v1838, 1e-12
    %v1841 = vadd.f32 %v1839, 1e-12
    %v1842 = vrsqrt.pop %v1840
    %v1843 = vmul.f32 %v1842, %v1840
    %v1844 = vmul.f32 %v1843, %v1842
    %v1845 = vmul.f32 0.5, %v1844
    %v1846 = vsub.f32 1.5, %v1845
    %v1847 = vmul.f32 %v1842, %v1846
    %vm1848 = vweird.f32 %v1840
    %vm1849 = vweird.f32 %v1842
    %vm1850 = vmor %vm1848, %vm1849
    %v1851 = vsel %vm1850, %v1842, %v1847
    %v1852 = vrsqrt.pop %v1841
    %v1853 = vmul.f32 %v1852, %v1841
    %v1854 = vmul.f32 %v1853, %v1852
    %v1855 = vmul.f32 0.5, %v1854
    %v1856 = vsub.f32 1.5, %v1855
    %v1857 = vmul.f32 %v1852, %v1856
    %vm1858 = vweird.f32 %v1841
    %vm1859 = vweird.f32 %v1852
    %vm1860 = vmor %vm1858, %vm1859
    %v1861 = vsel %vm1860, %v1852, %v1857
    %v1862 = vmul.f32 %v1828, %v1851
    %v1863 = vmul.f32 %v1829, %v1861
    %v1865 = vperm.slane %v1817, 0
    %v1867 = vmul.f32 %v1862, %v1865
    %v1868 = vmul.f32 %v1863, %v1865
    %v1870 = vperm.slane %v1819, 0
    %v1872 = vadd.f32 %v1867, %v1870
    %v1873 = vadd.f32 %v1868, %v1870
    %s1874 = scalar_lea.vmem %s16, 16
    %v1875 = vld [vmem:[%s1874] sm:$0xf]
    %v1876 = vld [vmem:[%s1874 + $0x4] sm:$0xf]
    %v1877 = vld [vmem:[%s1874 + $0x8] sm:$0xf]
    %v1878 = vld [vmem:[%s1874 + $0xc] sm:$0xf]
    %v1879 = vpack.c.bf16 %v1873, %v1872
    %s1880 = scalar_lea.vmem %s17, 1
    %v1881 = vld [vmem:[%s1880] sm:$0x1]
    %v1883 = vperm.slane %v1881, 0
    %v1889 = vunpack.c.l.b16 %v1875
    %v1890 = vunpack.c.l.b16 %v1876
    %v1891 = vunpack.c.l.b16 %v1877
    %v1892 = vunpack.c.l.b16 %v1878
    %v1893 = vpack.c.b16 %v1890, %v1889
    %v1894 = vpack.c.b16 %v1892, %v1891
    %v1898 = vsel %vm94, %v1879, 0
    %1900 = vmatpush.bf16.msra.mxu0 0
    %1901 = vmatpush.bf16.msra.mxu0 0
    %1902 = vmatpush.bf16.msra.mxu0 0
    %1903 = vmatpush.bf16.msra.mxu0 0
    %1904 = vmatpush.bf16.msra.mxu0 0
    %1905 = vmatpush.bf16.msra.mxu0 0
    %1906 = vmatpush.bf16.msra.mxu0 %v1894
    %1907 = vmatpush.bf16.msra.mxu0 %v1893
    %1908 = vmatmul.bf16.gmra.mxu0 %v1898
    %v1909 = vpop.f32.mrf.mxu0
    %v1910 = vadd.f32 %v1883, %v1909
    %v1911 = vpop.f32.mrf.mxu0
    %v1912 = vadd.f32 %v1883, %v1911
    %1913 = vdwg.mxu0
    %v1914 = vmul.f32 %v1910, %v1910
    %v1915 = vmul.f32 %v1912, %v1912
    %v1916 = vmul.f32 %v1910, %v1914
    %v1917 = vmul.f32 %v1912, %v1915
    %v1918 = vmul.f32 %v1916, 0.044715
    %v1919 = vmul.f32 %v1917, 0.044715
    %v1920 = vadd.f32 %v1910, %v1918
    %v1921 = vadd.f32 %v1912, %v1919
    %v1922 = vmul.f32 %v1920, 0.7978846
    %v1923 = vmul.f32 %v1921, 0.7978846
    %v1924 = vtanh.pop %v1922
    %v1925 = vtanh.pop %v1923
    %v1926 = vadd.f32 %v1924, 1.0
    %v1927 = vadd.f32 %v1925, 1.0
    %v1928 = vmul.f32 %v1926, 0.5
    %v1929 = vmul.f32 %v1927, 0.5
    %v1930 = vmul.f32 %v1910, %v1928
    %v1931 = vmul.f32 %v1912, %v1929
    %s1932 = scalar_lea.vmem %s18, 32
    %v1933 = vld [vmem:[%s1932] sm:$0xf]
    %v1934 = vld [vmem:[%s1932 + $0x4] sm:$0xf]
    %v1935 = vld [vmem:[%s1932 + $0x8] sm:$0xf]
    %v1936 = vld [vmem:[%s1932 + $0xc] sm:$0xf]
    %v1937 = vld [vmem:[%s1932 + $0x10] sm:$0xf]
    %v1938 = vld [vmem:[%s1932 + $0x14] sm:$0xf]
    %v1939 = vld [vmem:[%s1932 + $0x18] sm:$0xf]
    %v1940 = vld [vmem:[%s1932 + $0x1c] sm:$0xf]
    %v1941 = vpack.c.bf16 %v1931, %v1930
    %s1942 = scalar_lea.vmem %s19, 1
    %v1943 = vld [vmem:[%s1942] sm:$0x1]
    %v1945 = vperm.slane %v1943, 0
    %v1955 = vunpack.c.l.b16 %v1933
    %v1956 = vunpack.c.l.b16 %v1934
    %v1957 = vunpack.c.l.b16 %v1935
    %v1958 = vunpack.c.l.b16 %v1936
    %v1959 = vunpack.c.l.b16 %v1937
    %v1960 = vunpack.c.l.b16 %v1938
    %v1961 = vunpack.c.l.b16 %v1939
    %v1962 = vunpack.c.l.b16 %v1940
    %v1963 = vpack.c.b16 %v1956, %v1955
    %v1964 = vpack.c.b16 %v1958, %v1957
    %v1965 = vpack.c.b16 %v1960, %v1959
    %v1966 = vpack.c.b16 %v1962, %v1961
    %v1972 = vsel %vm1021, %v1941, 0
    %1974 = vmatpush.bf16.msra.mxu0 0
    %1975 = vmatpush.bf16.msra.mxu0 0
    %1976 = vmatpush.bf16.msra.mxu0 0
    %1977 = vmatpush.bf16.msra.mxu0 0
    %1978 = vmatpush.bf16.msra.mxu0 %v1966
    %1979 = vmatpush.bf16.msra.mxu0 %v1965
    %1980 = vmatpush.bf16.msra.mxu0 %v1964
    %1981 = vmatpush.bf16.msra.mxu0 %v1963
    %1982 = vmatmul.bf16.gmra.mxu0 %v1972
    %v1983 = vpop.f32.mrf.mxu0
    %v1984 = vadd.f32 %v1945, %v1983
    %v1985 = vpop.f32.mrf.mxu0
    %v1986 = vadd.f32 %v1945, %v1985
    %1987 = vdwg.mxu0
    %v1988 = vadd.f32 %v1984, %v1872
    %v1989 = vadd.f32 %v1986, %v1873
    %s1990 = scalar_lea.vmem %s20, 1
    %v1991 = vld [vmem:[%s1990] sm:$0x1]
    %s1992 = scalar_lea.vmem %s21, 1
    %v1993 = vld [vmem:[%s1992] sm:$0x1]
    %v1994 = vsel %vm94, %v1988, 0.0
    %1995 = vadd.xlane.f32.xlu0 %v1994
    %v1996 = vpop.xlane.xlu0 %1995
    %v1997 = vsel %vm94, %v1989, 0.0
    %1998 = vadd.xlane.f32.xlu0 %v1997
    %v1999 = vpop.xlane.xlu0 %1998
    %v2000 = vmul.f32 %v1996, %v107
    %v2001 = vmul.f32 %v1999, %v107
    %v2002 = vsub.f32 %v1988, %v2000
    %v2003 = vsub.f32 %v1989, %v2001
    %v2004 = vmul.f32 %v2002, %v2002
    %v2005 = vmul.f32 %v2003, %v2003
    %v2006 = vsel %vm94, %v2004, 0.0
    %2007 = vadd.xlane.f32.xlu0 %v2006
    %v2008 = vpop.xlane.xlu0 %2007
    %v2009 = vsel %vm94, %v2005, 0.0
    %2010 = vadd.xlane.f32.xlu0 %v2009
    %v2011 = vpop.xlane.xlu0 %2010
    %v2012 = vmul.f32 %v2008, %v107
    %v2013 = vmul.f32 %v2011, %v107
    %v2014 = vadd.f32 %v2012, 1e-12
    %v2015 = vadd.f32 %v2013, 1e-12
    %v2016 = vrsqrt.pop %v2014
    %v2017 = vmul.f32 %v2016, %v2014
    %v2018 = vmul.f32 %v2017, %v2016
    %v2019 = vmul.f32 0.5, %v2018
    %v2020 = vsub.f32 1.5, %v2019
    %v2021 = vmul.f32 %v2016, %v2020
    %vm2022 = vweird.f32 %v2014
    %vm2023 = vweird.f32 %v2016
    %vm2024 = vmor %vm2022, %vm2023
    %v2025 = vsel %vm2024, %v2016, %v2021
    %v2026 = vrsqrt.pop %v2015
    %v2027 = vmul.f32 %v2026, %v2015
    %v2028 = vmul.f32 %v2027, %v2026
    %v2029 = vmul.f32 0.5, %v2028
    %v2030 = vsub.f32 1.5, %v2029
    %v2031 = vmul.f32 %v2026, %v2030
    %vm2032 = vweird.f32 %v2015
    %vm2033 = vweird.f32 %v2026
    %vm2034 = vmor %vm2032, %vm2033
    %v2035 = vsel %vm2034, %v2026, %v2031
    %v2036 = vmul.f32 %v2002, %v2025
    %v2037 = vmul.f32 %v2003, %v2035
    %v2039 = vperm.slane %v1991, 0
    %v2041 = vmul.f32 %v2036, %v2039
    %v2042 = vmul.f32 %v2037, %v2039
    %v2044 = vperm.slane %v1993, 0
    %v2046 = vadd.f32 %v2041, %v2044
    %v2047 = vadd.f32 %v2042, %v2044
    %v2049 = vrot.slane %v2047, 7
    %vm2051 = vcmask 1040384
    %v2052 = vsel %vm2051, %v2046, %v2049
    %v2053 = vld [vmem:[%s22] sm:$0xf]
    %v2054 = vld [vmem:[%s22 + $0x4] sm:$0xf]
    %v2055 = vld [vmem:[%s22 + $0x8] sm:$0xf]
    %v2056 = vld [vmem:[%s22 + $0xc] sm:$0xf]
    %v2057 = vpack.c.bf16 %v2052, %v2052
    %v2058 = vld [vmem:[%s23] sm:$0x1]
    %v2060 = vperm.slane %v2058, 0
    %v2066 = vunpack.c.l.b16 %v2053
    %v2067 = vunpack.c.l.b16 %v2054
    %v2068 = vunpack.c.l.b16 %v2055
    %v2069 = vunpack.c.l.b16 %v2056
    %v2070 = vpack.c.b16 %v2067, %v2066
    %v2071 = vpack.c.b16 %v2069, %v2068
    %v2075 = vsel %vm94, %v2057, 0
    %2077 = vmatpush.bf16.msra.mxu0 0
    %2078 = vmatpush.bf16.msra.mxu0 0
    %2079 = vmatpush.bf16.msra.mxu0 0
    %2080 = vmatpush.bf16.msra.mxu0 0
    %2081 = vmatpush.bf16.msra.mxu0 0
    %2082 = vmatpush.bf16.msra.mxu0 0
    %2083 = vmatpush.bf16.msra.mxu0 %v2071
    %2084 = vmatpush.bf16.msra.mxu0 %v2070
    %2085 = vmatmul.bf16.gmra.mxu0 %v2075
    %v2086 = vpop.f32.mrf.mxu0
    %v2087 = vadd.f32 %v2060, %v2086
    %v2088 = vpop.f32.mrf.mxu0
    %2089 = vdwg.mxu0
    %v2090 = vtanh.pop %v2087
    %v2091 = vld [vmem:[%s24] sm:$0xf]
    %v2092 = vld [vmem:[%s24 + $0x4] sm:$0xf]
    %v2093 = vld [vmem:[%s24 + $0x8] sm:$0xf]
    %v2094 = vld [vmem:[%s24 + $0xc] sm:$0xf]
    %v2095 = vpack.c.bf16 %v2090, %v2090
    %v2096 = vld [vmem:[%s25] sm:$0x1]
    %v2098 = vperm.slane %v2096, 0
    %v2104 = vunpack.c.l.b16 %v2091
    %v2105 = vunpack.c.l.b16 %v2092
    %v2106 = vunpack.c.l.b16 %v2093
    %v2107 = vunpack.c.l.b16 %v2094
    %v2108 = vpack.c.b16 %v2105, %v2104
    %v2109 = vpack.c.b16 %v2107, %v2106
    %v2113 = vsel %vm94, %v2095, 0
    %2115 = vmatpush.bf16.msra.mxu0 0
    %2116 = vmatpush.bf16.msra.mxu0 0
    %2117 = vmatpush.bf16.msra.mxu0 0
    %2118 = vmatpush.bf16.msra.mxu0 0
    %2119 = vmatpush.bf16.msra.mxu0 0
    %2120 = vmatpush.bf16.msra.mxu0 0
    %2121 = vmatpush.bf16.msra.mxu0 %v2109
    %2122 = vmatpush.bf16.msra.mxu0 %v2108
    %2123 = vmatmul.bf16.gmra.mxu0 %v2113
    %v2124 = vpop.f32.mrf.mxu0
    %v2125 = vadd.f32 %v2098, %v2124
    %v2126 = vpop.f32.mrf.mxu0
    %2127 = vdwg.mxu0
    %2128 = vst [vmem:[#allocation2] sm:$0x3] %v2125
    // Predicated region
    $region106: #{ernie_net_forward.1} parent=1 // pred_check
      _
    $region107: #{ernie_net_forward.1} parent=1 // pred_check_branch
      %2130 = sbr.rel (0) target = $region109
    $region108: #{ernie_net_forward.1} parent=1 // pred_region
      %2132 = vsyncadd [#allocation3], 0
      %s2134 = sshll.u32 [#allocation2], 4
      %s2135 = int_to_ptr.vmem [resolvable:$true] %s2134
      %s2136 = sshll.u32 %s26, 4
      %s2137 = int_to_ptr.hbm [resolvable:$true] %s2136
      %2139 = dma.vmem_to_hbm [thread:$0]  %s2135, 32, %s2137, [#allocation3]
    $region109: #{ernie_net_forward.1} parent=1 // pred_fallthru
      _
    // Predicated region
    $region110: #{ernie_net_forward.1} parent=1 // pred_check
      _
    $region111: #{ernie_net_forward.1} parent=1 // pred_check_branch
      %2141 = sbr.rel (0) target = $region113
    $region112: #{ernie_net_forward.1} parent=1 // pred_region
      %2143 = dma.done [#allocation3], 32
    $region113: #{ernie_net_forward.1} parent=1 // pred_fallthru
      _
    %2144 = vsyncpa [#allocation3], 1

</llo_original>
